<compile_context>
chip_gen: v7x
topology: tpu7x:2x2x1
jax: 0.10.0
libtpu: 0.0.40
codegen_flags: <defaults>
</compile_context>

<pallas_src>
import functools

import jax
import jax.numpy as jnp
from jax.experimental import pallas as pl
from jax.experimental.pallas import tpu as pltpu


def _aa_matmul_kernel(lhs_ref, rhs_ref, out_ref, acc_ref, *,
                      weight_splits, stabilize, group):
    """Grid step (i, j, k): accumulate limb matmuls for one K-chunk; on the
    last K-chunk run the exp (or per-128-column stabilized exp) epilogue."""
    k = pl.program_id(2)

    @pl.when(k == 0)
    def _():
        acc_ref[...] = jnp.zeros_like(acc_ref)

    # One shared bf16 rhs tile; static-unrolled loop over the lhs bf16 limbs.
    rhs = rhs_ref[...]
    part = jnp.dot(lhs_ref[0], rhs, preferred_element_type=jnp.float32)
    for s in range(1, weight_splits):
        part = part + jnp.dot(lhs_ref[s], rhs, preferred_element_type=jnp.float32)
    acc_ref[...] += part

    @pl.when(k == pl.num_programs(2) - 1)
    def _():
        log_dist = acc_ref[...]
        if stabilize:
            # PyTorch n_feat > 50 branch: per (test row, 128-train-column batch)
            # max, then its exact (unusual) `max_log * exp(log - max_log)` form.
            # Column groups are 128-aligned globally, so they coincide with the
            # PyTorch batch_size = 64 * 2 train batches.
            n_grp = log_dist.shape[-1] // group
            for g in range(n_grp):
                blk = log_dist[:, g * group:(g + 1) * group]
                mx = jnp.max(blk, axis=-1, keepdims=True)
                out_ref[:, g * group:(g + 1) * group] = (
                    mx * jnp.exp(blk - mx)).astype(out_ref.dtype)
        else:
            out_ref[...] = jnp.exp(log_dist).astype(out_ref.dtype)


def _split_bf16_limbs(x, n):
    """Split an f32 array/scalar into n bf16 limbs whose (f32) sum ~= x."""
    limbs = []
    resid = jnp.asarray(x, jnp.float32)
    for _ in range(n):
        limb = resid.astype(jnp.bfloat16)
        limbs.append(limb)
        resid = resid - limb.astype(jnp.float32)
    return limbs


def aitchison_aitken_kernel(bandwidths, test_Xs, train_Xs, *, num_levels,
                            edge_mask=None, inv=False,
                            tile_test=512, tile_train=512, weight_splits=2,
                            out_dtype=jnp.float32, vmem_budget_bytes=None):
    """Forward pass of AitchisonAitkenKernel via a Pallas TPU matmul kernel."""
    # ---- glue identical to the PyTorch forward() ---------------------------
    if edge_mask is not None:
        test_Xs = test_Xs * edge_mask[None, :]
        train_Xs = train_Xs * edge_mask[None, :]

    test_Xs = test_Xs.astype(jnp.float32)
    train_Xs = train_Xs.astype(jnp.float32)
    n_test, n_feat = test_Xs.shape
    n_train = train_Xs.shape[0]

    stabilize = n_feat > 50
    tile_test = min(tile_test, n_test)
    tile_train = min(tile_train, n_train)
    assert n_test % tile_test == 0 and n_train % tile_train == 0, \
        "example keeps shapes tile-aligned for simplicity"

    # Keep both TensorCores busy on v7x: avoid a 1x1 (parallel, parallel) grid.
    if (n_test // tile_test == 1 and n_train // tile_train == 1
            and tile_test % 16 == 0):
        tile_test //= 2

    if stabilize:
        # Per-128-train-column max inside the (wide) tile, matching PyTorch's
        # batch_size = 64 * 2 loop.
        if tile_train % 128 == 0:
            group = 128
        else:
            assert n_train <= 128, \
                "stabilize branch needs n_train aligned to 128 (PyTorch batching)"
            group = tile_train
    else:
        group = tile_train  # unused

    # ---- hoisted bandwidth math (no logs/selects inside the kernel) --------
    # Clamp strictly inside (0, 1): the multiply/matmul form would turn log(0)
    # into NaN where the original select form produced an exact 0 / -inf.
    bw = jnp.clip(bandwidths.astype(jnp.float32).reshape(n_feat),
                  1e-12, 1.0 - 1e-6)
    if inv:
        true_v, false_v = bw / (num_levels - 1), 1.0 - bw
    else:
        true_v, false_v = 1.0 - bw, bw / (num_levels - 1)
    delta = jnp.log(true_v) - jnp.log(false_v)                   # (F,)
    const = jnp.sum(jnp.log(false_v)) - jnp.sum(jnp.log(bw))     # scalar

    d_limbs = _split_bf16_limbs(delta, weight_splits)            # bf16 (F,) each
    c_limbs = _split_bf16_limbs(const, weight_splits)            # bf16 () each

    # ---- one-hot encode levels; feature contraction -> MXU matmul ----------
    #   log_dist = sum_s lhs_s @ rhs
    # rhs holds one_hot(train)^T ONCE (plus a single ones row carrying const);
    # the bf16 limb structure lives entirely in lhs and is looped in-kernel.
    levels = jnp.arange(num_levels, dtype=jnp.float32)
    fl = n_feat * num_levels
    K = fl + 1                                      # +1 ones row carries const
    K_pad = ((K + 255) // 256) * 256                # 256-aligned for v6e/v7x MXU

    eq_train = (train_Xs.T[:, None, :] == levels[None, :, None])     # (F, L, n_train)
    rhs = jnp.concatenate(
        [eq_train.astype(jnp.bfloat16).reshape(fl, n_train),
         jnp.ones((1, n_train), jnp.bfloat16),
         jnp.zeros((K_pad - K, n_train), jnp.bfloat16)], axis=0)      # (K_pad, n_train)

    eq_test = (test_Xs[:, :, None] == levels)                         # (n_test, F, L)
    zero_bf16 = jnp.zeros((), jnp.bfloat16)
    lhs_limbs = []
    for d_s, c_s in zip(d_limbs, c_limbs):   # build each limb directly in bf16
        body = jnp.where(eq_test, d_s[None, :, None], zero_bf16).reshape(n_test, fl)
        lhs_limbs.append(jnp.concatenate(
            [body,
             jnp.full((n_test, 1), c_s, jnp.bfloat16),
             jnp.zeros((n_test, K_pad - K), jnp.bfloat16)], axis=1))
    lhs = jnp.stack(lhs_limbs, axis=0)                # (S, n_test, K_pad) bf16

    # ---- VMEM guard: pick the K chunk so the working set fits --------------
    if vmem_budget_bytes is None:
        vmem_budget_bytes = 24 * 1024 * 1024          # safe on v5e/v6e/v7x
    out_itemsize = jnp.dtype(out_dtype).itemsize

    def _working_set(tk):
        return (2 * (weight_splits * tile_test * tk * 2     # lhs block (bf16, 2-buf)
                     + tk * tile_train * 2                   # rhs block (bf16, 2-buf)
                     + tile_test * tile_train * out_itemsize)  # out block (2-buf)
                + tile_test * tile_train * 4)                # f32 accumulator

    m = K_pad // 256
    cands = sorted({256 * d for d in range(1, m + 1) if m % d == 0}, reverse=True)
    tile_k = next((tk for tk in cands if _working_set(tk) <= vmem_budget_bytes),
                  cands[-1])
    num_k = K_pad // tile_k
    num_i = n_test // tile_test
    num_j = n_train // tile_train

    kernel = functools.partial(_aa_matmul_kernel, weight_splits=weight_splits,
                               stabilize=stabilize, group=group)

    cost = pl.CostEstimate(
        flops=2 * weight_splits * n_test * n_train * K_pad,
        transcendentals=n_test * n_train,
        bytes_accessed=(n_test * n_train * out_itemsize
                        + weight_splits * n_test * K_pad * 2
                          * (num_j if num_k > 1 else 1)      # lhs re-streamed per j iff K split
                        + K_pad * n_train * 2 * num_i),      # rhs re-streamed once per i
    )

    return pl.pallas_call(
        kernel,
        out_shape=jax.ShapeDtypeStruct((n_test, n_train), out_dtype),
        grid_spec=pltpu.PrefetchScalarGridSpec(
            num_scalar_prefetch=0,
            grid=(num_i, num_j, num_k),
            in_specs=[
                pl.BlockSpec((weight_splits, tile_test, tile_k),
                             lambda i, j, k: (0, i, k)),
                pl.BlockSpec((tile_k, tile_train), lambda i, j, k: (k, j)),
            ],
            out_specs=pl.BlockSpec((tile_test, tile_train), lambda i, j, k: (i, j)),
            scratch_shapes=[pltpu.VMEM((tile_test, tile_train), jnp.float32)],
        ),
        compiler_params=pltpu.CompilerParams(
            dimension_semantics=("parallel", "parallel", "arbitrary"),
            vmem_limit_bytes=32 * 1024 * 1024),
        cost_estimate=cost,
    )(lhs, rhs)


def _reference_forward(bandwidths, test_Xs, train_Xs, *, num_levels,
                       edge_mask=None, inv=False, batch_size=128):
    """Pure-JAX mirror of the PyTorch module (both n_feat branches)."""
    if edge_mask is not None:
        test_Xs = test_Xs * edge_mask[None, :]
        train_Xs = train_Xs * edge_mask[None, :]
    bw = bandwidths.astype(jnp.float32)
    eq = (test_Xs[:, None, :] == train_Xs[None, :, :]).astype(jnp.float32)
    if inv:
        true_v, false_v = bw / (num_levels - 1), 1.0 - bw
    else:
        true_v, false_v = 1.0 - bw, bw / (num_levels - 1)
    diff = eq * true_v[None, None, :] + (1.0 - eq) * false_v[None, None, :]
    log_dist = jnp.sum(jnp.log(diff), axis=-1) - jnp.sum(jnp.log(bw))
    n_feat = test_Xs.shape[1]
    if n_feat > 50:
        n_test, n_train = log_dist.shape
        ld = log_dist.reshape(n_test, n_train // batch_size, batch_size)
        max_log = jnp.max(ld, axis=-1, keepdims=True)
        return (max_log * jnp.exp(ld - max_log)).reshape(n_test, n_train)
    return jnp.exp(log_dist)


if __name__ == "__main__":
    key = jax.random.PRNGKey(0)
    num_levels = 4

    # ---- case 1: n_feat <= 50 path (plain exp), 1x2 parallel grid ----------
    n_test, n_train, n_feat = 512, 1024, 16
    k_bw, k_test, k_train, key = jax.random.split(key, 4)
    bandwidths = jax.random.uniform(k_bw, (n_feat,), jnp.float32,
                                    minval=0.1, maxval=0.9)
    test_Xs = jax.random.randint(k_test, (n_test, n_feat), 0, num_levels
                                 ).astype(jnp.float32)
    train_Xs = jax.random.randint(k_train, (n_train, n_feat), 0, num_levels
                                  ).astype(jnp.float32)

    out = aitchison_aitken_kernel(bandwidths, test_Xs, train_Xs,
                                  num_levels=num_levels, inv=False)
    out = jax.block_until_ready(out)
    ref = _reference_forward(bandwidths, test_Xs, train_Xs,
                             num_levels=num_levels, inv=False)
    assert out.shape == (n_test, n_train)
    assert jnp.allclose(out, ref, rtol=1e-3, atol=1e-12), "case 1: mismatch vs reference"

    # ---- case 2: n_feat > 50 branch (in-kernel per-128 max), edge_mask ------
    n_test2, n_train2, n_feat2 = 256, 256, 64
    k_bw2, k_test2, k_train2, k_mask, key = jax.random.split(key, 5)
    bw2 = jax.random.uniform(k_bw2, (n_feat2,), jnp.float32,
                             minval=0.1, maxval=0.9)
    test2 = jax.random.randint(k_test2, (n_test2, n_feat2), 0, num_levels
                               ).astype(jnp.float32)
    train2 = jax.random.randint(k_train2, (n_train2, n_feat2), 0, num_levels
                                ).astype(jnp.float32)
    mask2 = (jax.random.uniform(k_mask, (n_feat2,)) > 0.25).astype(jnp.float32)

    out2 = aitchison_aitken_kernel(bw2, test2, train2, num_levels=num_levels,
                                   edge_mask=mask2, inv=True)
    out2 = jax.block_until_ready(out2)
    ref2 = _reference_forward(bw2, test2, train2, num_levels=num_levels,
                              edge_mask=mask2, inv=True)
    assert out2.shape == (n_test2, n_train2)
    # bf16x2 limb splitting: ~1e-3 worst-case relative error at this n_feat.
    assert jnp.allclose(out2, ref2, rtol=2e-3, atol=1e-3), "case 2: mismatch vs reference"

    # ---- case 3: force the K-split / VMEM-guard path (num_k > 1) -----------
    out3 = aitchison_aitken_kernel(bw2, test2, train2, num_levels=num_levels,
                                   edge_mask=mask2, inv=True,
                                   vmem_budget_bytes=1_000_000)
    out3 = jax.block_until_ready(out3)
    assert jnp.allclose(out3, ref2, rtol=2e-3, atol=1e-3), "case 3: mismatch vs reference"

    print("KERNEL_OK")
</pallas_src>

<mosaic_0001>
module attributes {stable_mosaic.version = 11 : i64} {
  func.func @_aa_matmul_kernel(%arg0: i32, %arg1: i32, %arg2: i32, %arg3: memref<2x512x256xbf16, #tpu.memory_space<vmem>>, %arg4: memref<256x512xbf16, #tpu.memory_space<vmem>>, %arg5: memref<512x512xf32, #tpu.memory_space<vmem>>, %arg6: memref<512x512xf32, #tpu.memory_space<vmem>>) attributes {dimension_semantics = [#tpu.dimension_semantics<parallel>, #tpu.dimension_semantics<parallel>, #tpu.dimension_semantics<arbitrary>], iteration_bounds = array<i64: 1, 2, 1>, scalar_prefetch = 0 : i64, scratch_operands = 1 : i64, tpu.core_type = #tpu.core_type<tc>, window_params = [{transform_indices = @transform_0, window_bounds = array<i64: 2, 512, 256>}, {transform_indices = @transform_1, window_bounds = array<i64: 256, 512>}, {transform_indices = @transform_2, window_bounds = array<i64: 512, 512>}]} {
    %c0_i32 = arith.constant 0 : i32
    %0 = arith.cmpi eq, %arg2, %c0_i32 : i32
    %1 = arith.extui %0 : i1 to i32
    %c0_i32_0 = arith.constant 0 : i32
    %2 = arith.cmpi ne, %1, %c0_i32_0 : i32
    scf.if %2 {
      %cst_14 = arith.constant 0.000000e+00 : f32
      %17 = vector.broadcast %cst_14 : f32 to vector<512x512xf32>
      %c0_15 = arith.constant 0 : index
      %c0_16 = arith.constant 0 : index
      %18 = vector.load %arg6[%c0_15, %c0_16] : memref<512x512xf32, #tpu.memory_space<vmem>>, vector<512x512xf32>
      tpu.vector_store %arg6[%c0_15, %c0_16], %17 {strides = array<i32>} : memref<512x512xf32, #tpu.memory_space<vmem>>, vector<512x512xf32>,
    } else {
    }
    %c0 = arith.constant 0 : index
    %c0_1 = arith.constant 0 : index
    %3 = vector.load %arg4[%c0, %c0_1] : memref<256x512xbf16, #tpu.memory_space<vmem>>, vector<256x512xbf16>
    %c0_2 = arith.constant 0 : index
    %c0_3 = arith.constant 0 : index
    %c0_4 = arith.constant 0 : index
    %4 = vector.load %arg3[%c0_2, %c0_3, %c0_4] : memref<2x512x256xbf16, #tpu.memory_space<vmem>>, vector<1x512x256xbf16>
    %5 = vector.shape_cast %4 : vector<1x512x256xbf16> to vector<512x256xbf16>
    %cst = arith.constant dense<0.000000e+00> : vector<512x512xf32>
    %6 = tpu.matmul %5, %3, %cst {dimension_numbers = #tpu.dot_dimension_numbers<[1], [0], [0], [1], [0, 0, 1, 1], [], []>} : vector<512x256xbf16>, vector<256x512xbf16>, vector<512x512xf32> -> vector<512x512xf32>
    %c1 = arith.constant 1 : index
    %c0_5 = arith.constant 0 : index
    %c0_6 = arith.constant 0 : index
    %7 = vector.load %arg3[%c1, %c0_5, %c0_6] : memref<2x512x256xbf16, #tpu.memory_space<vmem>>, vector<1x512x256xbf16>
    %8 = vector.shape_cast %7 : vector<1x512x256xbf16> to vector<512x256xbf16>
    %cst_7 = arith.constant dense<0.000000e+00> : vector<512x512xf32>
    %9 = tpu.matmul %8, %3, %cst_7 {dimension_numbers = #tpu.dot_dimension_numbers<[1], [0], [0], [1], [0, 0, 1, 1], [], []>} : vector<512x256xbf16>, vector<256x512xbf16>, vector<512x512xf32> -> vector<512x512xf32>
    %10 = arith.addf %6, %9 : vector<512x512xf32>
    %c0_8 = arith.constant 0 : index
    %c0_9 = arith.constant 0 : index
    %11 = vector.load %arg6[%c0_8, %c0_9] : memref<512x512xf32, #tpu.memory_space<vmem>>, vector<512x512xf32>
    %12 = arith.addf %11, %10 : vector<512x512xf32>
    %c0_10 = arith.constant 0 : index
    %c0_11 = arith.constant 0 : index
    %13 = vector.load %arg6[%c0_10, %c0_11] : memref<512x512xf32, #tpu.memory_space<vmem>>, vector<512x512xf32>
    tpu.vector_store %arg6[%c0_10, %c0_11], %12 {strides = array<i32>} : memref<512x512xf32, #tpu.memory_space<vmem>>, vector<512x512xf32>,
    %c0_i32_12 = arith.constant 0 : i32
    %14 = arith.cmpi eq, %arg2, %c0_i32_12 : i32
    %15 = arith.extui %14 : i1 to i32
    %c0_i32_13 = arith.constant 0 : i32
    %16 = arith.cmpi ne, %15, %c0_i32_13 : i32
    scf.if %16 {
      %c0_14 = arith.constant 0 : index
      %c0_15 = arith.constant 0 : index
      %17 = vector.load %arg6[%c0_14, %c0_15] : memref<512x512xf32, #tpu.memory_space<vmem>>, vector<512x512xf32>
      %18 = math.exp %17 : vector<512x512xf32>
      %c0_16 = arith.constant 0 : index
      %c0_17 = arith.constant 0 : index
      %19 = vector.load %arg5[%c0_16, %c0_17] : memref<512x512xf32, #tpu.memory_space<vmem>>, vector<512x512xf32>
      tpu.vector_store %arg5[%c0_16, %c0_17], %18 {strides = array<i32>} : memref<512x512xf32, #tpu.memory_space<vmem>>, vector<512x512xf32>,
    } else {
    }
    return
  }
  func.func @transform_0(%arg0: i32, %arg1: i32, %arg2: i32) -> (i32, i32, i32) {
    %c0_i32 = arith.constant 0 : i32
    %c0_i32_0 = arith.constant 0 : i32
    return %c0_i32, %arg0, %arg2 : i32, i32, i32
  }
  func.func @transform_1(%arg0: i32, %arg1: i32, %arg2: i32) -> (i32, i32) {
    %c0_i32 = arith.constant 0 : i32
    return %arg2, %arg1 : i32, i32
  }
  func.func @transform_2(%arg0: i32, %arg1: i32, %arg2: i32) -> (i32, i32) {
    %c0_i32 = arith.constant 0 : i32
    return %arg0, %arg1 : i32, i32
  }
}

</mosaic_0001>

<llo_original>
// kernel: tpu_custom_call.1
$region0: #{tpu_custom_call.1}
  #allocation0 [shape = 'u32[]', space=smem, size = 0x4, offset = 0x4, fixed_abs, tag = 'smem constant byte address 0x4 - core index']
  #allocation1 [shape = 'u32[144,128]{1,0:T(1,128)}', space=vmem, size = 0x12000, scoped, tag = 'internal scratch']
  #allocation2 [shape = 'f32[512,512]{1,0:T(8,128)}', space=vmem, size = 0x100000, scoped, tag = 'scratch operand']
  %s0 = inlined_call_operand.hbm [shape: bf16[2,512,256], index: 0, kind: input, shape index: {}]
  %s1 = inlined_call_operand.hbm [shape: bf16[256,1024], index: 1, kind: input, shape index: {}]
  %s2 = inlined_call_operand.hbm [shape: f32[512,1024], index: 2, kind: output, shape index: {}]
  %s3 = sld [smem:[#allocation0]]
  $region57: #{tpu_custom_call.1} parent=0
    _
  %s5 = ssub.s32 1, %s3
  %s6 = scalar_select 0, %s5, %s3
  $region1: #{tpu_custom_call.1} parent=0
    #allocation3 [shape = 'u8[524288]{0}', space=vmem, size = 0x80000, scoped, tag = 'input window, operand 0, single buffered']
    #allocation4 [shape = 's32[2]{0}', space=sflag, size = 0x8, scoped, tag = 'scoped memory for tpu_custom_call.1']
    #allocation5 [shape = 's32[2]{0}', space=sflag, size = 0x8, scoped, tag = 'scoped memory for tpu_custom_call.1']
    #allocation6 [shape = 'u8[524288]{0}', space=vmem, size = 0x80000, scoped, tag = 'input window, operand 1']
    #allocation7 [shape = 's32[2]{0}', space=sflag, size = 0x8, scoped, tag = 'scoped memory for tpu_custom_call.1']
    #allocation8 [shape = 'u8[2097152]{0}', space=vmem, size = 0x200000, scoped, tag = 'output window, operand 0']
    %7 = vsyncpa [#allocation4], 0
    %8 = vsyncpa [#allocation7], 0
    %s9 = scalar_lea.sflag [#allocation7], 1
    %10 = vsyncpa %s9, 0
    %11 = vsyncpa [#allocation5], 0
    %s12 = scalar_lea.sflag [#allocation5], 1
    %13 = vsyncpa %s12, 0
    loop: start=0, step=1, limit=4
    $region2: #{tpu_custom_call.1} parent=1 // loop_pre_header
      _
    $region3: #{tpu_custom_call.1} parent=1 // loop_header
      %s15 = sphi 0, %s19
      %p16 = scmp.ge.s32.totalorder %s15, 4
      %s22 = sphi 0, %s41
      %s23 = sphi 0, %s37
      %s24 = sphi 0, %s33
      %s25 = sphi 0, %s22
      %s26 = sphi 0, %s23
      %s27 = sphi 0, %s24
      %s28 = sphi 0, %s25
      %s29 = sphi 0, %s26
      %s30 = sphi 0, %s27
      %s46 = sphi 0, %s48
      %s49 = sphi 0, %s46
      %s50 = sphi 0, %s49
      %s66 = sphi 0, %s50
      %s74 = sphi 0, %s76
      %s77 = sphi 0, %s74
      %s78 = sphi 0, %s77
      %s94 = sphi 0, %s78
      %s102 = sphi 0, %s104
      %s105 = sphi 0, %s102
      %s106 = sphi 0, %s105
      %s122 = sphi 0, %s106
    $region4: #{tpu_custom_call.1} parent=1 // loop_header_branch
      %18 = sbr.rel (%p16) target = $region8
    $region5: #{tpu_custom_call.1} parent=1 // loop_body
      %s20 = ssub.s32 %s15, 1
      %s21 = ssub.s32 %s15, 2
      %s31 = sadd.s32 1, %s24
      %p32 = scmp.ge.s32.totalorder %s31, 1
      %s33 = scalar_select %p32, 0, %s31
      %s34 = sadd.s32 1, %s23
      %s35 = scalar_select %p32, %s34, %s23
      %p36 = scmp.ge.s32.totalorder %s35, 2
      %s37 = scalar_select %p36, 0, %s35
      %s38 = sadd.s32 1, %s22
      %s39 = scalar_select %p36, %s38, %s22
      %p40 = scmp.ge.s32.totalorder %s39, 1
      %s41 = scalar_select %p40, 0, %s39
      %s42 = ssub.s32 %s22, %s41
      %s43 = ssub.s32 %s24, %s33
      %s44 = sor.u32 %s42, %s43
      %p45 = scmp.eq.s32.totalorder %s44, 0
      %s47 = sadd.s32 %s46, 1
      %s48 = scalar_select %p45, %s46, %s47
      %p51 = pneg %p45
      %p52 = scmp.eq.s32.totalorder %s15, 1
      %p53 = por %p51, %p52
      %p54 = scmp.ne.s32.totalorder %s46, %s49
      %p55 = scmp.eq.s32.totalorder %s15, 0
      %p56 = por %p54, %p55
      %p57 = scmp.ne.s32.totalorder %s46, %s49
      %p58 = scmp.eq.s32.totalorder %s20, 1
      %p59 = por %p57, %p58
      %p60 = scmp.ne.s32.totalorder %s49, %s50
      %p61 = scmp.eq.s32.totalorder %s20, 0
      %p62 = por %p60, %p61
      %p63 = scmp.ne.s32.totalorder %s49, %s50
      %p64 = scmp.eq.s32.totalorder %s21, 1
      %p65 = por %p63, %p64
      %p67 = scmp.ne.s32.totalorder %s50, %s66
      %p68 = scmp.eq.s32.totalorder %s21, 0
      %p69 = por %p67, %p68
      %s70 = ssub.s32 %s24, %s33
      %s71 = ssub.s32 %s23, %s37
      %s72 = sor.u32 %s70, %s71
      %p73 = scmp.eq.s32.totalorder %s72, 0
      %s75 = sadd.s32 %s74, 1
      %s76 = scalar_select %p73, %s74, %s75
      %p79 = pneg %p73
      %p80 = scmp.eq.s32.totalorder %s15, 1
      %p81 = por %p79, %p80
      %p82 = scmp.ne.s32.totalorder %s74, %s77
      %p83 = scmp.eq.s32.totalorder %s15, 0
      %p84 = por %p82, %p83
      %p85 = scmp.ne.s32.totalorder %s74, %s77
      %p86 = scmp.eq.s32.totalorder %s20, 1
      %p87 = por %p85, %p86
      %p88 = scmp.ne.s32.totalorder %s77, %s78
      %p89 = scmp.eq.s32.totalorder %s20, 0
      %p90 = por %p88, %p89
      %p91 = scmp.ne.s32.totalorder %s77, %s78
      %p92 = scmp.eq.s32.totalorder %s21, 1
      %p93 = por %p91, %p92
      %p95 = scmp.ne.s32.totalorder %s78, %s94
      %p96 = scmp.eq.s32.totalorder %s21, 0
      %p97 = por %p95, %p96
      %s98 = ssub.s32 %s22, %s41
      %s99 = ssub.s32 %s23, %s37
      %s100 = sor.u32 %s98, %s99
      %p101 = scmp.eq.s32.totalorder %s100, 0
      %s103 = sadd.s32 %s102, 1
      %s104 = scalar_select %p101, %s102, %s103
      %p107 = pneg %p101
      %p108 = scmp.eq.s32.totalorder %s15, 1
      %p109 = por %p107, %p108
      %p110 = scmp.ne.s32.totalorder %s102, %s105
      %p111 = scmp.eq.s32.totalorder %s15, 0
      %p112 = por %p110, %p111
      %p113 = scmp.ne.s32.totalorder %s102, %s105
      %p114 = scmp.eq.s32.totalorder %s20, 1
      %p115 = por %p113, %p114
      %p116 = scmp.ne.s32.totalorder %s105, %s106
      %p117 = scmp.eq.s32.totalorder %s20, 0
      %p118 = por %p116, %p117
      %p119 = scmp.ne.s32.totalorder %s105, %s106
      %p120 = scmp.eq.s32.totalorder %s21, 1
      %p121 = por %p119, %p120
      %p123 = scmp.ne.s32.totalorder %s106, %s122
      %p124 = scmp.eq.s32.totalorder %s21, 0
      %p125 = por %p123, %p124
      %p126 = scmp.le.s32.totalorder 1, %s15
      %p127 = scmp.lt.s32.totalorder %s15, 3
      %p128 = pnand %p126, %p127
      %p129 = pneg %p128
      // Predicated region
      $region9: #{tpu_custom_call.1} parent=5 // pred_check
        _
      $region10: #{tpu_custom_call.1} parent=5 // pred_check_branch
        %131 = sbr.rel (%p128) target = $region12
      $region11: #{tpu_custom_call.1} parent=5 // pred_region
        %s132 = ssub.s32 %s15, 1
        // Predicated region
        $region13: #{tpu_custom_call.1} parent=11 // pred_check
          %p133 = pneg %p62
        $region14: #{tpu_custom_call.1} parent=11 // pred_check_branch
          %135 = sbr.rel (%p133) target = $region16
        $region15: #{tpu_custom_call.1} parent=11 // pred_region
          %s136 = smul.u32 64, %s25
          %s137 = smul.u32 2, %s27
          %s139 = ssub.s32 16384, 16384
          %140 = vsyncadd [#allocation4], %s139
          %s141 = smul.addr %s136, 2
          %s142 = sadd.s32 %s137, %s141
          %s143 = smul.addr %s142, 64
          %s144 = scalar_lea.hbm %s0, %s143
          %s145 = sshll.u32 [#allocation3], 4
          %s146 = int_to_ptr.vmem [resolvable:$true] %s145
          %151 = dma.hbm_to_vmem [thread:$0]  %s144, 16384, %s146, [#allocation4], 128, 128, 8
        $region16: #{tpu_custom_call.1} parent=11 // pred_fallthru
          _
      $region12: #{tpu_custom_call.1} parent=5 // pred_fallthru
        _
      %p152 = scmp.lt.s32.totalorder %s15, 2
      // Predicated region
      $region17: #{tpu_custom_call.1} parent=5 // pred_check
        %p153 = pneg %p152
      $region18: #{tpu_custom_call.1} parent=5 // pred_check_branch
        %155 = sbr.rel (%p153) target = $region20
      $region19: #{tpu_custom_call.1} parent=5 // pred_region
        // Predicated region
        $region21: #{tpu_custom_call.1} parent=19 // pred_check
          %p156 = pneg %p84
        $region22: #{tpu_custom_call.1} parent=19 // pred_check_branch
          %158 = sbr.rel (%p156) target = $region24
        $region23: #{tpu_custom_call.1} parent=19 // pred_region
          %s159 = sand.u32 %s74, 1
          %s160 = scalar_lea.sflag [#allocation7], %s159
          %s161 = sand.u32 %s74, 1
          %s162 = smul.addr %s161, 512
          %s163 = scalar_lea.vmem [#allocation6], %s162
          %s164 = smul.u32 32, %s24
          %s165 = smul.u32 4, %s23
          %s167 = ssub.s32 8192, 8192
          %168 = vsyncadd %s160, %s167
          %s169 = smul.addr %s164, 8
          %s170 = sadd.s32 %s165, %s169
          %s171 = smul.addr %s170, 64
          %s172 = scalar_lea.hbm %s1, %s171
          %s173 = sshll.u32 %s163, 4
          %s174 = int_to_ptr.vmem [resolvable:$true] %s173
          %179 = dma.hbm_to_vmem [thread:$0]  %s172, 8192, %s174, %s160, 512, 256, 16
        $region24: #{tpu_custom_call.1} parent=19 // pred_fallthru
          _
      $region20: #{tpu_custom_call.1} parent=5 // pred_fallthru
        _
      %p180 = scmp.le.s32.totalorder 1, %s15
      %p181 = scmp.lt.s32.totalorder %s15, 3
      %p182 = pnand %p180, %p181
      %p183 = pneg %p182
      // Predicated region
      $region25: #{tpu_custom_call.1} parent=5 // pred_check
        _
      $region26: #{tpu_custom_call.1} parent=5 // pred_check_branch
        %185 = sbr.rel (%p182) target = $region28
      $region27: #{tpu_custom_call.1} parent=5 // pred_region
        %s186 = ssub.s32 %s15, 1
        // Predicated region
        $region29: #{tpu_custom_call.1} parent=27 // pred_check
          %p187 = pneg %p62
        $region30: #{tpu_custom_call.1} parent=27 // pred_check_branch
          %189 = sbr.rel (%p187) target = $region32
        $region31: #{tpu_custom_call.1} parent=27 // pred_region
          %190 = dma.done [#allocation4], 16384
        $region32: #{tpu_custom_call.1} parent=27 // pred_fallthru
          _
        %s191 = sand.u32 %s77, 1
        %s192 = scalar_lea.sflag [#allocation7], %s191
        %s193 = sand.u32 %s77, 1
        %s194 = smul.addr %s193, 512
        %s195 = scalar_lea.vmem [#allocation6], %s194
        // Predicated region
        $region33: #{tpu_custom_call.1} parent=27 // pred_check
          %p196 = pneg %p90
        $region34: #{tpu_custom_call.1} parent=27 // pred_check_branch
          %198 = sbr.rel (%p196) target = $region36
        $region35: #{tpu_custom_call.1} parent=27 // pred_region
          %199 = dma.done %s192, 8192
        $region36: #{tpu_custom_call.1} parent=27 // pred_fallthru
          _
        %p200 = pneg %p62
        %p201 = pneg %p59
        %s202 = sand.u32 %s77, 1
        %s203 = scalar_lea.sflag [#allocation7], %s202
        %s204 = sand.u32 %s77, 1
        %s205 = smul.addr %s204, 512
        %s206 = scalar_lea.vmem [#allocation6], %s205
        %p207 = pneg %p90
        %p208 = pneg %p87
        %p209 = pneg %p118
        %p210 = pneg %p115
        %s211 = sand.u32 %s105, 1
        %s212 = scalar_lea.sflag [#allocation5], %s211
        %s213 = sand.u32 %s105, 1
        %s214 = smul.addr %s213, 2048
        %s215 = scalar_lea.vmem [#allocation8], %s214
        %s216 = smul.u32 64, %s25
        %s217 = smul.u32 2, %s27
        %s218 = smul.u32 32, %s27
        %s219 = smul.u32 4, %s26
        %s220 = smul.u32 64, %s25
        %s221 = smul.u32 4, %s26
        %p222 = scmp.eq.s32.totalorder %s27, 0
        // Predicated region
        $region37: #{tpu_custom_call.1} parent=27 // pred_check
          %p223 = pneg %p222
        $region38: #{tpu_custom_call.1} parent=27 // pred_check_branch
          %225 = sbr.rel (%p223) target = $region40
        $region39: #{tpu_custom_call.1} parent=27 // pred_region
          %226 = vst [vmem:[#allocation2] sm:$0xff] 0.0
          %227 = vst [vmem:[#allocation2 + $0x8] sm:$0xff] 0.0
          %228 = vst [vmem:[#allocation2 + $0x10] sm:$0xff] 0.0
          %229 = vst [vmem:[#allocation2 + $0x18] sm:$0xff] 0.0
          %230 = vst [vmem:[#allocation2 + $0x20] sm:$0xff] 0.0
          %231 = vst [vmem:[#allocation2 + $0x28] sm:$0xff] 0.0
          %232 = vst [vmem:[#allocation2 + $0x30] sm:$0xff] 0.0
          %233 = vst [vmem:[#allocation2 + $0x38] sm:$0xff] 0.0
          %234 = vst [vmem:[#allocation2 + $0x40] sm:$0xff] 0.0
          %235 = vst [vmem:[#allocation2 + $0x48] sm:$0xff] 0.0
          %236 = vst [vmem:[#allocation2 + $0x50] sm:$0xff] 0.0
          %237 = vst [vmem:[#allocation2 + $0x58] sm:$0xff] 0.0
          %238 = vst [vmem:[#allocation2 + $0x60] sm:$0xff] 0.0
          %239 = vst [vmem:[#allocation2 + $0x68] sm:$0xff] 0.0
          %240 = vst [vmem:[#allocation2 + $0x70] sm:$0xff] 0.0
          %241 = vst [vmem:[#allocation2 + $0x78] sm:$0xff] 0.0
          %242 = vst [vmem:[#allocation2 + $0x80] sm:$0xff] 0.0
          %243 = vst [vmem:[#allocation2 + $0x88] sm:$0xff] 0.0
          %244 = vst [vmem:[#allocation2 + $0x90] sm:$0xff] 0.0
          %245 = vst [vmem:[#allocation2 + $0x98] sm:$0xff] 0.0
          %246 = vst [vmem:[#allocation2 + $0xa0] sm:$0xff] 0.0
          %247 = vst [vmem:[#allocation2 + $0xa8] sm:$0xff] 0.0
          %248 = vst [vmem:[#allocation2 + $0xb0] sm:$0xff] 0.0
          %249 = vst [vmem:[#allocation2 + $0xb8] sm:$0xff] 0.0
          %250 = vst [vmem:[#allocation2 + $0xc0] sm:$0xff] 0.0
          %251 = vst [vmem:[#allocation2 + $0xc8] sm:$0xff] 0.0
          %252 = vst [vmem:[#allocation2 + $0xd0] sm:$0xff] 0.0
          %253 = vst [vmem:[#allocation2 + $0xd8] sm:$0xff] 0.0
          %254 = vst [vmem:[#allocation2 + $0xe0] sm:$0xff] 0.0
          %255 = vst [vmem:[#allocation2 + $0xe8] sm:$0xff] 0.0
          %256 = vst [vmem:[#allocation2 + $0xf0] sm:$0xff] 0.0
          %257 = vst [vmem:[#allocation2 + $0xf8] sm:$0xff] 0.0
          %258 = vst [vmem:[#allocation2 + $0x100] sm:$0xff] 0.0
          %259 = vst [vmem:[#allocation2 + $0x108] sm:$0xff] 0.0
          %260 = vst [vmem:[#allocation2 + $0x110] sm:$0xff] 0.0
          %261 = vst [vmem:[#allocation2 + $0x118] sm:$0xff] 0.0
          %262 = vst [vmem:[#allocation2 + $0x120] sm:$0xff] 0.0
          %263 = vst [vmem:[#allocation2 + $0x128] sm:$0xff] 0.0
          %264 = vst [vmem:[#allocation2 + $0x130] sm:$0xff] 0.0
          %265 = vst [vmem:[#allocation2 + $0x138] sm:$0xff] 0.0
          %266 = vst [vmem:[#allocation2 + $0x140] sm:$0xff] 0.0
          %267 = vst [vmem:[#allocation2 + $0x148] sm:$0xff] 0.0
          %268 = vst [vmem:[#allocation2 + $0x150] sm:$0xff] 0.0
          %269 = vst [vmem:[#allocation2 + $0x158] sm:$0xff] 0.0
          %270 = vst [vmem:[#allocation2 + $0x160] sm:$0xff] 0.0
          %271 = vst [vmem:[#allocation2 + $0x168] sm:$0xff] 0.0
          %272 = vst [vmem:[#allocation2 + $0x170] sm:$0xff] 0.0
          %273 = vst [vmem:[#allocation2 + $0x178] sm:$0xff] 0.0
          %274 = vst [vmem:[#allocation2 + $0x180] sm:$0xff] 0.0
          %275 = vst [vmem:[#allocation2 + $0x188] sm:$0xff] 0.0
          %276 = vst [vmem:[#allocation2 + $0x190] sm:$0xff] 0.0
          %277 = vst [vmem:[#allocation2 + $0x198] sm:$0xff] 0.0
          %278 = vst [vmem:[#allocation2 + $0x1a0] sm:$0xff] 0.0
          %279 = vst [vmem:[#allocation2 + $0x1a8] sm:$0xff] 0.0
          %280 = vst [vmem:[#allocation2 + $0x1b0] sm:$0xff] 0.0
          %281 = vst [vmem:[#allocation2 + $0x1b8] sm:$0xff] 0.0
          %282 = vst [vmem:[#allocation2 + $0x1c0] sm:$0xff] 0.0
          %283 = vst [vmem:[#allocation2 + $0x1c8] sm:$0xff] 0.0
          %284 = vst [vmem:[#allocation2 + $0x1d0] sm:$0xff] 0.0
          %285 = vst [vmem:[#allocation2 + $0x1d8] sm:$0xff] 0.0
          %286 = vst [vmem:[#allocation2 + $0x1e0] sm:$0xff] 0.0
          %287 = vst [vmem:[#allocation2 + $0x1e8] sm:$0xff] 0.0
          %288 = vst [vmem:[#allocation2 + $0x1f0] sm:$0xff] 0.0
          %289 = vst [vmem:[#allocation2 + $0x1f8] sm:$0xff] 0.0
          %290 = vst [vmem:[#allocation2 + $0x200] sm:$0xff] 0.0
          %291 = vst [vmem:[#allocation2 + $0x208] sm:$0xff] 0.0
          %292 = vst [vmem:[#allocation2 + $0x210] sm:$0xff] 0.0
          %293 = vst [vmem:[#allocation2 + $0x218] sm:$0xff] 0.0
          %294 = vst [vmem:[#allocation2 + $0x220] sm:$0xff] 0.0
          %295 = vst [vmem:[#allocation2 + $0x228] sm:$0xff] 0.0
          %296 = vst [vmem:[#allocation2 + $0x230] sm:$0xff] 0.0
          %297 = vst [vmem:[#allocation2 + $0x238] sm:$0xff] 0.0
          %298 = vst [vmem:[#allocation2 + $0x240] sm:$0xff] 0.0
          %299 = vst [vmem:[#allocation2 + $0x248] sm:$0xff] 0.0
          %300 = vst [vmem:[#allocation2 + $0x250] sm:$0xff] 0.0
          %301 = vst [vmem:[#allocation2 + $0x258] sm:$0xff] 0.0
          %302 = vst [vmem:[#allocation2 + $0x260] sm:$0xff] 0.0
          %303 = vst [vmem:[#allocation2 + $0x268] sm:$0xff] 0.0
          %304 = vst [vmem:[#allocation2 + $0x270] sm:$0xff] 0.0
          %305 = vst [vmem:[#allocation2 + $0x278] sm:$0xff] 0.0
          %306 = vst [vmem:[#allocation2 + $0x280] sm:$0xff] 0.0
          %307 = vst [vmem:[#allocation2 + $0x288] sm:$0xff] 0.0
          %308 = vst [vmem:[#allocation2 + $0x290] sm:$0xff] 0.0
          %309 = vst [vmem:[#allocation2 + $0x298] sm:$0xff] 0.0
          %310 = vst [vmem:[#allocation2 + $0x2a0] sm:$0xff] 0.0
          %311 = vst [vmem:[#allocation2 + $0x2a8] sm:$0xff] 0.0
          %312 = vst [vmem:[#allocation2 + $0x2b0] sm:$0xff] 0.0
          %313 = vst [vmem:[#allocation2 + $0x2b8] sm:$0xff] 0.0
          %314 = vst [vmem:[#allocation2 + $0x2c0] sm:$0xff] 0.0
          %315 = vst [vmem:[#allocation2 + $0x2c8] sm:$0xff] 0.0
          %316 = vst [vmem:[#allocation2 + $0x2d0] sm:$0xff] 0.0
          %317 = vst [vmem:[#allocation2 + $0x2d8] sm:$0xff] 0.0
          %318 = vst [vmem:[#allocation2 + $0x2e0] sm:$0xff] 0.0
          %319 = vst [vmem:[#allocation2 + $0x2e8] sm:$0xff] 0.0
          %320 = vst [vmem:[#allocation2 + $0x2f0] sm:$0xff] 0.0
          %321 = vst [vmem:[#allocation2 + $0x2f8] sm:$0xff] 0.0
          %322 = vst [vmem:[#allocation2 + $0x300] sm:$0xff] 0.0
          %323 = vst [vmem:[#allocation2 + $0x308] sm:$0xff] 0.0
          %324 = vst [vmem:[#allocation2 + $0x310] sm:$0xff] 0.0
          %325 = vst [vmem:[#allocation2 + $0x318] sm:$0xff] 0.0
          %326 = vst [vmem:[#allocation2 + $0x320] sm:$0xff] 0.0
          %327 = vst [vmem:[#allocation2 + $0x328] sm:$0xff] 0.0
          %328 = vst [vmem:[#allocation2 + $0x330] sm:$0xff] 0.0
          %329 = vst [vmem:[#allocation2 + $0x338] sm:$0xff] 0.0
          %330 = vst [vmem:[#allocation2 + $0x340] sm:$0xff] 0.0
          %331 = vst [vmem:[#allocation2 + $0x348] sm:$0xff] 0.0
          %332 = vst [vmem:[#allocation2 + $0x350] sm:$0xff] 0.0
          %333 = vst [vmem:[#allocation2 + $0x358] sm:$0xff] 0.0
          %334 = vst [vmem:[#allocation2 + $0x360] sm:$0xff] 0.0
          %335 = vst [vmem:[#allocation2 + $0x368] sm:$0xff] 0.0
          %336 = vst [vmem:[#allocation2 + $0x370] sm:$0xff] 0.0
          %337 = vst [vmem:[#allocation2 + $0x378] sm:$0xff] 0.0
          %338 = vst [vmem:[#allocation2 + $0x380] sm:$0xff] 0.0
          %339 = vst [vmem:[#allocation2 + $0x388] sm:$0xff] 0.0
          %340 = vst [vmem:[#allocation2 + $0x390] sm:$0xff] 0.0
          %341 = vst [vmem:[#allocation2 + $0x398] sm:$0xff] 0.0
          %342 = vst [vmem:[#allocation2 + $0x3a0] sm:$0xff] 0.0
          %343 = vst [vmem:[#allocation2 + $0x3a8] sm:$0xff] 0.0
          %344 = vst [vmem:[#allocation2 + $0x3b0] sm:$0xff] 0.0
          %345 = vst [vmem:[#allocation2 + $0x3b8] sm:$0xff] 0.0
          %346 = vst [vmem:[#allocation2 + $0x3c0] sm:$0xff] 0.0
          %347 = vst [vmem:[#allocation2 + $0x3c8] sm:$0xff] 0.0
          %348 = vst [vmem:[#allocation2 + $0x3d0] sm:$0xff] 0.0
          %349 = vst [vmem:[#allocation2 + $0x3d8] sm:$0xff] 0.0
          %350 = vst [vmem:[#allocation2 + $0x3e0] sm:$0xff] 0.0
          %351 = vst [vmem:[#allocation2 + $0x3e8] sm:$0xff] 0.0
          %352 = vst [vmem:[#allocation2 + $0x3f0] sm:$0xff] 0.0
          %353 = vst [vmem:[#allocation2 + $0x3f8] sm:$0xff] 0.0
          %354 = vst [vmem:[#allocation2 + $0x400] sm:$0xff] 0.0
          %355 = vst [vmem:[#allocation2 + $0x408] sm:$0xff] 0.0
          %356 = vst [vmem:[#allocation2 + $0x410] sm:$0xff] 0.0
          %357 = vst [vmem:[#allocation2 + $0x418] sm:$0xff] 0.0
          %358 = vst [vmem:[#allocation2 + $0x420] sm:$0xff] 0.0
          %359 = vst [vmem:[#allocation2 + $0x428] sm:$0xff] 0.0
          %360 = vst [vmem:[#allocation2 + $0x430] sm:$0xff] 0.0
          %361 = vst [vmem:[#allocation2 + $0x438] sm:$0xff] 0.0
          %362 = vst [vmem:[#allocation2 + $0x440] sm:$0xff] 0.0
          %363 = vst [vmem:[#allocation2 + $0x448] sm:$0xff] 0.0
          %364 = vst [vmem:[#allocation2 + $0x450] sm:$0xff] 0.0
          %365 = vst [vmem:[#allocation2 + $0x458] sm:$0xff] 0.0
          %366 = vst [vmem:[#allocation2 + $0x460] sm:$0xff] 0.0
          %367 = vst [vmem:[#allocation2 + $0x468] sm:$0xff] 0.0
          %368 = vst [vmem:[#allocation2 + $0x470] sm:$0xff] 0.0
          %369 = vst [vmem:[#allocation2 + $0x478] sm:$0xff] 0.0
          %370 = vst [vmem:[#allocation2 + $0x480] sm:$0xff] 0.0
          %371 = vst [vmem:[#allocation2 + $0x488] sm:$0xff] 0.0
          %372 = vst [vmem:[#allocation2 + $0x490] sm:$0xff] 0.0
          %373 = vst [vmem:[#allocation2 + $0x498] sm:$0xff] 0.0
          %374 = vst [vmem:[#allocation2 + $0x4a0] sm:$0xff] 0.0
          %375 = vst [vmem:[#allocation2 + $0x4a8] sm:$0xff] 0.0
          %376 = vst [vmem:[#allocation2 + $0x4b0] sm:$0xff] 0.0
          %377 = vst [vmem:[#allocation2 + $0x4b8] sm:$0xff] 0.0
          %378 = vst [vmem:[#allocation2 + $0x4c0] sm:$0xff] 0.0
          %379 = vst [vmem:[#allocation2 + $0x4c8] sm:$0xff] 0.0
          %380 = vst [vmem:[#allocation2 + $0x4d0] sm:$0xff] 0.0
          %381 = vst [vmem:[#allocation2 + $0x4d8] sm:$0xff] 0.0
          %382 = vst [vmem:[#allocation2 + $0x4e0] sm:$0xff] 0.0
          %383 = vst [vmem:[#allocation2 + $0x4e8] sm:$0xff] 0.0
          %384 = vst [vmem:[#allocation2 + $0x4f0] sm:$0xff] 0.0
          %385 = vst [vmem:[#allocation2 + $0x4f8] sm:$0xff] 0.0
          %386 = vst [vmem:[#allocation2 + $0x500] sm:$0xff] 0.0
          %387 = vst [vmem:[#allocation2 + $0x508] sm:$0xff] 0.0
          %388 = vst [vmem:[#allocation2 + $0x510] sm:$0xff] 0.0
          %389 = vst [vmem:[#allocation2 + $0x518] sm:$0xff] 0.0
          %390 = vst [vmem:[#allocation2 + $0x520] sm:$0xff] 0.0
          %391 = vst [vmem:[#allocation2 + $0x528] sm:$0xff] 0.0
          %392 = vst [vmem:[#allocation2 + $0x530] sm:$0xff] 0.0
          %393 = vst [vmem:[#allocation2 + $0x538] sm:$0xff] 0.0
          %394 = vst [vmem:[#allocation2 + $0x540] sm:$0xff] 0.0
          %395 = vst [vmem:[#allocation2 + $0x548] sm:$0xff] 0.0
          %396 = vst [vmem:[#allocation2 + $0x550] sm:$0xff] 0.0
          %397 = vst [vmem:[#allocation2 + $0x558] sm:$0xff] 0.0
          %398 = vst [vmem:[#allocation2 + $0x560] sm:$0xff] 0.0
          %399 = vst [vmem:[#allocation2 + $0x568] sm:$0xff] 0.0
          %400 = vst [vmem:[#allocation2 + $0x570] sm:$0xff] 0.0
          %401 = vst [vmem:[#allocation2 + $0x578] sm:$0xff] 0.0
          %402 = vst [vmem:[#allocation2 + $0x580] sm:$0xff] 0.0
          %403 = vst [vmem:[#allocation2 + $0x588] sm:$0xff] 0.0
          %404 = vst [vmem:[#allocation2 + $0x590] sm:$0xff] 0.0
          %405 = vst [vmem:[#allocation2 + $0x598] sm:$0xff] 0.0
          %406 = vst [vmem:[#allocation2 + $0x5a0] sm:$0xff] 0.0
          %407 = vst [vmem:[#allocation2 + $0x5a8] sm:$0xff] 0.0
          %408 = vst [vmem:[#allocation2 + $0x5b0] sm:$0xff] 0.0
          %409 = vst [vmem:[#allocation2 + $0x5b8] sm:$0xff] 0.0
          %410 = vst [vmem:[#allocation2 + $0x5c0] sm:$0xff] 0.0
          %411 = vst [vmem:[#allocation2 + $0x5c8] sm:$0xff] 0.0
          %412 = vst [vmem:[#allocation2 + $0x5d0] sm:$0xff] 0.0
          %413 = vst [vmem:[#allocation2 + $0x5d8] sm:$0xff] 0.0
          %414 = vst [vmem:[#allocation2 + $0x5e0] sm:$0xff] 0.0
          %415 = vst [vmem:[#allocation2 + $0x5e8] sm:$0xff] 0.0
          %416 = vst [vmem:[#allocation2 + $0x5f0] sm:$0xff] 0.0
          %417 = vst [vmem:[#allocation2 + $0x5f8] sm:$0xff] 0.0
          %418 = vst [vmem:[#allocation2 + $0x600] sm:$0xff] 0.0
          %419 = vst [vmem:[#allocation2 + $0x608] sm:$0xff] 0.0
          %420 = vst [vmem:[#allocation2 + $0x610] sm:$0xff] 0.0
          %421 = vst [vmem:[#allocation2 + $0x618] sm:$0xff] 0.0
          %422 = vst [vmem:[#allocation2 + $0x620] sm:$0xff] 0.0
          %423 = vst [vmem:[#allocation2 + $0x628] sm:$0xff] 0.0
          %424 = vst [vmem:[#allocation2 + $0x630] sm:$0xff] 0.0
          %425 = vst [vmem:[#allocation2 + $0x638] sm:$0xff] 0.0
          %426 = vst [vmem:[#allocation2 + $0x640] sm:$0xff] 0.0
          %427 = vst [vmem:[#allocation2 + $0x648] sm:$0xff] 0.0
          %428 = vst [vmem:[#allocation2 + $0x650] sm:$0xff] 0.0
          %429 = vst [vmem:[#allocation2 + $0x658] sm:$0xff] 0.0
          %430 = vst [vmem:[#allocation2 + $0x660] sm:$0xff] 0.0
          %431 = vst [vmem:[#allocation2 + $0x668] sm:$0xff] 0.0
          %432 = vst [vmem:[#allocation2 + $0x670] sm:$0xff] 0.0
          %433 = vst [vmem:[#allocation2 + $0x678] sm:$0xff] 0.0
          %434 = vst [vmem:[#allocation2 + $0x680] sm:$0xff] 0.0
          %435 = vst [vmem:[#allocation2 + $0x688] sm:$0xff] 0.0
          %436 = vst [vmem:[#allocation2 + $0x690] sm:$0xff] 0.0
          %437 = vst [vmem:[#allocation2 + $0x698] sm:$0xff] 0.0
          %438 = vst [vmem:[#allocation2 + $0x6a0] sm:$0xff] 0.0
          %439 = vst [vmem:[#allocation2 + $0x6a8] sm:$0xff] 0.0
          %440 = vst [vmem:[#allocation2 + $0x6b0] sm:$0xff] 0.0
          %441 = vst [vmem:[#allocation2 + $0x6b8] sm:$0xff] 0.0
          %442 = vst [vmem:[#allocation2 + $0x6c0] sm:$0xff] 0.0
          %443 = vst [vmem:[#allocation2 + $0x6c8] sm:$0xff] 0.0
          %444 = vst [vmem:[#allocation2 + $0x6d0] sm:$0xff] 0.0
          %445 = vst [vmem:[#allocation2 + $0x6d8] sm:$0xff] 0.0
          %446 = vst [vmem:[#allocation2 + $0x6e0] sm:$0xff] 0.0
          %447 = vst [vmem:[#allocation2 + $0x6e8] sm:$0xff] 0.0
          %448 = vst [vmem:[#allocation2 + $0x6f0] sm:$0xff] 0.0
          %449 = vst [vmem:[#allocation2 + $0x6f8] sm:$0xff] 0.0
          %450 = vst [vmem:[#allocation2 + $0x700] sm:$0xff] 0.0
          %451 = vst [vmem:[#allocation2 + $0x708] sm:$0xff] 0.0
          %452 = vst [vmem:[#allocation2 + $0x710] sm:$0xff] 0.0
          %453 = vst [vmem:[#allocation2 + $0x718] sm:$0xff] 0.0
          %454 = vst [vmem:[#allocation2 + $0x720] sm:$0xff] 0.0
          %455 = vst [vmem:[#allocation2 + $0x728] sm:$0xff] 0.0
          %456 = vst [vmem:[#allocation2 + $0x730] sm:$0xff] 0.0
          %457 = vst [vmem:[#allocation2 + $0x738] sm:$0xff] 0.0
          %458 = vst [vmem:[#allocation2 + $0x740] sm:$0xff] 0.0
          %459 = vst [vmem:[#allocation2 + $0x748] sm:$0xff] 0.0
          %460 = vst [vmem:[#allocation2 + $0x750] sm:$0xff] 0.0
          %461 = vst [vmem:[#allocation2 + $0x758] sm:$0xff] 0.0
          %462 = vst [vmem:[#allocation2 + $0x760] sm:$0xff] 0.0
          %463 = vst [vmem:[#allocation2 + $0x768] sm:$0xff] 0.0
          %464 = vst [vmem:[#allocation2 + $0x770] sm:$0xff] 0.0
          %465 = vst [vmem:[#allocation2 + $0x778] sm:$0xff] 0.0
          %466 = vst [vmem:[#allocation2 + $0x780] sm:$0xff] 0.0
          %467 = vst [vmem:[#allocation2 + $0x788] sm:$0xff] 0.0
          %468 = vst [vmem:[#allocation2 + $0x790] sm:$0xff] 0.0
          %469 = vst [vmem:[#allocation2 + $0x798] sm:$0xff] 0.0
          %470 = vst [vmem:[#allocation2 + $0x7a0] sm:$0xff] 0.0
          %471 = vst [vmem:[#allocation2 + $0x7a8] sm:$0xff] 0.0
          %472 = vst [vmem:[#allocation2 + $0x7b0] sm:$0xff] 0.0
          %473 = vst [vmem:[#allocation2 + $0x7b8] sm:$0xff] 0.0
          %474 = vst [vmem:[#allocation2 + $0x7c0] sm:$0xff] 0.0
          %475 = vst [vmem:[#allocation2 + $0x7c8] sm:$0xff] 0.0
          %476 = vst [vmem:[#allocation2 + $0x7d0] sm:$0xff] 0.0
          %477 = vst [vmem:[#allocation2 + $0x7d8] sm:$0xff] 0.0
          %478 = vst [vmem:[#allocation2 + $0x7e0] sm:$0xff] 0.0
          %479 = vst [vmem:[#allocation2 + $0x7e8] sm:$0xff] 0.0
          %480 = vst [vmem:[#allocation2 + $0x7f0] sm:$0xff] 0.0
          %481 = vst [vmem:[#allocation2 + $0x7f8] sm:$0xff] 0.0
        $region40: #{tpu_custom_call.1} parent=27 // pred_fallthru
          _
        %v482 = vld [vmem:[%s195] sm:$0xff]
        %v483 = vld [vmem:[%s195 + $0x8] sm:$0xff]
        %v484 = vld [vmem:[%s195 + $0x10] sm:$0xff]
        %v485 = vld [vmem:[%s195 + $0x18] sm:$0xff]
        %v486 = vld [vmem:[%s195 + $0x20] sm:$0xff]
        %v487 = vld [vmem:[%s195 + $0x28] sm:$0xff]
        %v488 = vld [vmem:[%s195 + $0x30] sm:$0xff]
        %v489 = vld [vmem:[%s195 + $0x38] sm:$0xff]
        %v490 = vld [vmem:[%s195 + $0x40] sm:$0xff]
        %v491 = vld [vmem:[%s195 + $0x48] sm:$0xff]
        %v492 = vld [vmem:[%s195 + $0x50] sm:$0xff]
        %v493 = vld [vmem:[%s195 + $0x58] sm:$0xff]
        %v494 = vld [vmem:[%s195 + $0x60] sm:$0xff]
        %v495 = vld [vmem:[%s195 + $0x68] sm:$0xff]
        %v496 = vld [vmem:[%s195 + $0x70] sm:$0xff]
        %v497 = vld [vmem:[%s195 + $0x78] sm:$0xff]
        %v498 = vld [vmem:[%s195 + $0x80] sm:$0xff]
        %v499 = vld [vmem:[%s195 + $0x88] sm:$0xff]
        %v500 = vld [vmem:[%s195 + $0x90] sm:$0xff]
        %v501 = vld [vmem:[%s195 + $0x98] sm:$0xff]
        %v502 = vld [vmem:[%s195 + $0xa0] sm:$0xff]
        %v503 = vld [vmem:[%s195 + $0xa8] sm:$0xff]
        %v504 = vld [vmem:[%s195 + $0xb0] sm:$0xff]
        %v505 = vld [vmem:[%s195 + $0xb8] sm:$0xff]
        %v506 = vld [vmem:[%s195 + $0xc0] sm:$0xff]
        %v507 = vld [vmem:[%s195 + $0xc8] sm:$0xff]
        %v508 = vld [vmem:[%s195 + $0xd0] sm:$0xff]
        %v509 = vld [vmem:[%s195 + $0xd8] sm:$0xff]
        %v510 = vld [vmem:[%s195 + $0xe0] sm:$0xff]
        %v511 = vld [vmem:[%s195 + $0xe8] sm:$0xff]
        %v512 = vld [vmem:[%s195 + $0xf0] sm:$0xff]
        %v513 = vld [vmem:[%s195 + $0xf8] sm:$0xff]
        %v514 = vld [vmem:[%s195 + $0x100] sm:$0xff]
        %v515 = vld [vmem:[%s195 + $0x108] sm:$0xff]
        %v516 = vld [vmem:[%s195 + $0x110] sm:$0xff]
        %v517 = vld [vmem:[%s195 + $0x118] sm:$0xff]
        %v518 = vld [vmem:[%s195 + $0x120] sm:$0xff]
        %v519 = vld [vmem:[%s195 + $0x128] sm:$0xff]
        %v520 = vld [vmem:[%s195 + $0x130] sm:$0xff]
        %v521 = vld [vmem:[%s195 + $0x138] sm:$0xff]
        %v522 = vld [vmem:[%s195 + $0x140] sm:$0xff]
        %v523 = vld [vmem:[%s195 + $0x148] sm:$0xff]
        %v524 = vld [vmem:[%s195 + $0x150] sm:$0xff]
        %v525 = vld [vmem:[%s195 + $0x158] sm:$0xff]
        %v526 = vld [vmem:[%s195 + $0x160] sm:$0xff]
        %v527 = vld [vmem:[%s195 + $0x168] sm:$0xff]
        %v528 = vld [vmem:[%s195 + $0x170] sm:$0xff]
        %v529 = vld [vmem:[%s195 + $0x178] sm:$0xff]
        %v530 = vld [vmem:[%s195 + $0x180] sm:$0xff]
        %v531 = vld [vmem:[%s195 + $0x188] sm:$0xff]
        %v532 = vld [vmem:[%s195 + $0x190] sm:$0xff]
        %v533 = vld [vmem:[%s195 + $0x198] sm:$0xff]
        %v534 = vld [vmem:[%s195 + $0x1a0] sm:$0xff]
        %v535 = vld [vmem:[%s195 + $0x1a8] sm:$0xff]
        %v536 = vld [vmem:[%s195 + $0x1b0] sm:$0xff]
        %v537 = vld [vmem:[%s195 + $0x1b8] sm:$0xff]
        %v538 = vld [vmem:[%s195 + $0x1c0] sm:$0xff]
        %v539 = vld [vmem:[%s195 + $0x1c8] sm:$0xff]
        %v540 = vld [vmem:[%s195 + $0x1d0] sm:$0xff]
        %v541 = vld [vmem:[%s195 + $0x1d8] sm:$0xff]
        %v542 = vld [vmem:[%s195 + $0x1e0] sm:$0xff]
        %v543 = vld [vmem:[%s195 + $0x1e8] sm:$0xff]
        %v544 = vld [vmem:[%s195 + $0x1f0] sm:$0xff]
        %v545 = vld [vmem:[%s195 + $0x1f8] sm:$0xff]
        %v546 = vld [vmem:[#allocation3] sm:$0xff]
        %v547 = vld [vmem:[#allocation3 + $0x8] sm:$0xff]
        %v548 = vld [vmem:[#allocation3 + $0x10] sm:$0xff]
        %v549 = vld [vmem:[#allocation3 + $0x18] sm:$0xff]
        %v550 = vld [vmem:[#allocation3 + $0x20] sm:$0xff]
        %v551 = vld [vmem:[#allocation3 + $0x28] sm:$0xff]
        %v552 = vld [vmem:[#allocation3 + $0x30] sm:$0xff]
        %v553 = vld [vmem:[#allocation3 + $0x38] sm:$0xff]
        %v554 = vld [vmem:[#allocation3 + $0x40] sm:$0xff]
        %v555 = vld [vmem:[#allocation3 + $0x48] sm:$0xff]
        %v556 = vld [vmem:[#allocation3 + $0x50] sm:$0xff]
        %v557 = vld [vmem:[#allocation3 + $0x58] sm:$0xff]
        %v558 = vld [vmem:[#allocation3 + $0x60] sm:$0xff]
        %v559 = vld [vmem:[#allocation3 + $0x68] sm:$0xff]
        %v560 = vld [vmem:[#allocation3 + $0x70] sm:$0xff]
        %v561 = vld [vmem:[#allocation3 + $0x78] sm:$0xff]
        %v562 = vld [vmem:[#allocation3 + $0x80] sm:$0xff]
        %v563 = vld [vmem:[#allocation3 + $0x88] sm:$0xff]
        %v564 = vld [vmem:[#allocation3 + $0x90] sm:$0xff]
        %v565 = vld [vmem:[#allocation3 + $0x98] sm:$0xff]
        %v566 = vld [vmem:[#allocation3 + $0xa0] sm:$0xff]
        %v567 = vld [vmem:[#allocation3 + $0xa8] sm:$0xff]
        %v568 = vld [vmem:[#allocation3 + $0xb0] sm:$0xff]
        %v569 = vld [vmem:[#allocation3 + $0xb8] sm:$0xff]
        %v570 = vld [vmem:[#allocation3 + $0xc0] sm:$0xff]
        %v571 = vld [vmem:[#allocation3 + $0xc8] sm:$0xff]
        %v572 = vld [vmem:[#allocation3 + $0xd0] sm:$0xff]
        %v573 = vld [vmem:[#allocation3 + $0xd8] sm:$0xff]
        %v574 = vld [vmem:[#allocation3 + $0xe0] sm:$0xff]
        %v575 = vld [vmem:[#allocation3 + $0xe8] sm:$0xff]
        %v576 = vld [vmem:[#allocation3 + $0xf0] sm:$0xff]
        %v577 = vld [vmem:[#allocation3 + $0xf8] sm:$0xff]
        %v578 = vld [vmem:[#allocation3 + $0x100] sm:$0xff]
        %v579 = vld [vmem:[#allocation3 + $0x108] sm:$0xff]
        %v580 = vld [vmem:[#allocation3 + $0x110] sm:$0xff]
        %v581 = vld [vmem:[#allocation3 + $0x118] sm:$0xff]
        %v582 = vld [vmem:[#allocation3 + $0x120] sm:$0xff]
        %v583 = vld [vmem:[#allocation3 + $0x128] sm:$0xff]
        %v584 = vld [vmem:[#allocation3 + $0x130] sm:$0xff]
        %v585 = vld [vmem:[#allocation3 + $0x138] sm:$0xff]
        %v586 = vld [vmem:[#allocation3 + $0x140] sm:$0xff]
        %v587 = vld [vmem:[#allocation3 + $0x148] sm:$0xff]
        %v588 = vld [vmem:[#allocation3 + $0x150] sm:$0xff]
        %v589 = vld [vmem:[#allocation3 + $0x158] sm:$0xff]
        %v590 = vld [vmem:[#allocation3 + $0x160] sm:$0xff]
        %v591 = vld [vmem:[#allocation3 + $0x168] sm:$0xff]
        %v592 = vld [vmem:[#allocation3 + $0x170] sm:$0xff]
        %v593 = vld [vmem:[#allocation3 + $0x178] sm:$0xff]
        %v594 = vld [vmem:[#allocation3 + $0x180] sm:$0xff]
        %v595 = vld [vmem:[#allocation3 + $0x188] sm:$0xff]
        %v596 = vld [vmem:[#allocation3 + $0x190] sm:$0xff]
        %v597 = vld [vmem:[#allocation3 + $0x198] sm:$0xff]
        %v598 = vld [vmem:[#allocation3 + $0x1a0] sm:$0xff]
        %v599 = vld [vmem:[#allocation3 + $0x1a8] sm:$0xff]
        %v600 = vld [vmem:[#allocation3 + $0x1b0] sm:$0xff]
        %v601 = vld [vmem:[#allocation3 + $0x1b8] sm:$0xff]
        %v602 = vld [vmem:[#allocation3 + $0x1c0] sm:$0xff]
        %v603 = vld [vmem:[#allocation3 + $0x1c8] sm:$0xff]
        %v604 = vld [vmem:[#allocation3 + $0x1d0] sm:$0xff]
        %v605 = vld [vmem:[#allocation3 + $0x1d8] sm:$0xff]
        %v606 = vld [vmem:[#allocation3 + $0x1e0] sm:$0xff]
        %v607 = vld [vmem:[#allocation3 + $0x1e8] sm:$0xff]
        %v608 = vld [vmem:[#allocation3 + $0x1f0] sm:$0xff]
        %v609 = vld [vmem:[#allocation3 + $0x1f8] sm:$0xff]
        %s610 = scalar_lea.vmem [#allocation3], 512
        %v611 = vld [vmem:[%s610] sm:$0xff]
        %v612 = vld [vmem:[%s610 + $0x8] sm:$0xff]
        %v613 = vld [vmem:[%s610 + $0x10] sm:$0xff]
        %v614 = vld [vmem:[%s610 + $0x18] sm:$0xff]
        %v615 = vld [vmem:[%s610 + $0x20] sm:$0xff]
        %v616 = vld [vmem:[%s610 + $0x28] sm:$0xff]
        %v617 = vld [vmem:[%s610 + $0x30] sm:$0xff]
        %v618 = vld [vmem:[%s610 + $0x38] sm:$0xff]
        %v619 = vld [vmem:[%s610 + $0x40] sm:$0xff]
        %v620 = vld [vmem:[%s610 + $0x48] sm:$0xff]
        %v621 = vld [vmem:[%s610 + $0x50] sm:$0xff]
        %v622 = vld [vmem:[%s610 + $0x58] sm:$0xff]
        %v623 = vld [vmem:[%s610 + $0x60] sm:$0xff]
        %v624 = vld [vmem:[%s610 + $0x68] sm:$0xff]
        %v625 = vld [vmem:[%s610 + $0x70] sm:$0xff]
        %v626 = vld [vmem:[%s610 + $0x78] sm:$0xff]
        %v627 = vld [vmem:[%s610 + $0x80] sm:$0xff]
        %v628 = vld [vmem:[%s610 + $0x88] sm:$0xff]
        %v629 = vld [vmem:[%s610 + $0x90] sm:$0xff]
        %v630 = vld [vmem:[%s610 + $0x98] sm:$0xff]
        %v631 = vld [vmem:[%s610 + $0xa0] sm:$0xff]
        %v632 = vld [vmem:[%s610 + $0xa8] sm:$0xff]
        %v633 = vld [vmem:[%s610 + $0xb0] sm:$0xff]
        %v634 = vld [vmem:[%s610 + $0xb8] sm:$0xff]
        %v635 = vld [vmem:[%s610 + $0xc0] sm:$0xff]
        %v636 = vld [vmem:[%s610 + $0xc8] sm:$0xff]
        %v637 = vld [vmem:[%s610 + $0xd0] sm:$0xff]
        %v638 = vld [vmem:[%s610 + $0xd8] sm:$0xff]
        %v639 = vld [vmem:[%s610 + $0xe0] sm:$0xff]
        %v640 = vld [vmem:[%s610 + $0xe8] sm:$0xff]
        %v641 = vld [vmem:[%s610 + $0xf0] sm:$0xff]
        %v642 = vld [vmem:[%s610 + $0xf8] sm:$0xff]
        %v643 = vld [vmem:[%s610 + $0x100] sm:$0xff]
        %v644 = vld [vmem:[%s610 + $0x108] sm:$0xff]
        %v645 = vld [vmem:[%s610 + $0x110] sm:$0xff]
        %v646 = vld [vmem:[%s610 + $0x118] sm:$0xff]
        %v647 = vld [vmem:[%s610 + $0x120] sm:$0xff]
        %v648 = vld [vmem:[%s610 + $0x128] sm:$0xff]
        %v649 = vld [vmem:[%s610 + $0x130] sm:$0xff]
        %v650 = vld [vmem:[%s610 + $0x138] sm:$0xff]
        %v651 = vld [vmem:[%s610 + $0x140] sm:$0xff]
        %v652 = vld [vmem:[%s610 + $0x148] sm:$0xff]
        %v653 = vld [vmem:[%s610 + $0x150] sm:$0xff]
        %v654 = vld [vmem:[%s610 + $0x158] sm:$0xff]
        %v655 = vld [vmem:[%s610 + $0x160] sm:$0xff]
        %v656 = vld [vmem:[%s610 + $0x168] sm:$0xff]
        %v657 = vld [vmem:[%s610 + $0x170] sm:$0xff]
        %v658 = vld [vmem:[%s610 + $0x178] sm:$0xff]
        %v659 = vld [vmem:[%s610 + $0x180] sm:$0xff]
        %v660 = vld [vmem:[%s610 + $0x188] sm:$0xff]
        %v661 = vld [vmem:[%s610 + $0x190] sm:$0xff]
        %v662 = vld [vmem:[%s610 + $0x198] sm:$0xff]
        %v663 = vld [vmem:[%s610 + $0x1a0] sm:$0xff]
        %v664 = vld [vmem:[%s610 + $0x1a8] sm:$0xff]
        %v665 = vld [vmem:[%s610 + $0x1b0] sm:$0xff]
        %v666 = vld [vmem:[%s610 + $0x1b8] sm:$0xff]
        %v667 = vld [vmem:[%s610 + $0x1c0] sm:$0xff]
        %v668 = vld [vmem:[%s610 + $0x1c8] sm:$0xff]
        %v669 = vld [vmem:[%s610 + $0x1d0] sm:$0xff]
        %v670 = vld [vmem:[%s610 + $0x1d8] sm:$0xff]
        %v671 = vld [vmem:[%s610 + $0x1e0] sm:$0xff]
        %v672 = vld [vmem:[%s610 + $0x1e8] sm:$0xff]
        %v673 = vld [vmem:[%s610 + $0x1f0] sm:$0xff]
        %v674 = vld [vmem:[%s610 + $0x1f8] sm:$0xff]
        %v739 = vunpack.c.l.b16 %v611
        %v740 = vunpack.c.h.b16 %v611
        %v741 = vunpack.c.l.b16 %v612
        %v742 = vunpack.c.h.b16 %v612
        %v743 = vunpack.c.l.b16 %v613
        %v744 = vunpack.c.h.b16 %v613
        %v745 = vunpack.c.l.b16 %v614
        %v746 = vunpack.c.h.b16 %v614
        %v747 = vunpack.c.l.b16 %v615
        %v748 = vunpack.c.h.b16 %v615
        %v749 = vunpack.c.l.b16 %v616
        %v750 = vunpack.c.h.b16 %v616
        %v751 = vunpack.c.l.b16 %v617
        %v752 = vunpack.c.h.b16 %v617
        %v753 = vunpack.c.l.b16 %v618
        %v754 = vunpack.c.h.b16 %v618
        %v755 = vunpack.c.l.b16 %v619
        %v756 = vunpack.c.h.b16 %v619
        %v757 = vunpack.c.l.b16 %v620
        %v758 = vunpack.c.h.b16 %v620
        %v759 = vunpack.c.l.b16 %v621
        %v760 = vunpack.c.h.b16 %v621
        %v761 = vunpack.c.l.b16 %v622
        %v762 = vunpack.c.h.b16 %v622
        %v763 = vunpack.c.l.b16 %v623
        %v764 = vunpack.c.h.b16 %v623
        %v765 = vunpack.c.l.b16 %v624
        %v766 = vunpack.c.h.b16 %v624
        %v767 = vunpack.c.l.b16 %v625
        %v768 = vunpack.c.h.b16 %v625
        %v769 = vunpack.c.l.b16 %v626
        %v770 = vunpack.c.h.b16 %v626
        %v771 = vunpack.c.l.b16 %v627
        %v772 = vunpack.c.h.b16 %v627
        %v773 = vunpack.c.l.b16 %v628
        %v774 = vunpack.c.h.b16 %v628
        %v775 = vunpack.c.l.b16 %v629
        %v776 = vunpack.c.h.b16 %v629
        %v777 = vunpack.c.l.b16 %v630
        %v778 = vunpack.c.h.b16 %v630
        %v779 = vunpack.c.l.b16 %v631
        %v780 = vunpack.c.h.b16 %v631
        %v781 = vunpack.c.l.b16 %v632
        %v782 = vunpack.c.h.b16 %v632
        %v783 = vunpack.c.l.b16 %v633
        %v784 = vunpack.c.h.b16 %v633
        %v785 = vunpack.c.l.b16 %v634
        %v786 = vunpack.c.h.b16 %v634
        %v787 = vunpack.c.l.b16 %v635
        %v788 = vunpack.c.h.b16 %v635
        %v789 = vunpack.c.l.b16 %v636
        %v790 = vunpack.c.h.b16 %v636
        %v791 = vunpack.c.l.b16 %v637
        %v792 = vunpack.c.h.b16 %v637
        %v793 = vunpack.c.l.b16 %v638
        %v794 = vunpack.c.h.b16 %v638
        %v795 = vunpack.c.l.b16 %v639
        %v796 = vunpack.c.h.b16 %v639
        %v797 = vunpack.c.l.b16 %v640
        %v798 = vunpack.c.h.b16 %v640
        %v799 = vunpack.c.l.b16 %v641
        %v800 = vunpack.c.h.b16 %v641
        %v801 = vunpack.c.l.b16 %v642
        %v802 = vunpack.c.h.b16 %v642
        %v803 = vunpack.c.l.b16 %v643
        %v804 = vunpack.c.h.b16 %v643
        %v805 = vunpack.c.l.b16 %v644
        %v806 = vunpack.c.h.b16 %v644
        %v807 = vunpack.c.l.b16 %v645
        %v808 = vunpack.c.h.b16 %v645
        %v809 = vunpack.c.l.b16 %v646
        %v810 = vunpack.c.h.b16 %v646
        %v811 = vunpack.c.l.b16 %v647
        %v812 = vunpack.c.h.b16 %v647
        %v813 = vunpack.c.l.b16 %v648
        %v814 = vunpack.c.h.b16 %v648
        %v815 = vunpack.c.l.b16 %v649
        %v816 = vunpack.c.h.b16 %v649
        %v817 = vunpack.c.l.b16 %v650
        %v818 = vunpack.c.h.b16 %v650
        %v819 = vunpack.c.l.b16 %v651
        %v820 = vunpack.c.h.b16 %v651
        %v821 = vunpack.c.l.b16 %v652
        %v822 = vunpack.c.h.b16 %v652
        %v823 = vunpack.c.l.b16 %v653
        %v824 = vunpack.c.h.b16 %v653
        %v825 = vunpack.c.l.b16 %v654
        %v826 = vunpack.c.h.b16 %v654
        %v827 = vunpack.c.l.b16 %v655
        %v828 = vunpack.c.h.b16 %v655
        %v829 = vunpack.c.l.b16 %v656
        %v830 = vunpack.c.h.b16 %v656
        %v831 = vunpack.c.l.b16 %v657
        %v832 = vunpack.c.h.b16 %v657
        %v833 = vunpack.c.l.b16 %v658
        %v834 = vunpack.c.h.b16 %v658
        %v835 = vunpack.c.l.b16 %v659
        %v836 = vunpack.c.h.b16 %v659
        %v837 = vunpack.c.l.b16 %v660
        %v838 = vunpack.c.h.b16 %v660
        %v839 = vunpack.c.l.b16 %v661
        %v840 = vunpack.c.h.b16 %v661
        %v841 = vunpack.c.l.b16 %v662
        %v842 = vunpack.c.h.b16 %v662
        %v843 = vunpack.c.l.b16 %v663
        %v844 = vunpack.c.h.b16 %v663
        %v845 = vunpack.c.l.b16 %v664
        %v846 = vunpack.c.h.b16 %v664
        %v847 = vunpack.c.l.b16 %v665
        %v848 = vunpack.c.h.b16 %v665
        %v849 = vunpack.c.l.b16 %v666
        %v850 = vunpack.c.h.b16 %v666
        %v851 = vunpack.c.l.b16 %v667
        %v852 = vunpack.c.h.b16 %v667
        %v853 = vunpack.c.l.b16 %v668
        %v854 = vunpack.c.h.b16 %v668
        %v855 = vunpack.c.l.b16 %v669
        %v856 = vunpack.c.h.b16 %v669
        %v857 = vunpack.c.l.b16 %v670
        %v858 = vunpack.c.h.b16 %v670
        %v859 = vunpack.c.l.b16 %v671
        %v860 = vunpack.c.h.b16 %v671
        %v861 = vunpack.c.l.b16 %v672
        %v862 = vunpack.c.h.b16 %v672
        %v863 = vunpack.c.l.b16 %v673
        %v864 = vunpack.c.h.b16 %v673
        %v865 = vunpack.c.l.b16 %v674
        %v866 = vunpack.c.h.b16 %v674
        %v867 = vpack.c.b16 %v741, %v739
        %v868 = vpack.c.b16 %v742, %v740
        %v869 = vpack.c.b16 %v745, %v743
        %v870 = vpack.c.b16 %v746, %v744
        %v871 = vpack.c.b16 %v749, %v747
        %v872 = vpack.c.b16 %v750, %v748
        %v873 = vpack.c.b16 %v753, %v751
        %v874 = vpack.c.b16 %v754, %v752
        %v875 = vpack.c.b16 %v757, %v755
        %v876 = vpack.c.b16 %v758, %v756
        %v877 = vpack.c.b16 %v761, %v759
        %v878 = vpack.c.b16 %v762, %v760
        %v879 = vpack.c.b16 %v765, %v763
        %v880 = vpack.c.b16 %v766, %v764
        %v881 = vpack.c.b16 %v769, %v767
        %v882 = vpack.c.b16 %v770, %v768
        %v883 = vpack.c.b16 %v773, %v771
        %v884 = vpack.c.b16 %v774, %v772
        %v885 = vpack.c.b16 %v777, %v775
        %v886 = vpack.c.b16 %v778, %v776
        %v887 = vpack.c.b16 %v781, %v779
        %v888 = vpack.c.b16 %v782, %v780
        %v889 = vpack.c.b16 %v785, %v783
        %v890 = vpack.c.b16 %v786, %v784
        %v891 = vpack.c.b16 %v789, %v787
        %v892 = vpack.c.b16 %v790, %v788
        %v893 = vpack.c.b16 %v793, %v791
        %v894 = vpack.c.b16 %v794, %v792
        %v895 = vpack.c.b16 %v797, %v795
        %v896 = vpack.c.b16 %v798, %v796
        %v897 = vpack.c.b16 %v801, %v799
        %v898 = vpack.c.b16 %v802, %v800
        %v899 = vpack.c.b16 %v805, %v803
        %v900 = vpack.c.b16 %v806, %v804
        %v901 = vpack.c.b16 %v809, %v807
        %v902 = vpack.c.b16 %v810, %v808
        %v903 = vpack.c.b16 %v813, %v811
        %v904 = vpack.c.b16 %v814, %v812
        %v905 = vpack.c.b16 %v817, %v815
        %v906 = vpack.c.b16 %v818, %v816
        %v907 = vpack.c.b16 %v821, %v819
        %v908 = vpack.c.b16 %v822, %v820
        %v909 = vpack.c.b16 %v825, %v823
        %v910 = vpack.c.b16 %v826, %v824
        %v911 = vpack.c.b16 %v829, %v827
        %v912 = vpack.c.b16 %v830, %v828
        %v913 = vpack.c.b16 %v833, %v831
        %v914 = vpack.c.b16 %v834, %v832
        %v915 = vpack.c.b16 %v837, %v835
        %v916 = vpack.c.b16 %v838, %v836
        %v917 = vpack.c.b16 %v841, %v839
        %v918 = vpack.c.b16 %v842, %v840
        %v919 = vpack.c.b16 %v845, %v843
        %v920 = vpack.c.b16 %v846, %v844
        %v921 = vpack.c.b16 %v849, %v847
        %v922 = vpack.c.b16 %v850, %v848
        %v923 = vpack.c.b16 %v853, %v851
        %v924 = vpack.c.b16 %v854, %v852
        %v925 = vpack.c.b16 %v857, %v855
        %v926 = vpack.c.b16 %v858, %v856
        %v927 = vpack.c.b16 %v861, %v859
        %v928 = vpack.c.b16 %v862, %v860
        %v929 = vpack.c.b16 %v865, %v863
        %v930 = vpack.c.b16 %v866, %v864
        %v1059 = vunpack.c.l.b16 %v482
        %v1060 = vunpack.c.h.b16 %v482
        %v1061 = vunpack.c.l.b16 %v483
        %v1062 = vunpack.c.h.b16 %v483
        %v1063 = vunpack.c.l.b16 %v484
        %v1064 = vunpack.c.h.b16 %v484
        %v1065 = vunpack.c.l.b16 %v485
        %v1066 = vunpack.c.h.b16 %v485
        %v1067 = vunpack.c.l.b16 %v486
        %v1068 = vunpack.c.h.b16 %v486
        %v1069 = vunpack.c.l.b16 %v487
        %v1070 = vunpack.c.h.b16 %v487
        %v1071 = vunpack.c.l.b16 %v488
        %v1072 = vunpack.c.h.b16 %v488
        %v1073 = vunpack.c.l.b16 %v489
        %v1074 = vunpack.c.h.b16 %v489
        %v1075 = vunpack.c.l.b16 %v490
        %v1076 = vunpack.c.h.b16 %v490
        %v1077 = vunpack.c.l.b16 %v491
        %v1078 = vunpack.c.h.b16 %v491
        %v1079 = vunpack.c.l.b16 %v492
        %v1080 = vunpack.c.h.b16 %v492
        %v1081 = vunpack.c.l.b16 %v493
        %v1082 = vunpack.c.h.b16 %v493
        %v1083 = vunpack.c.l.b16 %v494
        %v1084 = vunpack.c.h.b16 %v494
        %v1085 = vunpack.c.l.b16 %v495
        %v1086 = vunpack.c.h.b16 %v495
        %v1087 = vunpack.c.l.b16 %v496
        %v1088 = vunpack.c.h.b16 %v496
        %v1089 = vunpack.c.l.b16 %v497
        %v1090 = vunpack.c.h.b16 %v497
        %v1091 = vunpack.c.l.b16 %v498
        %v1092 = vunpack.c.h.b16 %v498
        %v1093 = vunpack.c.l.b16 %v499
        %v1094 = vunpack.c.h.b16 %v499
        %v1095 = vunpack.c.l.b16 %v500
        %v1096 = vunpack.c.h.b16 %v500
        %v1097 = vunpack.c.l.b16 %v501
        %v1098 = vunpack.c.h.b16 %v501
        %v1099 = vunpack.c.l.b16 %v502
        %v1100 = vunpack.c.h.b16 %v502
        %v1101 = vunpack.c.l.b16 %v503
        %v1102 = vunpack.c.h.b16 %v503
        %v1103 = vunpack.c.l.b16 %v504
        %v1104 = vunpack.c.h.b16 %v504
        %v1105 = vunpack.c.l.b16 %v505
        %v1106 = vunpack.c.h.b16 %v505
        %v1107 = vunpack.c.l.b16 %v506
        %v1108 = vunpack.c.h.b16 %v506
        %v1109 = vunpack.c.l.b16 %v507
        %v1110 = vunpack.c.h.b16 %v507
        %v1111 = vunpack.c.l.b16 %v508
        %v1112 = vunpack.c.h.b16 %v508
        %v1113 = vunpack.c.l.b16 %v509
        %v1114 = vunpack.c.h.b16 %v509
        %v1115 = vunpack.c.l.b16 %v510
        %v1116 = vunpack.c.h.b16 %v510
        %v1117 = vunpack.c.l.b16 %v511
        %v1118 = vunpack.c.h.b16 %v511
        %v1119 = vunpack.c.l.b16 %v512
        %v1120 = vunpack.c.h.b16 %v512
        %v1121 = vunpack.c.l.b16 %v513
        %v1122 = vunpack.c.h.b16 %v513
        %v1123 = vunpack.c.l.b16 %v514
        %v1124 = vunpack.c.h.b16 %v514
        %v1125 = vunpack.c.l.b16 %v515
        %v1126 = vunpack.c.h.b16 %v515
        %v1127 = vunpack.c.l.b16 %v516
        %v1128 = vunpack.c.h.b16 %v516
        %v1129 = vunpack.c.l.b16 %v517
        %v1130 = vunpack.c.h.b16 %v517
        %v1131 = vunpack.c.l.b16 %v518
        %v1132 = vunpack.c.h.b16 %v518
        %v1133 = vunpack.c.l.b16 %v519
        %v1134 = vunpack.c.h.b16 %v519
        %v1135 = vunpack.c.l.b16 %v520
        %v1136 = vunpack.c.h.b16 %v520
        %v1137 = vunpack.c.l.b16 %v521
        %v1138 = vunpack.c.h.b16 %v521
        %v1139 = vunpack.c.l.b16 %v522
        %v1140 = vunpack.c.h.b16 %v522
        %v1141 = vunpack.c.l.b16 %v523
        %v1142 = vunpack.c.h.b16 %v523
        %v1143 = vunpack.c.l.b16 %v524
        %v1144 = vunpack.c.h.b16 %v524
        %v1145 = vunpack.c.l.b16 %v525
        %v1146 = vunpack.c.h.b16 %v525
        %v1147 = vunpack.c.l.b16 %v526
        %v1148 = vunpack.c.h.b16 %v526
        %v1149 = vunpack.c.l.b16 %v527
        %v1150 = vunpack.c.h.b16 %v527
        %v1151 = vunpack.c.l.b16 %v528
        %v1152 = vunpack.c.h.b16 %v528
        %v1153 = vunpack.c.l.b16 %v529
        %v1154 = vunpack.c.h.b16 %v529
        %v1155 = vunpack.c.l.b16 %v530
        %v1156 = vunpack.c.h.b16 %v530
        %v1157 = vunpack.c.l.b16 %v531
        %v1158 = vunpack.c.h.b16 %v531
        %v1159 = vunpack.c.l.b16 %v532
        %v1160 = vunpack.c.h.b16 %v532
        %v1161 = vunpack.c.l.b16 %v533
        %v1162 = vunpack.c.h.b16 %v533
        %v1163 = vunpack.c.l.b16 %v534
        %v1164 = vunpack.c.h.b16 %v534
        %v1165 = vunpack.c.l.b16 %v535
        %v1166 = vunpack.c.h.b16 %v535
        %v1167 = vunpack.c.l.b16 %v536
        %v1168 = vunpack.c.h.b16 %v536
        %v1169 = vunpack.c.l.b16 %v537
        %v1170 = vunpack.c.h.b16 %v537
        %v1171 = vunpack.c.l.b16 %v538
        %v1172 = vunpack.c.h.b16 %v538
        %v1173 = vunpack.c.l.b16 %v539
        %v1174 = vunpack.c.h.b16 %v539
        %v1175 = vunpack.c.l.b16 %v540
        %v1176 = vunpack.c.h.b16 %v540
        %v1177 = vunpack.c.l.b16 %v541
        %v1178 = vunpack.c.h.b16 %v541
        %v1179 = vunpack.c.l.b16 %v542
        %v1180 = vunpack.c.h.b16 %v542
        %v1181 = vunpack.c.l.b16 %v543
        %v1182 = vunpack.c.h.b16 %v543
        %v1183 = vunpack.c.l.b16 %v544
        %v1184 = vunpack.c.h.b16 %v544
        %v1185 = vunpack.c.l.b16 %v545
        %v1186 = vunpack.c.h.b16 %v545
        %v1187 = vpack.c.b16 %v1063, %v1059
        %v1188 = vpack.c.b16 %v1064, %v1060
        %v1189 = vpack.c.b16 %v1065, %v1061
        %v1190 = vpack.c.b16 %v1066, %v1062
        %v1191 = vpack.c.b16 %v1071, %v1067
        %v1192 = vpack.c.b16 %v1072, %v1068
        %v1193 = vpack.c.b16 %v1073, %v1069
        %v1194 = vpack.c.b16 %v1074, %v1070
        %v1195 = vpack.c.b16 %v1079, %v1075
        %v1196 = vpack.c.b16 %v1080, %v1076
        %v1197 = vpack.c.b16 %v1081, %v1077
        %v1198 = vpack.c.b16 %v1082, %v1078
        %v1199 = vpack.c.b16 %v1087, %v1083
        %v1200 = vpack.c.b16 %v1088, %v1084
        %v1201 = vpack.c.b16 %v1089, %v1085
        %v1202 = vpack.c.b16 %v1090, %v1086
        %v1203 = vpack.c.b16 %v1095, %v1091
        %v1204 = vpack.c.b16 %v1096, %v1092
        %v1205 = vpack.c.b16 %v1097, %v1093
        %v1206 = vpack.c.b16 %v1098, %v1094
        %v1207 = vpack.c.b16 %v1103, %v1099
        %v1208 = vpack.c.b16 %v1104, %v1100
        %v1209 = vpack.c.b16 %v1105, %v1101
        %v1210 = vpack.c.b16 %v1106, %v1102
        %v1211 = vpack.c.b16 %v1111, %v1107
        %v1212 = vpack.c.b16 %v1112, %v1108
        %v1213 = vpack.c.b16 %v1113, %v1109
        %v1214 = vpack.c.b16 %v1114, %v1110
        %v1215 = vpack.c.b16 %v1119, %v1115
        %v1216 = vpack.c.b16 %v1120, %v1116
        %v1217 = vpack.c.b16 %v1121, %v1117
        %v1218 = vpack.c.b16 %v1122, %v1118
        %v1219 = vpack.c.b16 %v1127, %v1123
        %v1220 = vpack.c.b16 %v1128, %v1124
        %v1221 = vpack.c.b16 %v1129, %v1125
        %v1222 = vpack.c.b16 %v1130, %v1126
        %v1223 = vpack.c.b16 %v1135, %v1131
        %v1224 = vpack.c.b16 %v1136, %v1132
        %v1225 = vpack.c.b16 %v1137, %v1133
        %v1226 = vpack.c.b16 %v1138, %v1134
        %v1227 = vpack.c.b16 %v1143, %v1139
        %v1228 = vpack.c.b16 %v1144, %v1140
        %v1229 = vpack.c.b16 %v1145, %v1141
        %v1230 = vpack.c.b16 %v1146, %v1142
        %v1231 = vpack.c.b16 %v1151, %v1147
        %v1232 = vpack.c.b16 %v1152, %v1148
        %v1233 = vpack.c.b16 %v1153, %v1149
        %v1234 = vpack.c.b16 %v1154, %v1150
        %v1235 = vpack.c.b16 %v1159, %v1155
        %v1236 = vpack.c.b16 %v1160, %v1156
        %v1237 = vpack.c.b16 %v1161, %v1157
        %v1238 = vpack.c.b16 %v1162, %v1158
        %v1239 = vpack.c.b16 %v1167, %v1163
        %v1240 = vpack.c.b16 %v1168, %v1164
        %v1241 = vpack.c.b16 %v1169, %v1165
        %v1242 = vpack.c.b16 %v1170, %v1166
        %v1243 = vpack.c.b16 %v1175, %v1171
        %v1244 = vpack.c.b16 %v1176, %v1172
        %v1245 = vpack.c.b16 %v1177, %v1173
        %v1246 = vpack.c.b16 %v1178, %v1174
        %v1247 = vpack.c.b16 %v1183, %v1179
        %v1248 = vpack.c.b16 %v1184, %v1180
        %v1249 = vpack.c.b16 %v1185, %v1181
        %v1250 = vpack.c.b16 %v1186, %v1182
        %1315 = vmatprep.subr.bf16.mxu0 %v1188
        %1316 = vmatpush1.bf16.msra.mxu0 %v1187
        %1317 = vmatprep.subr.bf16.mxu0 %v1192
        %1318 = vmatpush1.bf16.msra.mxu0 %v1191
        %1319 = vmatprep.subr.bf16.mxu0 %v1196
        %1320 = vmatpush1.bf16.msra.mxu0 %v1195
        %1321 = vmatprep.subr.bf16.mxu0 %v1200
        %1322 = vmatpush1.bf16.msra.mxu0 %v1199
        %1323 = vmatprep.subr.bf16.mxu0 %v1204
        %1324 = vmatpush1.bf16.msra.mxu0 %v1203
        %1325 = vmatprep.subr.bf16.mxu0 %v1208
        %1326 = vmatpush1.bf16.msra.mxu0 %v1207
        %1327 = vmatprep.subr.bf16.mxu0 %v1212
        %1328 = vmatpush1.bf16.msra.mxu0 %v1211
        %1329 = vmatprep.subr.bf16.mxu0 %v1216
        %1330 = vmatpush1.bf16.msra.mxu0 %v1215
        %1331 = vmatprep.subr.bf16.mxu0 %v1220
        %1332 = vmatpush1.bf16.msra.mxu0 %v1219
        %1333 = vmatprep.subr.bf16.mxu0 %v1224
        %1334 = vmatpush1.bf16.msra.mxu0 %v1223
        %1335 = vmatprep.subr.bf16.mxu0 %v1228
        %1336 = vmatpush1.bf16.msra.mxu0 %v1227
        %1337 = vmatprep.subr.bf16.mxu0 %v1232
        %1338 = vmatpush1.bf16.msra.mxu0 %v1231
        %1339 = vmatprep.subr.bf16.mxu0 %v1236
        %1340 = vmatpush1.bf16.msra.mxu0 %v1235
        %1341 = vmatprep.subr.bf16.mxu0 %v1240
        %1342 = vmatpush1.bf16.msra.mxu0 %v1239
        %1343 = vmatprep.subr.bf16.mxu0 %v1244
        %1344 = vmatpush1.bf16.msra.mxu0 %v1243
        %1345 = vmatprep.subr.bf16.mxu0 %v1248
        %1346 = vmatpush1.bf16.msra.mxu0 %v1247
        %1347 = vmatprep.mubr.bf16.mxu0 %v868
        %1348 = vmatmul.mubr.bf16.gmra.mrb[0].mxu0 %v867
        %v1349 = vpop.f32.mrb[0].mxu0
        %v1350 = vadd.f32 0.0, %v1349
        %v1351 = vpop.f32.mrb[0].mxu0
        %v1352 = vadd.f32 0.0, %v1351
        %v1353 = vpop.f32.mrb[0].mxu0
        %v1354 = vadd.f32 0.0, %v1353
        %v1355 = vpop.f32.mrb[0].mxu0
        %v1356 = vadd.f32 0.0, %v1355
        %1357 = vmatprep.mubr.bf16.mxu0 %v870
        %1358 = vmatmul.mubr.bf16.gmra.mrb[0].mxu0 %v869
        %v1359 = vpop.f32.mrb[0].mxu0
        %v1360 = vadd.f32 0.0, %v1359
        %v1361 = vpop.f32.mrb[0].mxu0
        %v1362 = vadd.f32 0.0, %v1361
        %v1363 = vpop.f32.mrb[0].mxu0
        %v1364 = vadd.f32 0.0, %v1363
        %v1365 = vpop.f32.mrb[0].mxu0
        %v1366 = vadd.f32 0.0, %v1365
        %1367 = vmatprep.mubr.bf16.mxu0 %v872
        %1368 = vmatmul.mubr.bf16.gmra.mrb[0].mxu0 %v871
        %v1369 = vpop.f32.mrb[0].mxu0
        %v1370 = vadd.f32 0.0, %v1369
        %v1371 = vpop.f32.mrb[0].mxu0
        %v1372 = vadd.f32 0.0, %v1371
        %v1373 = vpop.f32.mrb[0].mxu0
        %v1374 = vadd.f32 0.0, %v1373
        %v1375 = vpop.f32.mrb[0].mxu0
        %v1376 = vadd.f32 0.0, %v1375
        %1377 = vmatprep.mubr.bf16.mxu0 %v874
        %1378 = vmatmul.mubr.bf16.gmra.mrb[0].mxu0 %v873
        %v1379 = vpop.f32.mrb[0].mxu0
        %v1380 = vadd.f32 0.0, %v1379
        %v1381 = vpop.f32.mrb[0].mxu0
        %v1382 = vadd.f32 0.0, %v1381
        %v1383 = vpop.f32.mrb[0].mxu0
        %v1384 = vadd.f32 0.0, %v1383
        %v1385 = vpop.f32.mrb[0].mxu0
        %v1386 = vadd.f32 0.0, %v1385
        %1387 = vmatprep.mubr.bf16.mxu0 %v876
        %1388 = vmatmul.mubr.bf16.gmra.mrb[0].mxu0 %v875
        %v1389 = vpop.f32.mrb[0].mxu0
        %v1390 = vadd.f32 0.0, %v1389
        %v1391 = vpop.f32.mrb[0].mxu0
        %v1392 = vadd.f32 0.0, %v1391
        %v1393 = vpop.f32.mrb[0].mxu0
        %v1394 = vadd.f32 0.0, %v1393
        %v1395 = vpop.f32.mrb[0].mxu0
        %v1396 = vadd.f32 0.0, %v1395
        %1397 = vmatprep.mubr.bf16.mxu0 %v878
        %1398 = vmatmul.mubr.bf16.gmra.mrb[0].mxu0 %v877
        %v1399 = vpop.f32.mrb[0].mxu0
        %v1400 = vadd.f32 0.0, %v1399
        %v1401 = vpop.f32.mrb[0].mxu0
        %v1402 = vadd.f32 0.0, %v1401
        %v1403 = vpop.f32.mrb[0].mxu0
        %v1404 = vadd.f32 0.0, %v1403
        %v1405 = vpop.f32.mrb[0].mxu0
        %v1406 = vadd.f32 0.0, %v1405
        %1407 = vmatprep.mubr.bf16.mxu0 %v880
        %1408 = vmatmul.mubr.bf16.gmra.mrb[0].mxu0 %v879
        %v1409 = vpop.f32.mrb[0].mxu0
        %v1410 = vadd.f32 0.0, %v1409
        %v1411 = vpop.f32.mrb[0].mxu0
        %v1412 = vadd.f32 0.0, %v1411
        %v1413 = vpop.f32.mrb[0].mxu0
        %v1414 = vadd.f32 0.0, %v1413
        %v1415 = vpop.f32.mrb[0].mxu0
        %v1416 = vadd.f32 0.0, %v1415
        %1417 = vmatprep.mubr.bf16.mxu0 %v882
        %1418 = vmatmul.mubr.bf16.gmra.mrb[0].mxu0 %v881
        %v1419 = vpop.f32.mrb[0].mxu0
        %v1420 = vadd.f32 0.0, %v1419
        %v1421 = vpop.f32.mrb[0].mxu0
        %v1422 = vadd.f32 0.0, %v1421
        %v1423 = vpop.f32.mrb[0].mxu0
        %v1424 = vadd.f32 0.0, %v1423
        %v1425 = vpop.f32.mrb[0].mxu0
        %v1426 = vadd.f32 0.0, %v1425
        %1427 = vmatprep.mubr.bf16.mxu0 %v884
        %1428 = vmatmul.mubr.bf16.gmra.mrb[0].mxu0 %v883
        %v1429 = vpop.f32.mrb[0].mxu0
        %v1430 = vadd.f32 0.0, %v1429
        %v1431 = vpop.f32.mrb[0].mxu0
        %v1432 = vadd.f32 0.0, %v1431
        %v1433 = vpop.f32.mrb[0].mxu0
        %v1434 = vadd.f32 0.0, %v1433
        %v1435 = vpop.f32.mrb[0].mxu0
        %v1436 = vadd.f32 0.0, %v1435
        %1437 = vmatprep.mubr.bf16.mxu0 %v886
        %1438 = vmatmul.mubr.bf16.gmra.mrb[0].mxu0 %v885
        %v1439 = vpop.f32.mrb[0].mxu0
        %v1440 = vadd.f32 0.0, %v1439
        %v1441 = vpop.f32.mrb[0].mxu0
        %v1442 = vadd.f32 0.0, %v1441
        %v1443 = vpop.f32.mrb[0].mxu0
        %v1444 = vadd.f32 0.0, %v1443
        %v1445 = vpop.f32.mrb[0].mxu0
        %v1446 = vadd.f32 0.0, %v1445
        %1447 = vmatprep.mubr.bf16.mxu0 %v888
        %1448 = vmatmul.mubr.bf16.gmra.mrb[0].mxu0 %v887
        %v1449 = vpop.f32.mrb[0].mxu0
        %v1450 = vadd.f32 0.0, %v1449
        %v1451 = vpop.f32.mrb[0].mxu0
        %v1452 = vadd.f32 0.0, %v1451
        %v1453 = vpop.f32.mrb[0].mxu0
        %v1454 = vadd.f32 0.0, %v1453
        %v1455 = vpop.f32.mrb[0].mxu0
        %v1456 = vadd.f32 0.0, %v1455
        %1457 = vmatprep.mubr.bf16.mxu0 %v890
        %1458 = vmatmul.mubr.bf16.gmra.mrb[0].mxu0 %v889
        %v1459 = vpop.f32.mrb[0].mxu0
        %v1460 = vadd.f32 0.0, %v1459
        %v1461 = vpop.f32.mrb[0].mxu0
        %v1462 = vadd.f32 0.0, %v1461
        %v1463 = vpop.f32.mrb[0].mxu0
        %v1464 = vadd.f32 0.0, %v1463
        %v1465 = vpop.f32.mrb[0].mxu0
        %v1466 = vadd.f32 0.0, %v1465
        %1467 = vmatprep.mubr.bf16.mxu0 %v892
        %1468 = vmatmul.mubr.bf16.gmra.mrb[0].mxu0 %v891
        %v1469 = vpop.f32.mrb[0].mxu0
        %v1470 = vadd.f32 0.0, %v1469
        %v1471 = vpop.f32.mrb[0].mxu0
        %v1472 = vadd.f32 0.0, %v1471
        %v1473 = vpop.f32.mrb[0].mxu0
        %v1474 = vadd.f32 0.0, %v1473
        %v1475 = vpop.f32.mrb[0].mxu0
        %v1476 = vadd.f32 0.0, %v1475
        %1477 = vmatprep.mubr.bf16.mxu0 %v894
        %1478 = vmatmul.mubr.bf16.gmra.mrb[0].mxu0 %v893
        %v1479 = vpop.f32.mrb[0].mxu0
        %v1480 = vadd.f32 0.0, %v1479
        %v1481 = vpop.f32.mrb[0].mxu0
        %v1482 = vadd.f32 0.0, %v1481
        %v1483 = vpop.f32.mrb[0].mxu0
        %v1484 = vadd.f32 0.0, %v1483
        %v1485 = vpop.f32.mrb[0].mxu0
        %v1486 = vadd.f32 0.0, %v1485
        %1487 = vmatprep.mubr.bf16.mxu0 %v896
        %1488 = vmatmul.mubr.bf16.gmra.mrb[0].mxu0 %v895
        %v1489 = vpop.f32.mrb[0].mxu0
        %v1490 = vadd.f32 0.0, %v1489
        %v1491 = vpop.f32.mrb[0].mxu0
        %v1492 = vadd.f32 0.0, %v1491
        %v1493 = vpop.f32.mrb[0].mxu0
        %v1494 = vadd.f32 0.0, %v1493
        %v1495 = vpop.f32.mrb[0].mxu0
        %v1496 = vadd.f32 0.0, %v1495
        %1497 = vmatprep.mubr.bf16.mxu0 %v898
        %1498 = vmatmul.mubr.bf16.gmra.mrb[0].mxu0 %v897
        %v1499 = vpop.f32.mrb[0].mxu0
        %v1500 = vadd.f32 0.0, %v1499
        %v1501 = vpop.f32.mrb[0].mxu0
        %v1502 = vadd.f32 0.0, %v1501
        %v1503 = vpop.f32.mrb[0].mxu0
        %v1504 = vadd.f32 0.0, %v1503
        %v1505 = vpop.f32.mrb[0].mxu0
        %v1506 = vadd.f32 0.0, %v1505
        %1507 = vmatprep.mubr.bf16.mxu0 %v900
        %1508 = vmatmul.mubr.bf16.gmra.mrb[0].mxu0 %v899
        %v1509 = vpop.f32.mrb[0].mxu0
        %v1510 = vadd.f32 0.0, %v1509
        %v1511 = vpop.f32.mrb[0].mxu0
        %v1512 = vadd.f32 0.0, %v1511
        %v1513 = vpop.f32.mrb[0].mxu0
        %v1514 = vadd.f32 0.0, %v1513
        %v1515 = vpop.f32.mrb[0].mxu0
        %v1516 = vadd.f32 0.0, %v1515
        %1517 = vmatprep.mubr.bf16.mxu0 %v902
        %1518 = vmatmul.mubr.bf16.gmra.mrb[0].mxu0 %v901
        %v1519 = vpop.f32.mrb[0].mxu0
        %v1520 = vadd.f32 0.0, %v1519
        %v1521 = vpop.f32.mrb[0].mxu0
        %v1522 = vadd.f32 0.0, %v1521
        %v1523 = vpop.f32.mrb[0].mxu0
        %v1524 = vadd.f32 0.0, %v1523
        %v1525 = vpop.f32.mrb[0].mxu0
        %v1526 = vadd.f32 0.0, %v1525
        %1527 = vmatprep.mubr.bf16.mxu0 %v904
        %1528 = vmatmul.mubr.bf16.gmra.mrb[0].mxu0 %v903
        %v1529 = vpop.f32.mrb[0].mxu0
        %v1530 = vadd.f32 0.0, %v1529
        %v1531 = vpop.f32.mrb[0].mxu0
        %v1532 = vadd.f32 0.0, %v1531
        %v1533 = vpop.f32.mrb[0].mxu0
        %v1534 = vadd.f32 0.0, %v1533
        %v1535 = vpop.f32.mrb[0].mxu0
        %v1536 = vadd.f32 0.0, %v1535
        %1537 = vmatprep.mubr.bf16.mxu0 %v906
        %1538 = vmatmul.mubr.bf16.gmra.mrb[0].mxu0 %v905
        %v1539 = vpop.f32.mrb[0].mxu0
        %v1540 = vadd.f32 0.0, %v1539
        %v1541 = vpop.f32.mrb[0].mxu0
        %v1542 = vadd.f32 0.0, %v1541
        %v1543 = vpop.f32.mrb[0].mxu0
        %v1544 = vadd.f32 0.0, %v1543
        %v1545 = vpop.f32.mrb[0].mxu0
        %v1546 = vadd.f32 0.0, %v1545
        %1547 = vmatprep.mubr.bf16.mxu0 %v908
        %1548 = vmatmul.mubr.bf16.gmra.mrb[0].mxu0 %v907
        %v1549 = vpop.f32.mrb[0].mxu0
        %v1550 = vadd.f32 0.0, %v1549
        %v1551 = vpop.f32.mrb[0].mxu0
        %v1552 = vadd.f32 0.0, %v1551
        %v1553 = vpop.f32.mrb[0].mxu0
        %v1554 = vadd.f32 0.0, %v1553
        %v1555 = vpop.f32.mrb[0].mxu0
        %v1556 = vadd.f32 0.0, %v1555
        %1557 = vmatprep.mubr.bf16.mxu0 %v910
        %1558 = vmatmul.mubr.bf16.gmra.mrb[0].mxu0 %v909
        %v1559 = vpop.f32.mrb[0].mxu0
        %v1560 = vadd.f32 0.0, %v1559
        %v1561 = vpop.f32.mrb[0].mxu0
        %v1562 = vadd.f32 0.0, %v1561
        %v1563 = vpop.f32.mrb[0].mxu0
        %v1564 = vadd.f32 0.0, %v1563
        %v1565 = vpop.f32.mrb[0].mxu0
        %v1566 = vadd.f32 0.0, %v1565
        %1567 = vmatprep.mubr.bf16.mxu0 %v912
        %1568 = vmatmul.mubr.bf16.gmra.mrb[0].mxu0 %v911
        %v1569 = vpop.f32.mrb[0].mxu0
        %v1570 = vadd.f32 0.0, %v1569
        %v1571 = vpop.f32.mrb[0].mxu0
        %v1572 = vadd.f32 0.0, %v1571
        %v1573 = vpop.f32.mrb[0].mxu0
        %v1574 = vadd.f32 0.0, %v1573
        %v1575 = vpop.f32.mrb[0].mxu0
        %v1576 = vadd.f32 0.0, %v1575
        %1577 = vmatprep.mubr.bf16.mxu0 %v914
        %1578 = vmatmul.mubr.bf16.gmra.mrb[0].mxu0 %v913
        %v1579 = vpop.f32.mrb[0].mxu0
        %v1580 = vadd.f32 0.0, %v1579
        %v1581 = vpop.f32.mrb[0].mxu0
        %v1582 = vadd.f32 0.0, %v1581
        %v1583 = vpop.f32.mrb[0].mxu0
        %v1584 = vadd.f32 0.0, %v1583
        %v1585 = vpop.f32.mrb[0].mxu0
        %v1586 = vadd.f32 0.0, %v1585
        %1587 = vmatprep.mubr.bf16.mxu0 %v916
        %1588 = vmatmul.mubr.bf16.gmra.mrb[0].mxu0 %v915
        %v1589 = vpop.f32.mrb[0].mxu0
        %v1590 = vadd.f32 0.0, %v1589
        %v1591 = vpop.f32.mrb[0].mxu0
        %v1592 = vadd.f32 0.0, %v1591
        %v1593 = vpop.f32.mrb[0].mxu0
        %v1594 = vadd.f32 0.0, %v1593
        %v1595 = vpop.f32.mrb[0].mxu0
        %v1596 = vadd.f32 0.0, %v1595
        %1597 = vmatprep.mubr.bf16.mxu0 %v918
        %1598 = vmatmul.mubr.bf16.gmra.mrb[0].mxu0 %v917
        %v1599 = vpop.f32.mrb[0].mxu0
        %v1600 = vadd.f32 0.0, %v1599
        %v1601 = vpop.f32.mrb[0].mxu0
        %v1602 = vadd.f32 0.0, %v1601
        %v1603 = vpop.f32.mrb[0].mxu0
        %v1604 = vadd.f32 0.0, %v1603
        %v1605 = vpop.f32.mrb[0].mxu0
        %v1606 = vadd.f32 0.0, %v1605
        %1607 = vmatprep.mubr.bf16.mxu0 %v920
        %1608 = vmatmul.mubr.bf16.gmra.mrb[0].mxu0 %v919
        %v1609 = vpop.f32.mrb[0].mxu0
        %v1610 = vadd.f32 0.0, %v1609
        %v1611 = vpop.f32.mrb[0].mxu0
        %v1612 = vadd.f32 0.0, %v1611
        %v1613 = vpop.f32.mrb[0].mxu0
        %v1614 = vadd.f32 0.0, %v1613
        %v1615 = vpop.f32.mrb[0].mxu0
        %v1616 = vadd.f32 0.0, %v1615
        %1617 = vmatprep.mubr.bf16.mxu0 %v922
        %1618 = vmatmul.mubr.bf16.gmra.mrb[0].mxu0 %v921
        %v1619 = vpop.f32.mrb[0].mxu0
        %v1620 = vadd.f32 0.0, %v1619
        %v1621 = vpop.f32.mrb[0].mxu0
        %v1622 = vadd.f32 0.0, %v1621
        %v1623 = vpop.f32.mrb[0].mxu0
        %v1624 = vadd.f32 0.0, %v1623
        %v1625 = vpop.f32.mrb[0].mxu0
        %v1626 = vadd.f32 0.0, %v1625
        %1627 = vmatprep.mubr.bf16.mxu0 %v924
        %1628 = vmatmul.mubr.bf16.gmra.mrb[0].mxu0 %v923
        %v1629 = vpop.f32.mrb[0].mxu0
        %v1630 = vadd.f32 0.0, %v1629
        %v1631 = vpop.f32.mrb[0].mxu0
        %v1632 = vadd.f32 0.0, %v1631
        %v1633 = vpop.f32.mrb[0].mxu0
        %v1634 = vadd.f32 0.0, %v1633
        %v1635 = vpop.f32.mrb[0].mxu0
        %v1636 = vadd.f32 0.0, %v1635
        %1637 = vmatprep.mubr.bf16.mxu0 %v926
        %1638 = vmatmul.mubr.bf16.gmra.mrb[0].mxu0 %v925
        %v1639 = vpop.f32.mrb[0].mxu0
        %v1640 = vadd.f32 0.0, %v1639
        %v1641 = vpop.f32.mrb[0].mxu0
        %v1642 = vadd.f32 0.0, %v1641
        %v1643 = vpop.f32.mrb[0].mxu0
        %v1644 = vadd.f32 0.0, %v1643
        %v1645 = vpop.f32.mrb[0].mxu0
        %v1646 = vadd.f32 0.0, %v1645
        %1647 = vmatprep.mubr.bf16.mxu0 %v928
        %1648 = vmatmul.mubr.bf16.gmra.mrb[0].mxu0 %v927
        %v1649 = vpop.f32.mrb[0].mxu0
        %v1650 = vadd.f32 0.0, %v1649
        %v1651 = vpop.f32.mrb[0].mxu0
        %v1652 = vadd.f32 0.0, %v1651
        %v1653 = vpop.f32.mrb[0].mxu0
        %v1654 = vadd.f32 0.0, %v1653
        %v1655 = vpop.f32.mrb[0].mxu0
        %v1656 = vadd.f32 0.0, %v1655
        %1657 = vmatprep.mubr.bf16.mxu0 %v930
        %1658 = vmatmul.mubr.bf16.gmra.mrb[0].mxu0 %v929
        %v1659 = vpop.f32.mrb[0].mxu0
        %v1660 = vadd.f32 0.0, %v1659
        %v1661 = vpop.f32.mrb[0].mxu0
        %v1662 = vadd.f32 0.0, %v1661
        %v1663 = vpop.f32.mrb[0].mxu0
        %v1664 = vadd.f32 0.0, %v1663
        %v1665 = vpop.f32.mrb[0].mxu0
        %v1666 = vadd.f32 0.0, %v1665
        %1667 = vdwg.mxu0
        %1668 = vmatprep.subr.bf16.mxu0 %v1190
        %1669 = vmatpush1.bf16.msra.mxu0 %v1189
        %1670 = vmatprep.subr.bf16.mxu0 %v1194
        %1671 = vmatpush1.bf16.msra.mxu0 %v1193
        %1672 = vmatprep.subr.bf16.mxu0 %v1198
        %1673 = vmatpush1.bf16.msra.mxu0 %v1197
        %1674 = vmatprep.subr.bf16.mxu0 %v1202
        %1675 = vmatpush1.bf16.msra.mxu0 %v1201
        %1676 = vmatprep.subr.bf16.mxu0 %v1206
        %1677 = vmatpush1.bf16.msra.mxu0 %v1205
        %1678 = vmatprep.subr.bf16.mxu0 %v1210
        %1679 = vmatpush1.bf16.msra.mxu0 %v1209
        %1680 = vmatprep.subr.bf16.mxu0 %v1214
        %1681 = vmatpush1.bf16.msra.mxu0 %v1213
        %1682 = vmatprep.subr.bf16.mxu0 %v1218
        %1683 = vmatpush1.bf16.msra.mxu0 %v1217
        %1684 = vmatprep.subr.bf16.mxu0 %v1222
        %1685 = vmatpush1.bf16.msra.mxu0 %v1221
        %1686 = vmatprep.subr.bf16.mxu0 %v1226
        %1687 = vmatpush1.bf16.msra.mxu0 %v1225
        %1688 = vmatprep.subr.bf16.mxu0 %v1230
        %1689 = vmatpush1.bf16.msra.mxu0 %v1229
        %1690 = vmatprep.subr.bf16.mxu0 %v1234
        %1691 = vmatpush1.bf16.msra.mxu0 %v1233
        %1692 = vmatprep.subr.bf16.mxu0 %v1238
        %1693 = vmatpush1.bf16.msra.mxu0 %v1237
        %1694 = vmatprep.subr.bf16.mxu0 %v1242
        %1695 = vmatpush1.bf16.msra.mxu0 %v1241
        %1696 = vmatprep.subr.bf16.mxu0 %v1246
        %1697 = vmatpush1.bf16.msra.mxu0 %v1245
        %1698 = vmatprep.subr.bf16.mxu0 %v1250
        %1699 = vmatpush1.bf16.msra.mxu0 %v1249
        %1700 = vmatprep.mubr.bf16.mxu0 %v868
        %1701 = vmatmul.mubr.bf16.gmra.mrb[0].mxu0 %v867
        %v1702 = vpop.f32.mrb[0].mxu0
        %v1703 = vadd.f32 0.0, %v1702
        %v1704 = vpop.f32.mrb[0].mxu0
        %v1705 = vadd.f32 0.0, %v1704
        %v1706 = vpop.f32.mrb[0].mxu0
        %v1707 = vadd.f32 0.0, %v1706
        %v1708 = vpop.f32.mrb[0].mxu0
        %v1709 = vadd.f32 0.0, %v1708
        %1710 = vmatprep.mubr.bf16.mxu0 %v870
        %1711 = vmatmul.mubr.bf16.gmra.mrb[0].mxu0 %v869
        %v1712 = vpop.f32.mrb[0].mxu0
        %v1713 = vadd.f32 0.0, %v1712
        %v1714 = vpop.f32.mrb[0].mxu0
        %v1715 = vadd.f32 0.0, %v1714
        %v1716 = vpop.f32.mrb[0].mxu0
        %v1717 = vadd.f32 0.0, %v1716
        %v1718 = vpop.f32.mrb[0].mxu0
        %v1719 = vadd.f32 0.0, %v1718
        %1720 = vmatprep.mubr.bf16.mxu0 %v872
        %1721 = vmatmul.mubr.bf16.gmra.mrb[0].mxu0 %v871
        %v1722 = vpop.f32.mrb[0].mxu0
        %v1723 = vadd.f32 0.0, %v1722
        %v1724 = vpop.f32.mrb[0].mxu0
        %v1725 = vadd.f32 0.0, %v1724
        %v1726 = vpop.f32.mrb[0].mxu0
        %v1727 = vadd.f32 0.0, %v1726
        %v1728 = vpop.f32.mrb[0].mxu0
        %v1729 = vadd.f32 0.0, %v1728
        %1730 = vmatprep.mubr.bf16.mxu0 %v874
        %1731 = vmatmul.mubr.bf16.gmra.mrb[0].mxu0 %v873
        %v1732 = vpop.f32.mrb[0].mxu0
        %v1733 = vadd.f32 0.0, %v1732
        %v1734 = vpop.f32.mrb[0].mxu0
        %v1735 = vadd.f32 0.0, %v1734
        %v1736 = vpop.f32.mrb[0].mxu0
        %v1737 = vadd.f32 0.0, %v1736
        %v1738 = vpop.f32.mrb[0].mxu0
        %v1739 = vadd.f32 0.0, %v1738
        %1740 = vmatprep.mubr.bf16.mxu0 %v876
        %1741 = vmatmul.mubr.bf16.gmra.mrb[0].mxu0 %v875
        %v1742 = vpop.f32.mrb[0].mxu0
        %v1743 = vadd.f32 0.0, %v1742
        %v1744 = vpop.f32.mrb[0].mxu0
        %v1745 = vadd.f32 0.0, %v1744
        %v1746 = vpop.f32.mrb[0].mxu0
        %v1747 = vadd.f32 0.0, %v1746
        %v1748 = vpop.f32.mrb[0].mxu0
        %v1749 = vadd.f32 0.0, %v1748
        %1750 = vmatprep.mubr.bf16.mxu0 %v878
        %1751 = vmatmul.mubr.bf16.gmra.mrb[0].mxu0 %v877
        %v1752 = vpop.f32.mrb[0].mxu0
        %v1753 = vadd.f32 0.0, %v1752
        %v1754 = vpop.f32.mrb[0].mxu0
        %v1755 = vadd.f32 0.0, %v1754
        %v1756 = vpop.f32.mrb[0].mxu0
        %v1757 = vadd.f32 0.0, %v1756
        %v1758 = vpop.f32.mrb[0].mxu0
        %v1759 = vadd.f32 0.0, %v1758
        %1760 = vmatprep.mubr.bf16.mxu0 %v880
        %1761 = vmatmul.mubr.bf16.gmra.mrb[0].mxu0 %v879
        %v1762 = vpop.f32.mrb[0].mxu0
        %v1763 = vadd.f32 0.0, %v1762
        %v1764 = vpop.f32.mrb[0].mxu0
        %v1765 = vadd.f32 0.0, %v1764
        %v1766 = vpop.f32.mrb[0].mxu0
        %v1767 = vadd.f32 0.0, %v1766
        %v1768 = vpop.f32.mrb[0].mxu0
        %v1769 = vadd.f32 0.0, %v1768
        %1770 = vmatprep.mubr.bf16.mxu0 %v882
        %1771 = vmatmul.mubr.bf16.gmra.mrb[0].mxu0 %v881
        %v1772 = vpop.f32.mrb[0].mxu0
        %v1773 = vadd.f32 0.0, %v1772
        %v1774 = vpop.f32.mrb[0].mxu0
        %v1775 = vadd.f32 0.0, %v1774
        %v1776 = vpop.f32.mrb[0].mxu0
        %v1777 = vadd.f32 0.0, %v1776
        %v1778 = vpop.f32.mrb[0].mxu0
        %v1779 = vadd.f32 0.0, %v1778
        %1780 = vmatprep.mubr.bf16.mxu0 %v884
        %1781 = vmatmul.mubr.bf16.gmra.mrb[0].mxu0 %v883
        %v1782 = vpop.f32.mrb[0].mxu0
        %v1783 = vadd.f32 0.0, %v1782
        %v1784 = vpop.f32.mrb[0].mxu0
        %v1785 = vadd.f32 0.0, %v1784
        %v1786 = vpop.f32.mrb[0].mxu0
        %v1787 = vadd.f32 0.0, %v1786
        %v1788 = vpop.f32.mrb[0].mxu0
        %v1789 = vadd.f32 0.0, %v1788
        %1790 = vmatprep.mubr.bf16.mxu0 %v886
        %1791 = vmatmul.mubr.bf16.gmra.mrb[0].mxu0 %v885
        %v1792 = vpop.f32.mrb[0].mxu0
        %v1793 = vadd.f32 0.0, %v1792
        %v1794 = vpop.f32.mrb[0].mxu0
        %v1795 = vadd.f32 0.0, %v1794
        %v1796 = vpop.f32.mrb[0].mxu0
        %v1797 = vadd.f32 0.0, %v1796
        %v1798 = vpop.f32.mrb[0].mxu0
        %v1799 = vadd.f32 0.0, %v1798
        %1800 = vmatprep.mubr.bf16.mxu0 %v888
        %1801 = vmatmul.mubr.bf16.gmra.mrb[0].mxu0 %v887
        %v1802 = vpop.f32.mrb[0].mxu0
        %v1803 = vadd.f32 0.0, %v1802
        %v1804 = vpop.f32.mrb[0].mxu0
        %v1805 = vadd.f32 0.0, %v1804
        %v1806 = vpop.f32.mrb[0].mxu0
        %v1807 = vadd.f32 0.0, %v1806
        %v1808 = vpop.f32.mrb[0].mxu0
        %v1809 = vadd.f32 0.0, %v1808
        %1810 = vmatprep.mubr.bf16.mxu0 %v890
        %1811 = vmatmul.mubr.bf16.gmra.mrb[0].mxu0 %v889
        %v1812 = vpop.f32.mrb[0].mxu0
        %v1813 = vadd.f32 0.0, %v1812
        %v1814 = vpop.f32.mrb[0].mxu0
        %v1815 = vadd.f32 0.0, %v1814
        %v1816 = vpop.f32.mrb[0].mxu0
        %v1817 = vadd.f32 0.0, %v1816
        %v1818 = vpop.f32.mrb[0].mxu0
        %v1819 = vadd.f32 0.0, %v1818
        %1820 = vmatprep.mubr.bf16.mxu0 %v892
        %1821 = vmatmul.mubr.bf16.gmra.mrb[0].mxu0 %v891
        %v1822 = vpop.f32.mrb[0].mxu0
        %v1823 = vadd.f32 0.0, %v1822
        %v1824 = vpop.f32.mrb[0].mxu0
        %v1825 = vadd.f32 0.0, %v1824
        %v1826 = vpop.f32.mrb[0].mxu0
        %v1827 = vadd.f32 0.0, %v1826
        %v1828 = vpop.f32.mrb[0].mxu0
        %v1829 = vadd.f32 0.0, %v1828
        %1830 = vmatprep.mubr.bf16.mxu0 %v894
        %1831 = vmatmul.mubr.bf16.gmra.mrb[0].mxu0 %v893
        %v1832 = vpop.f32.mrb[0].mxu0
        %v1833 = vadd.f32 0.0, %v1832
        %v1834 = vpop.f32.mrb[0].mxu0
        %v1835 = vadd.f32 0.0, %v1834
        %v1836 = vpop.f32.mrb[0].mxu0
        %v1837 = vadd.f32 0.0, %v1836
        %v1838 = vpop.f32.mrb[0].mxu0
        %v1839 = vadd.f32 0.0, %v1838
        %1840 = vmatprep.mubr.bf16.mxu0 %v896
        %1841 = vmatmul.mubr.bf16.gmra.mrb[0].mxu0 %v895
        %v1842 = vpop.f32.mrb[0].mxu0
        %v1843 = vadd.f32 0.0, %v1842
        %v1844 = vpop.f32.mrb[0].mxu0
        %v1845 = vadd.f32 0.0, %v1844
        %v1846 = vpop.f32.mrb[0].mxu0
        %v1847 = vadd.f32 0.0, %v1846
        %v1848 = vpop.f32.mrb[0].mxu0
        %v1849 = vadd.f32 0.0, %v1848
        %1850 = vmatprep.mubr.bf16.mxu0 %v898
        %1851 = vmatmul.mubr.bf16.gmra.mrb[0].mxu0 %v897
        %v1852 = vpop.f32.mrb[0].mxu0
        %v1853 = vadd.f32 0.0, %v1852
        %v1854 = vpop.f32.mrb[0].mxu0
        %v1855 = vadd.f32 0.0, %v1854
        %v1856 = vpop.f32.mrb[0].mxu0
        %v1857 = vadd.f32 0.0, %v1856
        %v1858 = vpop.f32.mrb[0].mxu0
        %v1859 = vadd.f32 0.0, %v1858
        %1860 = vmatprep.mubr.bf16.mxu0 %v900
        %1861 = vmatmul.mubr.bf16.gmra.mrb[0].mxu0 %v899
        %v1862 = vpop.f32.mrb[0].mxu0
        %v1863 = vadd.f32 0.0, %v1862
        %v1864 = vpop.f32.mrb[0].mxu0
        %v1865 = vadd.f32 0.0, %v1864
        %v1866 = vpop.f32.mrb[0].mxu0
        %v1867 = vadd.f32 0.0, %v1866
        %v1868 = vpop.f32.mrb[0].mxu0
        %v1869 = vadd.f32 0.0, %v1868
        %1870 = vmatprep.mubr.bf16.mxu0 %v902
        %1871 = vmatmul.mubr.bf16.gmra.mrb[0].mxu0 %v901
        %v1872 = vpop.f32.mrb[0].mxu0
        %v1873 = vadd.f32 0.0, %v1872
        %v1874 = vpop.f32.mrb[0].mxu0
        %v1875 = vadd.f32 0.0, %v1874
        %v1876 = vpop.f32.mrb[0].mxu0
        %v1877 = vadd.f32 0.0, %v1876
        %v1878 = vpop.f32.mrb[0].mxu0
        %v1879 = vadd.f32 0.0, %v1878
        %1880 = vmatprep.mubr.bf16.mxu0 %v904
        %1881 = vmatmul.mubr.bf16.gmra.mrb[0].mxu0 %v903
        %v1882 = vpop.f32.mrb[0].mxu0
        %v1883 = vadd.f32 0.0, %v1882
        %v1884 = vpop.f32.mrb[0].mxu0
        %v1885 = vadd.f32 0.0, %v1884
        %v1886 = vpop.f32.mrb[0].mxu0
        %v1887 = vadd.f32 0.0, %v1886
        %v1888 = vpop.f32.mrb[0].mxu0
        %v1889 = vadd.f32 0.0, %v1888
        %1890 = vmatprep.mubr.bf16.mxu0 %v906
        %1891 = vmatmul.mubr.bf16.gmra.mrb[0].mxu0 %v905
        %v1892 = vpop.f32.mrb[0].mxu0
        %v1893 = vadd.f32 0.0, %v1892
        %v1894 = vpop.f32.mrb[0].mxu0
        %v1895 = vadd.f32 0.0, %v1894
        %v1896 = vpop.f32.mrb[0].mxu0
        %v1897 = vadd.f32 0.0, %v1896
        %v1898 = vpop.f32.mrb[0].mxu0
        %v1899 = vadd.f32 0.0, %v1898
        %1900 = vmatprep.mubr.bf16.mxu0 %v908
        %1901 = vmatmul.mubr.bf16.gmra.mrb[0].mxu0 %v907
        %v1902 = vpop.f32.mrb[0].mxu0
        %v1903 = vadd.f32 0.0, %v1902
        %v1904 = vpop.f32.mrb[0].mxu0
        %v1905 = vadd.f32 0.0, %v1904
        %v1906 = vpop.f32.mrb[0].mxu0
        %v1907 = vadd.f32 0.0, %v1906
        %v1908 = vpop.f32.mrb[0].mxu0
        %v1909 = vadd.f32 0.0, %v1908
        %1910 = vmatprep.mubr.bf16.mxu0 %v910
        %1911 = vmatmul.mubr.bf16.gmra.mrb[0].mxu0 %v909
        %v1912 = vpop.f32.mrb[0].mxu0
        %v1913 = vadd.f32 0.0, %v1912
        %v1914 = vpop.f32.mrb[0].mxu0
        %v1915 = vadd.f32 0.0, %v1914
        %v1916 = vpop.f32.mrb[0].mxu0
        %v1917 = vadd.f32 0.0, %v1916
        %v1918 = vpop.f32.mrb[0].mxu0
        %v1919 = vadd.f32 0.0, %v1918
        %1920 = vmatprep.mubr.bf16.mxu0 %v912
        %1921 = vmatmul.mubr.bf16.gmra.mrb[0].mxu0 %v911
        %v1922 = vpop.f32.mrb[0].mxu0
        %v1923 = vadd.f32 0.0, %v1922
        %v1924 = vpop.f32.mrb[0].mxu0
        %v1925 = vadd.f32 0.0, %v1924
        %v1926 = vpop.f32.mrb[0].mxu0
        %v1927 = vadd.f32 0.0, %v1926
        %v1928 = vpop.f32.mrb[0].mxu0
        %v1929 = vadd.f32 0.0, %v1928
        %1930 = vmatprep.mubr.bf16.mxu0 %v914
        %1931 = vmatmul.mubr.bf16.gmra.mrb[0].mxu0 %v913
        %v1932 = vpop.f32.mrb[0].mxu0
        %v1933 = vadd.f32 0.0, %v1932
        %v1934 = vpop.f32.mrb[0].mxu0
        %v1935 = vadd.f32 0.0, %v1934
        %v1936 = vpop.f32.mrb[0].mxu0
        %v1937 = vadd.f32 0.0, %v1936
        %v1938 = vpop.f32.mrb[0].mxu0
        %v1939 = vadd.f32 0.0, %v1938
        %1940 = vmatprep.mubr.bf16.mxu0 %v916
        %1941 = vmatmul.mubr.bf16.gmra.mrb[0].mxu0 %v915
        %v1942 = vpop.f32.mrb[0].mxu0
        %v1943 = vadd.f32 0.0, %v1942
        %v1944 = vpop.f32.mrb[0].mxu0
        %v1945 = vadd.f32 0.0, %v1944
        %v1946 = vpop.f32.mrb[0].mxu0
        %v1947 = vadd.f32 0.0, %v1946
        %v1948 = vpop.f32.mrb[0].mxu0
        %v1949 = vadd.f32 0.0, %v1948
        %1950 = vmatprep.mubr.bf16.mxu0 %v918
        %1951 = vmatmul.mubr.bf16.gmra.mrb[0].mxu0 %v917
        %v1952 = vpop.f32.mrb[0].mxu0
        %v1953 = vadd.f32 0.0, %v1952
        %v1954 = vpop.f32.mrb[0].mxu0
        %v1955 = vadd.f32 0.0, %v1954
        %v1956 = vpop.f32.mrb[0].mxu0
        %v1957 = vadd.f32 0.0, %v1956
        %v1958 = vpop.f32.mrb[0].mxu0
        %v1959 = vadd.f32 0.0, %v1958
        %1960 = vmatprep.mubr.bf16.mxu0 %v920
        %1961 = vmatmul.mubr.bf16.gmra.mrb[0].mxu0 %v919
        %v1962 = vpop.f32.mrb[0].mxu0
        %v1963 = vadd.f32 0.0, %v1962
        %v1964 = vpop.f32.mrb[0].mxu0
        %v1965 = vadd.f32 0.0, %v1964
        %v1966 = vpop.f32.mrb[0].mxu0
        %v1967 = vadd.f32 0.0, %v1966
        %v1968 = vpop.f32.mrb[0].mxu0
        %v1969 = vadd.f32 0.0, %v1968
        %1970 = vmatprep.mubr.bf16.mxu0 %v922
        %1971 = vmatmul.mubr.bf16.gmra.mrb[0].mxu0 %v921
        %v1972 = vpop.f32.mrb[0].mxu0
        %v1973 = vadd.f32 0.0, %v1972
        %v1974 = vpop.f32.mrb[0].mxu0
        %v1975 = vadd.f32 0.0, %v1974
        %v1976 = vpop.f32.mrb[0].mxu0
        %v1977 = vadd.f32 0.0, %v1976
        %v1978 = vpop.f32.mrb[0].mxu0
        %v1979 = vadd.f32 0.0, %v1978
        %1980 = vmatprep.mubr.bf16.mxu0 %v924
        %1981 = vmatmul.mubr.bf16.gmra.mrb[0].mxu0 %v923
        %v1982 = vpop.f32.mrb[0].mxu0
        %v1983 = vadd.f32 0.0, %v1982
        %v1984 = vpop.f32.mrb[0].mxu0
        %v1985 = vadd.f32 0.0, %v1984
        %v1986 = vpop.f32.mrb[0].mxu0
        %v1987 = vadd.f32 0.0, %v1986
        %v1988 = vpop.f32.mrb[0].mxu0
        %v1989 = vadd.f32 0.0, %v1988
        %1990 = vmatprep.mubr.bf16.mxu0 %v926
        %1991 = vmatmul.mubr.bf16.gmra.mrb[0].mxu0 %v925
        %v1992 = vpop.f32.mrb[0].mxu0
        %v1993 = vadd.f32 0.0, %v1992
        %v1994 = vpop.f32.mrb[0].mxu0
        %v1995 = vadd.f32 0.0, %v1994
        %v1996 = vpop.f32.mrb[0].mxu0
        %v1997 = vadd.f32 0.0, %v1996
        %v1998 = vpop.f32.mrb[0].mxu0
        %v1999 = vadd.f32 0.0, %v1998
        %2000 = vmatprep.mubr.bf16.mxu0 %v928
        %2001 = vmatmul.mubr.bf16.gmra.mrb[0].mxu0 %v927
        %v2002 = vpop.f32.mrb[0].mxu0
        %v2003 = vadd.f32 0.0, %v2002
        %v2004 = vpop.f32.mrb[0].mxu0
        %v2005 = vadd.f32 0.0, %v2004
        %v2006 = vpop.f32.mrb[0].mxu0
        %v2007 = vadd.f32 0.0, %v2006
        %v2008 = vpop.f32.mrb[0].mxu0
        %v2009 = vadd.f32 0.0, %v2008
        %2010 = vmatprep.mubr.bf16.mxu0 %v930
        %2011 = vmatmul.mubr.bf16.gmra.mrb[0].mxu0 %v929
        %v2012 = vpop.f32.mrb[0].mxu0
        %v2013 = vadd.f32 0.0, %v2012
        %v2014 = vpop.f32.mrb[0].mxu0
        %v2015 = vadd.f32 0.0, %v2014
        %v2016 = vpop.f32.mrb[0].mxu0
        %v2017 = vadd.f32 0.0, %v2016
        %v2018 = vpop.f32.mrb[0].mxu0
        %v2019 = vadd.f32 0.0, %v2018
        %2020 = vdwg.mxu0
        %v2085 = vunpack.c.l.b16 %v546
        %v2086 = vunpack.c.h.b16 %v546
        %v2087 = vunpack.c.l.b16 %v547
        %v2088 = vunpack.c.h.b16 %v547
        %v2089 = vunpack.c.l.b16 %v548
        %v2090 = vunpack.c.h.b16 %v548
        %v2091 = vunpack.c.l.b16 %v549
        %v2092 = vunpack.c.h.b16 %v549
        %v2093 = vunpack.c.l.b16 %v550
        %v2094 = vunpack.c.h.b16 %v550
        %v2095 = vunpack.c.l.b16 %v551
        %v2096 = vunpack.c.h.b16 %v551
        %v2097 = vunpack.c.l.b16 %v552
        %v2098 = vunpack.c.h.b16 %v552
        %v2099 = vunpack.c.l.b16 %v553
        %v2100 = vunpack.c.h.b16 %v553
        %v2101 = vunpack.c.l.b16 %v554
        %v2102 = vunpack.c.h.b16 %v554
        %v2103 = vunpack.c.l.b16 %v555
        %v2104 = vunpack.c.h.b16 %v555
        %v2105 = vunpack.c.l.b16 %v556
        %v2106 = vunpack.c.h.b16 %v556
        %v2107 = vunpack.c.l.b16 %v557
        %v2108 = vunpack.c.h.b16 %v557
        %v2109 = vunpack.c.l.b16 %v558
        %v2110 = vunpack.c.h.b16 %v558
        %v2111 = vunpack.c.l.b16 %v559
        %v2112 = vunpack.c.h.b16 %v559
        %v2113 = vunpack.c.l.b16 %v560
        %v2114 = vunpack.c.h.b16 %v560
        %v2115 = vunpack.c.l.b16 %v561
        %v2116 = vunpack.c.h.b16 %v561
        %v2117 = vunpack.c.l.b16 %v562
        %v2118 = vunpack.c.h.b16 %v562
        %v2119 = vunpack.c.l.b16 %v563
        %v2120 = vunpack.c.h.b16 %v563
        %v2121 = vunpack.c.l.b16 %v564
        %v2122 = vunpack.c.h.b16 %v564
        %v2123 = vunpack.c.l.b16 %v565
        %v2124 = vunpack.c.h.b16 %v565
        %v2125 = vunpack.c.l.b16 %v566
        %v2126 = vunpack.c.h.b16 %v566
        %v2127 = vunpack.c.l.b16 %v567
        %v2128 = vunpack.c.h.b16 %v567
        %v2129 = vunpack.c.l.b16 %v568
        %v2130 = vunpack.c.h.b16 %v568
        %v2131 = vunpack.c.l.b16 %v569
        %v2132 = vunpack.c.h.b16 %v569
        %v2133 = vunpack.c.l.b16 %v570
        %v2134 = vunpack.c.h.b16 %v570
        %v2135 = vunpack.c.l.b16 %v571
        %v2136 = vunpack.c.h.b16 %v571
        %v2137 = vunpack.c.l.b16 %v572
        %v2138 = vunpack.c.h.b16 %v572
        %v2139 = vunpack.c.l.b16 %v573
        %v2140 = vunpack.c.h.b16 %v573
        %v2141 = vunpack.c.l.b16 %v574
        %v2142 = vunpack.c.h.b16 %v574
        %v2143 = vunpack.c.l.b16 %v575
        %v2144 = vunpack.c.h.b16 %v575
        %v2145 = vunpack.c.l.b16 %v576
        %v2146 = vunpack.c.h.b16 %v576
        %v2147 = vunpack.c.l.b16 %v577
        %v2148 = vunpack.c.h.b16 %v577
        %v2149 = vunpack.c.l.b16 %v578
        %v2150 = vunpack.c.h.b16 %v578
        %v2151 = vunpack.c.l.b16 %v579
        %v2152 = vunpack.c.h.b16 %v579
        %v2153 = vunpack.c.l.b16 %v580
        %v2154 = vunpack.c.h.b16 %v580
        %v2155 = vunpack.c.l.b16 %v581
        %v2156 = vunpack.c.h.b16 %v581
        %v2157 = vunpack.c.l.b16 %v582
        %v2158 = vunpack.c.h.b16 %v582
        %v2159 = vunpack.c.l.b16 %v583
        %v2160 = vunpack.c.h.b16 %v583
        %v2161 = vunpack.c.l.b16 %v584
        %v2162 = vunpack.c.h.b16 %v584
        %v2163 = vunpack.c.l.b16 %v585
        %v2164 = vunpack.c.h.b16 %v585
        %v2165 = vunpack.c.l.b16 %v586
        %v2166 = vunpack.c.h.b16 %v586
        %v2167 = vunpack.c.l.b16 %v587
        %v2168 = vunpack.c.h.b16 %v587
        %v2169 = vunpack.c.l.b16 %v588
        %v2170 = vunpack.c.h.b16 %v588
        %v2171 = vunpack.c.l.b16 %v589
        %v2172 = vunpack.c.h.b16 %v589
        %v2173 = vunpack.c.l.b16 %v590
        %v2174 = vunpack.c.h.b16 %v590
        %v2175 = vunpack.c.l.b16 %v591
        %v2176 = vunpack.c.h.b16 %v591
        %v2177 = vunpack.c.l.b16 %v592
        %v2178 = vunpack.c.h.b16 %v592
        %v2179 = vunpack.c.l.b16 %v593
        %v2180 = vunpack.c.h.b16 %v593
        %v2181 = vunpack.c.l.b16 %v594
        %v2182 = vunpack.c.h.b16 %v594
        %v2183 = vunpack.c.l.b16 %v595
        %v2184 = vunpack.c.h.b16 %v595
        %v2185 = vunpack.c.l.b16 %v596
        %v2186 = vunpack.c.h.b16 %v596
        %v2187 = vunpack.c.l.b16 %v597
        %v2188 = vunpack.c.h.b16 %v597
        %v2189 = vunpack.c.l.b16 %v598
        %v2190 = vunpack.c.h.b16 %v598
        %v2191 = vunpack.c.l.b16 %v599
        %v2192 = vunpack.c.h.b16 %v599
        %v2193 = vunpack.c.l.b16 %v600
        %v2194 = vunpack.c.h.b16 %v600
        %v2195 = vunpack.c.l.b16 %v601
        %v2196 = vunpack.c.h.b16 %v601
        %v2197 = vunpack.c.l.b16 %v602
        %v2198 = vunpack.c.h.b16 %v602
        %v2199 = vunpack.c.l.b16 %v603
        %v2200 = vunpack.c.h.b16 %v603
        %v2201 = vunpack.c.l.b16 %v604
        %v2202 = vunpack.c.h.b16 %v604
        %v2203 = vunpack.c.l.b16 %v605
        %v2204 = vunpack.c.h.b16 %v605
        %v2205 = vunpack.c.l.b16 %v606
        %v2206 = vunpack.c.h.b16 %v606
        %v2207 = vunpack.c.l.b16 %v607
        %v2208 = vunpack.c.h.b16 %v607
        %v2209 = vunpack.c.l.b16 %v608
        %v2210 = vunpack.c.h.b16 %v608
        %v2211 = vunpack.c.l.b16 %v609
        %v2212 = vunpack.c.h.b16 %v609
        %v2213 = vpack.c.b16 %v2087, %v2085
        %v2214 = vpack.c.b16 %v2088, %v2086
        %v2215 = vpack.c.b16 %v2091, %v2089
        %v2216 = vpack.c.b16 %v2092, %v2090
        %v2217 = vpack.c.b16 %v2095, %v2093
        %v2218 = vpack.c.b16 %v2096, %v2094
        %v2219 = vpack.c.b16 %v2099, %v2097
        %v2220 = vpack.c.b16 %v2100, %v2098
        %v2221 = vpack.c.b16 %v2103, %v2101
        %v2222 = vpack.c.b16 %v2104, %v2102
        %v2223 = vpack.c.b16 %v2107, %v2105
        %v2224 = vpack.c.b16 %v2108, %v2106
        %v2225 = vpack.c.b16 %v2111, %v2109
        %v2226 = vpack.c.b16 %v2112, %v2110
        %v2227 = vpack.c.b16 %v2115, %v2113
        %v2228 = vpack.c.b16 %v2116, %v2114
        %v2229 = vpack.c.b16 %v2119, %v2117
        %v2230 = vpack.c.b16 %v2120, %v2118
        %v2231 = vpack.c.b16 %v2123, %v2121
        %v2232 = vpack.c.b16 %v2124, %v2122
        %v2233 = vpack.c.b16 %v2127, %v2125
        %v2234 = vpack.c.b16 %v2128, %v2126
        %v2235 = vpack.c.b16 %v2131, %v2129
        %v2236 = vpack.c.b16 %v2132, %v2130
        %v2237 = vpack.c.b16 %v2135, %v2133
        %v2238 = vpack.c.b16 %v2136, %v2134
        %v2239 = vpack.c.b16 %v2139, %v2137
        %v2240 = vpack.c.b16 %v2140, %v2138
        %v2241 = vpack.c.b16 %v2143, %v2141
        %v2242 = vpack.c.b16 %v2144, %v2142
        %v2243 = vpack.c.b16 %v2147, %v2145
        %v2244 = vpack.c.b16 %v2148, %v2146
        %v2245 = vpack.c.b16 %v2151, %v2149
        %v2246 = vpack.c.b16 %v2152, %v2150
        %v2247 = vpack.c.b16 %v2155, %v2153
        %v2248 = vpack.c.b16 %v2156, %v2154
        %v2249 = vpack.c.b16 %v2159, %v2157
        %v2250 = vpack.c.b16 %v2160, %v2158
        %v2251 = vpack.c.b16 %v2163, %v2161
        %v2252 = vpack.c.b16 %v2164, %v2162
        %v2253 = vpack.c.b16 %v2167, %v2165
        %v2254 = vpack.c.b16 %v2168, %v2166
        %v2255 = vpack.c.b16 %v2171, %v2169
        %v2256 = vpack.c.b16 %v2172, %v2170
        %v2257 = vpack.c.b16 %v2175, %v2173
        %v2258 = vpack.c.b16 %v2176, %v2174
        %v2259 = vpack.c.b16 %v2179, %v2177
        %v2260 = vpack.c.b16 %v2180, %v2178
        %v2261 = vpack.c.b16 %v2183, %v2181
        %v2262 = vpack.c.b16 %v2184, %v2182
        %v2263 = vpack.c.b16 %v2187, %v2185
        %v2264 = vpack.c.b16 %v2188, %v2186
        %v2265 = vpack.c.b16 %v2191, %v2189
        %v2266 = vpack.c.b16 %v2192, %v2190
        %v2267 = vpack.c.b16 %v2195, %v2193
        %v2268 = vpack.c.b16 %v2196, %v2194
        %v2269 = vpack.c.b16 %v2199, %v2197
        %v2270 = vpack.c.b16 %v2200, %v2198
        %v2271 = vpack.c.b16 %v2203, %v2201
        %v2272 = vpack.c.b16 %v2204, %v2202
        %v2273 = vpack.c.b16 %v2207, %v2205
        %v2274 = vpack.c.b16 %v2208, %v2206
        %v2275 = vpack.c.b16 %v2211, %v2209
        %v2276 = vpack.c.b16 %v2212, %v2210
        %2341 = vmatprep.subr.bf16.mxu0 %v1188
        %2342 = vmatpush1.bf16.msra.mxu0 %v1187
        %2343 = vmatprep.subr.bf16.mxu0 %v1192
        %2344 = vmatpush1.bf16.msra.mxu0 %v1191
        %2345 = vmatprep.subr.bf16.mxu0 %v1196
        %2346 = vmatpush1.bf16.msra.mxu0 %v1195
        %2347 = vmatprep.subr.bf16.mxu0 %v1200
        %2348 = vmatpush1.bf16.msra.mxu0 %v1199
        %2349 = vmatprep.subr.bf16.mxu0 %v1204
        %2350 = vmatpush1.bf16.msra.mxu0 %v1203
        %2351 = vmatprep.subr.bf16.mxu0 %v1208
        %2352 = vmatpush1.bf16.msra.mxu0 %v1207
        %2353 = vmatprep.subr.bf16.mxu0 %v1212
        %2354 = vmatpush1.bf16.msra.mxu0 %v1211
        %2355 = vmatprep.subr.bf16.mxu0 %v1216
        %2356 = vmatpush1.bf16.msra.mxu0 %v1215
        %2357 = vmatprep.subr.bf16.mxu0 %v1220
        %2358 = vmatpush1.bf16.msra.mxu0 %v1219
        %2359 = vmatprep.subr.bf16.mxu0 %v1224
        %2360 = vmatpush1.bf16.msra.mxu0 %v1223
        %2361 = vmatprep.subr.bf16.mxu0 %v1228
        %2362 = vmatpush1.bf16.msra.mxu0 %v1227
        %2363 = vmatprep.subr.bf16.mxu0 %v1232
        %2364 = vmatpush1.bf16.msra.mxu0 %v1231
        %2365 = vmatprep.subr.bf16.mxu0 %v1236
        %2366 = vmatpush1.bf16.msra.mxu0 %v1235
        %2367 = vmatprep.subr.bf16.mxu0 %v1240
        %2368 = vmatpush1.bf16.msra.mxu0 %v1239
        %2369 = vmatprep.subr.bf16.mxu0 %v1244
        %2370 = vmatpush1.bf16.msra.mxu0 %v1243
        %2371 = vmatprep.subr.bf16.mxu0 %v1248
        %2372 = vmatpush1.bf16.msra.mxu0 %v1247
        %2373 = vmatprep.mubr.bf16.mxu0 %v2214
        %2374 = vmatmul.mubr.bf16.gmra.mrb[0].mxu0 %v2213
        %v2375 = vpop.f32.mrb[0].mxu0
        %v2376 = vadd.f32 %v1350, %v2375
        %v2377 = vpop.f32.mrb[0].mxu0
        %v2378 = vadd.f32 %v1352, %v2377
        %v2379 = vpop.f32.mrb[0].mxu0
        %v2380 = vadd.f32 %v1354, %v2379
        %v2381 = vpop.f32.mrb[0].mxu0
        %v2382 = vadd.f32 %v1356, %v2381
        %2383 = vmatprep.mubr.bf16.mxu0 %v2216
        %2384 = vmatmul.mubr.bf16.gmra.mrb[0].mxu0 %v2215
        %v2385 = vpop.f32.mrb[0].mxu0
        %v2386 = vadd.f32 %v1360, %v2385
        %v2387 = vpop.f32.mrb[0].mxu0
        %v2388 = vadd.f32 %v1362, %v2387
        %v2389 = vpop.f32.mrb[0].mxu0
        %v2390 = vadd.f32 %v1364, %v2389
        %v2391 = vpop.f32.mrb[0].mxu0
        %v2392 = vadd.f32 %v1366, %v2391
        %2393 = vmatprep.mubr.bf16.mxu0 %v2218
        %2394 = vmatmul.mubr.bf16.gmra.mrb[0].mxu0 %v2217
        %v2395 = vpop.f32.mrb[0].mxu0
        %v2396 = vadd.f32 %v1370, %v2395
        %v2397 = vpop.f32.mrb[0].mxu0
        %v2398 = vadd.f32 %v1372, %v2397
        %v2399 = vpop.f32.mrb[0].mxu0
        %v2400 = vadd.f32 %v1374, %v2399
        %v2401 = vpop.f32.mrb[0].mxu0
        %v2402 = vadd.f32 %v1376, %v2401
        %2403 = vmatprep.mubr.bf16.mxu0 %v2220
        %2404 = vmatmul.mubr.bf16.gmra.mrb[0].mxu0 %v2219
        %v2405 = vpop.f32.mrb[0].mxu0
        %v2406 = vadd.f32 %v1380, %v2405
        %v2407 = vpop.f32.mrb[0].mxu0
        %v2408 = vadd.f32 %v1382, %v2407
        %v2409 = vpop.f32.mrb[0].mxu0
        %v2410 = vadd.f32 %v1384, %v2409
        %v2411 = vpop.f32.mrb[0].mxu0
        %v2412 = vadd.f32 %v1386, %v2411
        %2413 = vmatprep.mubr.bf16.mxu0 %v2222
        %2414 = vmatmul.mubr.bf16.gmra.mrb[0].mxu0 %v2221
        %v2415 = vpop.f32.mrb[0].mxu0
        %v2416 = vadd.f32 %v1390, %v2415
        %v2417 = vpop.f32.mrb[0].mxu0
        %v2418 = vadd.f32 %v1392, %v2417
        %v2419 = vpop.f32.mrb[0].mxu0
        %v2420 = vadd.f32 %v1394, %v2419
        %v2421 = vpop.f32.mrb[0].mxu0
        %v2422 = vadd.f32 %v1396, %v2421
        %2423 = vmatprep.mubr.bf16.mxu0 %v2224
        %2424 = vmatmul.mubr.bf16.gmra.mrb[0].mxu0 %v2223
        %v2425 = vpop.f32.mrb[0].mxu0
        %v2426 = vadd.f32 %v1400, %v2425
        %v2427 = vpop.f32.mrb[0].mxu0
        %v2428 = vadd.f32 %v1402, %v2427
        %v2429 = vpop.f32.mrb[0].mxu0
        %v2430 = vadd.f32 %v1404, %v2429
        %v2431 = vpop.f32.mrb[0].mxu0
        %v2432 = vadd.f32 %v1406, %v2431
        %2433 = vmatprep.mubr.bf16.mxu0 %v2226
        %2434 = vmatmul.mubr.bf16.gmra.mrb[0].mxu0 %v2225
        %v2435 = vpop.f32.mrb[0].mxu0
        %v2436 = vadd.f32 %v1410, %v2435
        %v2437 = vpop.f32.mrb[0].mxu0
        %v2438 = vadd.f32 %v1412, %v2437
        %v2439 = vpop.f32.mrb[0].mxu0
        %v2440 = vadd.f32 %v1414, %v2439
        %v2441 = vpop.f32.mrb[0].mxu0
        %v2442 = vadd.f32 %v1416, %v2441
        %2443 = vmatprep.mubr.bf16.mxu0 %v2228
        %2444 = vmatmul.mubr.bf16.gmra.mrb[0].mxu0 %v2227
        %v2445 = vpop.f32.mrb[0].mxu0
        %v2446 = vadd.f32 %v1420, %v2445
        %v2447 = vpop.f32.mrb[0].mxu0
        %v2448 = vadd.f32 %v1422, %v2447
        %v2449 = vpop.f32.mrb[0].mxu0
        %v2450 = vadd.f32 %v1424, %v2449
        %v2451 = vpop.f32.mrb[0].mxu0
        %v2452 = vadd.f32 %v1426, %v2451
        %2453 = vmatprep.mubr.bf16.mxu0 %v2230
        %2454 = vmatmul.mubr.bf16.gmra.mrb[0].mxu0 %v2229
        %v2455 = vpop.f32.mrb[0].mxu0
        %v2456 = vadd.f32 %v1430, %v2455
        %v2457 = vpop.f32.mrb[0].mxu0
        %v2458 = vadd.f32 %v1432, %v2457
        %v2459 = vpop.f32.mrb[0].mxu0
        %v2460 = vadd.f32 %v1434, %v2459
        %v2461 = vpop.f32.mrb[0].mxu0
        %v2462 = vadd.f32 %v1436, %v2461
        %2463 = vmatprep.mubr.bf16.mxu0 %v2232
        %2464 = vmatmul.mubr.bf16.gmra.mrb[0].mxu0 %v2231
        %v2465 = vpop.f32.mrb[0].mxu0
        %v2466 = vadd.f32 %v1440, %v2465
        %v2467 = vpop.f32.mrb[0].mxu0
        %v2468 = vadd.f32 %v1442, %v2467
        %v2469 = vpop.f32.mrb[0].mxu0
        %v2470 = vadd.f32 %v1444, %v2469
        %v2471 = vpop.f32.mrb[0].mxu0
        %v2472 = vadd.f32 %v1446, %v2471
        %2473 = vmatprep.mubr.bf16.mxu0 %v2234
        %2474 = vmatmul.mubr.bf16.gmra.mrb[0].mxu0 %v2233
        %v2475 = vpop.f32.mrb[0].mxu0
        %v2476 = vadd.f32 %v1450, %v2475
        %v2477 = vpop.f32.mrb[0].mxu0
        %v2478 = vadd.f32 %v1452, %v2477
        %v2479 = vpop.f32.mrb[0].mxu0
        %v2480 = vadd.f32 %v1454, %v2479
        %v2481 = vpop.f32.mrb[0].mxu0
        %v2482 = vadd.f32 %v1456, %v2481
        %2483 = vmatprep.mubr.bf16.mxu0 %v2236
        %2484 = vmatmul.mubr.bf16.gmra.mrb[0].mxu0 %v2235
        %v2485 = vpop.f32.mrb[0].mxu0
        %v2486 = vadd.f32 %v1460, %v2485
        %v2487 = vpop.f32.mrb[0].mxu0
        %v2488 = vadd.f32 %v1462, %v2487
        %v2489 = vpop.f32.mrb[0].mxu0
        %v2490 = vadd.f32 %v1464, %v2489
        %v2491 = vpop.f32.mrb[0].mxu0
        %v2492 = vadd.f32 %v1466, %v2491
        %2493 = vmatprep.mubr.bf16.mxu0 %v2238
        %2494 = vmatmul.mubr.bf16.gmra.mrb[0].mxu0 %v2237
        %v2495 = vpop.f32.mrb[0].mxu0
        %v2496 = vadd.f32 %v1470, %v2495
        %v2497 = vpop.f32.mrb[0].mxu0
        %v2498 = vadd.f32 %v1472, %v2497
        %v2499 = vpop.f32.mrb[0].mxu0
        %v2500 = vadd.f32 %v1474, %v2499
        %v2501 = vpop.f32.mrb[0].mxu0
        %v2502 = vadd.f32 %v1476, %v2501
        %2503 = vmatprep.mubr.bf16.mxu0 %v2240
        %2504 = vmatmul.mubr.bf16.gmra.mrb[0].mxu0 %v2239
        %v2505 = vpop.f32.mrb[0].mxu0
        %v2506 = vadd.f32 %v1480, %v2505
        %v2507 = vpop.f32.mrb[0].mxu0
        %v2508 = vadd.f32 %v1482, %v2507
        %v2509 = vpop.f32.mrb[0].mxu0
        %v2510 = vadd.f32 %v1484, %v2509
        %v2511 = vpop.f32.mrb[0].mxu0
        %v2512 = vadd.f32 %v1486, %v2511
        %2513 = vmatprep.mubr.bf16.mxu0 %v2242
        %2514 = vmatmul.mubr.bf16.gmra.mrb[0].mxu0 %v2241
        %v2515 = vpop.f32.mrb[0].mxu0
        %v2516 = vadd.f32 %v1490, %v2515
        %v2517 = vpop.f32.mrb[0].mxu0
        %v2518 = vadd.f32 %v1492, %v2517
        %v2519 = vpop.f32.mrb[0].mxu0
        %v2520 = vadd.f32 %v1494, %v2519
        %v2521 = vpop.f32.mrb[0].mxu0
        %v2522 = vadd.f32 %v1496, %v2521
        %2523 = vmatprep.mubr.bf16.mxu0 %v2244
        %2524 = vmatmul.mubr.bf16.gmra.mrb[0].mxu0 %v2243
        %v2525 = vpop.f32.mrb[0].mxu0
        %v2526 = vadd.f32 %v1500, %v2525
        %v2527 = vpop.f32.mrb[0].mxu0
        %v2528 = vadd.f32 %v1502, %v2527
        %v2529 = vpop.f32.mrb[0].mxu0
        %v2530 = vadd.f32 %v1504, %v2529
        %v2531 = vpop.f32.mrb[0].mxu0
        %v2532 = vadd.f32 %v1506, %v2531
        %2533 = vmatprep.mubr.bf16.mxu0 %v2246
        %2534 = vmatmul.mubr.bf16.gmra.mrb[0].mxu0 %v2245
        %v2535 = vpop.f32.mrb[0].mxu0
        %v2536 = vadd.f32 %v1510, %v2535
        %v2537 = vpop.f32.mrb[0].mxu0
        %v2538 = vadd.f32 %v1512, %v2537
        %v2539 = vpop.f32.mrb[0].mxu0
        %v2540 = vadd.f32 %v1514, %v2539
        %v2541 = vpop.f32.mrb[0].mxu0
        %v2542 = vadd.f32 %v1516, %v2541
        %2543 = vmatprep.mubr.bf16.mxu0 %v2248
        %2544 = vmatmul.mubr.bf16.gmra.mrb[0].mxu0 %v2247
        %v2545 = vpop.f32.mrb[0].mxu0
        %v2546 = vadd.f32 %v1520, %v2545
        %v2547 = vpop.f32.mrb[0].mxu0
        %v2548 = vadd.f32 %v1522, %v2547
        %v2549 = vpop.f32.mrb[0].mxu0
        %v2550 = vadd.f32 %v1524, %v2549
        %v2551 = vpop.f32.mrb[0].mxu0
        %v2552 = vadd.f32 %v1526, %v2551
        %2553 = vmatprep.mubr.bf16.mxu0 %v2250
        %2554 = vmatmul.mubr.bf16.gmra.mrb[0].mxu0 %v2249
        %v2555 = vpop.f32.mrb[0].mxu0
        %v2556 = vadd.f32 %v1530, %v2555
        %v2557 = vpop.f32.mrb[0].mxu0
        %v2558 = vadd.f32 %v1532, %v2557
        %v2559 = vpop.f32.mrb[0].mxu0
        %v2560 = vadd.f32 %v1534, %v2559
        %v2561 = vpop.f32.mrb[0].mxu0
        %v2562 = vadd.f32 %v1536, %v2561
        %2563 = vmatprep.mubr.bf16.mxu0 %v2252
        %2564 = vmatmul.mubr.bf16.gmra.mrb[0].mxu0 %v2251
        %v2565 = vpop.f32.mrb[0].mxu0
        %v2566 = vadd.f32 %v1540, %v2565
        %v2567 = vpop.f32.mrb[0].mxu0
        %v2568 = vadd.f32 %v1542, %v2567
        %v2569 = vpop.f32.mrb[0].mxu0
        %v2570 = vadd.f32 %v1544, %v2569
        %v2571 = vpop.f32.mrb[0].mxu0
        %v2572 = vadd.f32 %v1546, %v2571
        %2573 = vmatprep.mubr.bf16.mxu0 %v2254
        %2574 = vmatmul.mubr.bf16.gmra.mrb[0].mxu0 %v2253
        %v2575 = vpop.f32.mrb[0].mxu0
        %v2576 = vadd.f32 %v1550, %v2575
        %v2577 = vpop.f32.mrb[0].mxu0
        %v2578 = vadd.f32 %v1552, %v2577
        %v2579 = vpop.f32.mrb[0].mxu0
        %v2580 = vadd.f32 %v1554, %v2579
        %v2581 = vpop.f32.mrb[0].mxu0
        %v2582 = vadd.f32 %v1556, %v2581
        %2583 = vmatprep.mubr.bf16.mxu0 %v2256
        %2584 = vmatmul.mubr.bf16.gmra.mrb[0].mxu0 %v2255
        %v2585 = vpop.f32.mrb[0].mxu0
        %v2586 = vadd.f32 %v1560, %v2585
        %v2587 = vpop.f32.mrb[0].mxu0
        %v2588 = vadd.f32 %v1562, %v2587
        %v2589 = vpop.f32.mrb[0].mxu0
        %v2590 = vadd.f32 %v1564, %v2589
        %v2591 = vpop.f32.mrb[0].mxu0
        %v2592 = vadd.f32 %v1566, %v2591
        %2593 = vmatprep.mubr.bf16.mxu0 %v2258
        %2594 = vmatmul.mubr.bf16.gmra.mrb[0].mxu0 %v2257
        %v2595 = vpop.f32.mrb[0].mxu0
        %v2596 = vadd.f32 %v1570, %v2595
        %v2597 = vpop.f32.mrb[0].mxu0
        %v2598 = vadd.f32 %v1572, %v2597
        %v2599 = vpop.f32.mrb[0].mxu0
        %v2600 = vadd.f32 %v1574, %v2599
        %v2601 = vpop.f32.mrb[0].mxu0
        %v2602 = vadd.f32 %v1576, %v2601
        %2603 = vmatprep.mubr.bf16.mxu0 %v2260
        %2604 = vmatmul.mubr.bf16.gmra.mrb[0].mxu0 %v2259
        %v2605 = vpop.f32.mrb[0].mxu0
        %v2606 = vadd.f32 %v1580, %v2605
        %v2607 = vpop.f32.mrb[0].mxu0
        %v2608 = vadd.f32 %v1582, %v2607
        %v2609 = vpop.f32.mrb[0].mxu0
        %v2610 = vadd.f32 %v1584, %v2609
        %v2611 = vpop.f32.mrb[0].mxu0
        %v2612 = vadd.f32 %v1586, %v2611
        %2613 = vmatprep.mubr.bf16.mxu0 %v2262
        %2614 = vmatmul.mubr.bf16.gmra.mrb[0].mxu0 %v2261
        %v2615 = vpop.f32.mrb[0].mxu0
        %v2616 = vadd.f32 %v1590, %v2615
        %v2617 = vpop.f32.mrb[0].mxu0
        %v2618 = vadd.f32 %v1592, %v2617
        %v2619 = vpop.f32.mrb[0].mxu0
        %v2620 = vadd.f32 %v1594, %v2619
        %v2621 = vpop.f32.mrb[0].mxu0
        %v2622 = vadd.f32 %v1596, %v2621
        %2623 = vmatprep.mubr.bf16.mxu0 %v2264
        %2624 = vmatmul.mubr.bf16.gmra.mrb[0].mxu0 %v2263
        %v2625 = vpop.f32.mrb[0].mxu0
        %v2626 = vadd.f32 %v1600, %v2625
        %v2627 = vpop.f32.mrb[0].mxu0
        %v2628 = vadd.f32 %v1602, %v2627
        %v2629 = vpop.f32.mrb[0].mxu0
        %v2630 = vadd.f32 %v1604, %v2629
        %v2631 = vpop.f32.mrb[0].mxu0
        %v2632 = vadd.f32 %v1606, %v2631
        %2633 = vmatprep.mubr.bf16.mxu0 %v2266
        %2634 = vmatmul.mubr.bf16.gmra.mrb[0].mxu0 %v2265
        %v2635 = vpop.f32.mrb[0].mxu0
        %v2636 = vadd.f32 %v1610, %v2635
        %v2637 = vpop.f32.mrb[0].mxu0
        %v2638 = vadd.f32 %v1612, %v2637
        %v2639 = vpop.f32.mrb[0].mxu0
        %v2640 = vadd.f32 %v1614, %v2639
        %v2641 = vpop.f32.mrb[0].mxu0
        %v2642 = vadd.f32 %v1616, %v2641
        %2643 = vmatprep.mubr.bf16.mxu0 %v2268
        %2644 = vmatmul.mubr.bf16.gmra.mrb[0].mxu0 %v2267
        %v2645 = vpop.f32.mrb[0].mxu0
        %v2646 = vadd.f32 %v1620, %v2645
        %v2647 = vpop.f32.mrb[0].mxu0
        %v2648 = vadd.f32 %v1622, %v2647
        %v2649 = vpop.f32.mrb[0].mxu0
        %v2650 = vadd.f32 %v1624, %v2649
        %v2651 = vpop.f32.mrb[0].mxu0
        %v2652 = vadd.f32 %v1626, %v2651
        %2653 = vmatprep.mubr.bf16.mxu0 %v2270
        %2654 = vmatmul.mubr.bf16.gmra.mrb[0].mxu0 %v2269
        %v2655 = vpop.f32.mrb[0].mxu0
        %v2656 = vadd.f32 %v1630, %v2655
        %v2657 = vpop.f32.mrb[0].mxu0
        %v2658 = vadd.f32 %v1632, %v2657
        %v2659 = vpop.f32.mrb[0].mxu0
        %v2660 = vadd.f32 %v1634, %v2659
        %v2661 = vpop.f32.mrb[0].mxu0
        %v2662 = vadd.f32 %v1636, %v2661
        %2663 = vmatprep.mubr.bf16.mxu0 %v2272
        %2664 = vmatmul.mubr.bf16.gmra.mrb[0].mxu0 %v2271
        %v2665 = vpop.f32.mrb[0].mxu0
        %v2666 = vadd.f32 %v1640, %v2665
        %v2667 = vpop.f32.mrb[0].mxu0
        %v2668 = vadd.f32 %v1642, %v2667
        %v2669 = vpop.f32.mrb[0].mxu0
        %v2670 = vadd.f32 %v1644, %v2669
        %v2671 = vpop.f32.mrb[0].mxu0
        %v2672 = vadd.f32 %v1646, %v2671
        %2673 = vmatprep.mubr.bf16.mxu0 %v2274
        %2674 = vmatmul.mubr.bf16.gmra.mrb[0].mxu0 %v2273
        %v2675 = vpop.f32.mrb[0].mxu0
        %v2676 = vadd.f32 %v1650, %v2675
        %v2677 = vpop.f32.mrb[0].mxu0
        %v2678 = vadd.f32 %v1652, %v2677
        %v2679 = vpop.f32.mrb[0].mxu0
        %v2680 = vadd.f32 %v1654, %v2679
        %v2681 = vpop.f32.mrb[0].mxu0
        %v2682 = vadd.f32 %v1656, %v2681
        %2683 = vmatprep.mubr.bf16.mxu0 %v2276
        %2684 = vmatmul.mubr.bf16.gmra.mrb[0].mxu0 %v2275
        %v2685 = vpop.f32.mrb[0].mxu0
        %v2686 = vadd.f32 %v1660, %v2685
        %v2687 = vpop.f32.mrb[0].mxu0
        %v2688 = vadd.f32 %v1662, %v2687
        %v2689 = vpop.f32.mrb[0].mxu0
        %v2690 = vadd.f32 %v1664, %v2689
        %v2691 = vpop.f32.mrb[0].mxu0
        %v2692 = vadd.f32 %v1666, %v2691
        %2693 = vdwg.mxu0
        %2694 = vmatprep.subr.bf16.mxu0 %v1190
        %2695 = vmatpush1.bf16.msra.mxu0 %v1189
        %2696 = vmatprep.subr.bf16.mxu0 %v1194
        %2697 = vmatpush1.bf16.msra.mxu0 %v1193
        %2698 = vmatprep.subr.bf16.mxu0 %v1198
        %2699 = vmatpush1.bf16.msra.mxu0 %v1197
        %2700 = vmatprep.subr.bf16.mxu0 %v1202
        %2701 = vmatpush1.bf16.msra.mxu0 %v1201
        %2702 = vmatprep.subr.bf16.mxu0 %v1206
        %2703 = vmatpush1.bf16.msra.mxu0 %v1205
        %2704 = vmatprep.subr.bf16.mxu0 %v1210
        %2705 = vmatpush1.bf16.msra.mxu0 %v1209
        %2706 = vmatprep.subr.bf16.mxu0 %v1214
        %2707 = vmatpush1.bf16.msra.mxu0 %v1213
        %2708 = vmatprep.subr.bf16.mxu0 %v1218
        %2709 = vmatpush1.bf16.msra.mxu0 %v1217
        %2710 = vmatprep.subr.bf16.mxu0 %v1222
        %2711 = vmatpush1.bf16.msra.mxu0 %v1221
        %2712 = vmatprep.subr.bf16.mxu0 %v1226
        %2713 = vmatpush1.bf16.msra.mxu0 %v1225
        %2714 = vmatprep.subr.bf16.mxu0 %v1230
        %2715 = vmatpush1.bf16.msra.mxu0 %v1229
        %2716 = vmatprep.subr.bf16.mxu0 %v1234
        %2717 = vmatpush1.bf16.msra.mxu0 %v1233
        %2718 = vmatprep.subr.bf16.mxu0 %v1238
        %2719 = vmatpush1.bf16.msra.mxu0 %v1237
        %2720 = vmatprep.subr.bf16.mxu0 %v1242
        %2721 = vmatpush1.bf16.msra.mxu0 %v1241
        %2722 = vmatprep.subr.bf16.mxu0 %v1246
        %2723 = vmatpush1.bf16.msra.mxu0 %v1245
        %2724 = vmatprep.subr.bf16.mxu0 %v1250
        %2725 = vmatpush1.bf16.msra.mxu0 %v1249
        %2726 = vmatprep.mubr.bf16.mxu0 %v2214
        %2727 = vmatmul.mubr.bf16.gmra.mrb[0].mxu0 %v2213
        %v2728 = vpop.f32.mrb[0].mxu0
        %v2729 = vadd.f32 %v1703, %v2728
        %v2730 = vpop.f32.mrb[0].mxu0
        %v2731 = vadd.f32 %v1705, %v2730
        %v2732 = vpop.f32.mrb[0].mxu0
        %v2733 = vadd.f32 %v1707, %v2732
        %v2734 = vpop.f32.mrb[0].mxu0
        %v2735 = vadd.f32 %v1709, %v2734
        %2736 = vmatprep.mubr.bf16.mxu0 %v2216
        %2737 = vmatmul.mubr.bf16.gmra.mrb[0].mxu0 %v2215
        %v2738 = vpop.f32.mrb[0].mxu0
        %v2739 = vadd.f32 %v1713, %v2738
        %v2740 = vpop.f32.mrb[0].mxu0
        %v2741 = vadd.f32 %v1715, %v2740
        %v2742 = vpop.f32.mrb[0].mxu0
        %v2743 = vadd.f32 %v1717, %v2742
        %v2744 = vpop.f32.mrb[0].mxu0
        %v2745 = vadd.f32 %v1719, %v2744
        %2746 = vmatprep.mubr.bf16.mxu0 %v2218
        %2747 = vmatmul.mubr.bf16.gmra.mrb[0].mxu0 %v2217
        %v2748 = vpop.f32.mrb[0].mxu0
        %v2749 = vadd.f32 %v1723, %v2748
        %v2750 = vpop.f32.mrb[0].mxu0
        %v2751 = vadd.f32 %v1725, %v2750
        %v2752 = vpop.f32.mrb[0].mxu0
        %v2753 = vadd.f32 %v1727, %v2752
        %v2754 = vpop.f32.mrb[0].mxu0
        %v2755 = vadd.f32 %v1729, %v2754
        %2756 = vmatprep.mubr.bf16.mxu0 %v2220
        %2757 = vmatmul.mubr.bf16.gmra.mrb[0].mxu0 %v2219
        %v2758 = vpop.f32.mrb[0].mxu0
        %v2759 = vadd.f32 %v1733, %v2758
        %v2760 = vpop.f32.mrb[0].mxu0
        %v2761 = vadd.f32 %v1735, %v2760
        %v2762 = vpop.f32.mrb[0].mxu0
        %v2763 = vadd.f32 %v1737, %v2762
        %v2764 = vpop.f32.mrb[0].mxu0
        %v2765 = vadd.f32 %v1739, %v2764
        %2766 = vmatprep.mubr.bf16.mxu0 %v2222
        %2767 = vmatmul.mubr.bf16.gmra.mrb[0].mxu0 %v2221
        %v2768 = vpop.f32.mrb[0].mxu0
        %v2769 = vadd.f32 %v1743, %v2768
        %v2770 = vpop.f32.mrb[0].mxu0
        %v2771 = vadd.f32 %v1745, %v2770
        %v2772 = vpop.f32.mrb[0].mxu0
        %v2773 = vadd.f32 %v1747, %v2772
        %v2774 = vpop.f32.mrb[0].mxu0
        %v2775 = vadd.f32 %v1749, %v2774
        %2776 = vmatprep.mubr.bf16.mxu0 %v2224
        %2777 = vmatmul.mubr.bf16.gmra.mrb[0].mxu0 %v2223
        %v2778 = vpop.f32.mrb[0].mxu0
        %v2779 = vadd.f32 %v1753, %v2778
        %v2780 = vpop.f32.mrb[0].mxu0
        %v2781 = vadd.f32 %v1755, %v2780
        %v2782 = vpop.f32.mrb[0].mxu0
        %v2783 = vadd.f32 %v1757, %v2782
        %v2784 = vpop.f32.mrb[0].mxu0
        %v2785 = vadd.f32 %v1759, %v2784
        %2786 = vmatprep.mubr.bf16.mxu0 %v2226
        %2787 = vmatmul.mubr.bf16.gmra.mrb[0].mxu0 %v2225
        %v2788 = vpop.f32.mrb[0].mxu0
        %v2789 = vadd.f32 %v1763, %v2788
        %v2790 = vpop.f32.mrb[0].mxu0
        %v2791 = vadd.f32 %v1765, %v2790
        %v2792 = vpop.f32.mrb[0].mxu0
        %v2793 = vadd.f32 %v1767, %v2792
        %v2794 = vpop.f32.mrb[0].mxu0
        %v2795 = vadd.f32 %v1769, %v2794
        %2796 = vmatprep.mubr.bf16.mxu0 %v2228
        %2797 = vmatmul.mubr.bf16.gmra.mrb[0].mxu0 %v2227
        %v2798 = vpop.f32.mrb[0].mxu0
        %v2799 = vadd.f32 %v1773, %v2798
        %v2800 = vpop.f32.mrb[0].mxu0
        %v2801 = vadd.f32 %v1775, %v2800
        %v2802 = vpop.f32.mrb[0].mxu0
        %v2803 = vadd.f32 %v1777, %v2802
        %v2804 = vpop.f32.mrb[0].mxu0
        %v2805 = vadd.f32 %v1779, %v2804
        %2806 = vmatprep.mubr.bf16.mxu0 %v2230
        %2807 = vmatmul.mubr.bf16.gmra.mrb[0].mxu0 %v2229
        %v2808 = vpop.f32.mrb[0].mxu0
        %v2809 = vadd.f32 %v1783, %v2808
        %v2810 = vpop.f32.mrb[0].mxu0
        %v2811 = vadd.f32 %v1785, %v2810
        %v2812 = vpop.f32.mrb[0].mxu0
        %v2813 = vadd.f32 %v1787, %v2812
        %v2814 = vpop.f32.mrb[0].mxu0
        %v2815 = vadd.f32 %v1789, %v2814
        %2816 = vmatprep.mubr.bf16.mxu0 %v2232
        %2817 = vmatmul.mubr.bf16.gmra.mrb[0].mxu0 %v2231
        %v2818 = vpop.f32.mrb[0].mxu0
        %v2819 = vadd.f32 %v1793, %v2818
        %v2820 = vpop.f32.mrb[0].mxu0
        %v2821 = vadd.f32 %v1795, %v2820
        %v2822 = vpop.f32.mrb[0].mxu0
        %v2823 = vadd.f32 %v1797, %v2822
        %v2824 = vpop.f32.mrb[0].mxu0
        %v2825 = vadd.f32 %v1799, %v2824
        %2826 = vmatprep.mubr.bf16.mxu0 %v2234
        %2827 = vmatmul.mubr.bf16.gmra.mrb[0].mxu0 %v2233
        %v2828 = vpop.f32.mrb[0].mxu0
        %v2829 = vadd.f32 %v1803, %v2828
        %v2830 = vpop.f32.mrb[0].mxu0
        %v2831 = vadd.f32 %v1805, %v2830
        %v2832 = vpop.f32.mrb[0].mxu0
        %v2833 = vadd.f32 %v1807, %v2832
        %v2834 = vpop.f32.mrb[0].mxu0
        %v2835 = vadd.f32 %v1809, %v2834
        %2836 = vmatprep.mubr.bf16.mxu0 %v2236
        %2837 = vmatmul.mubr.bf16.gmra.mrb[0].mxu0 %v2235
        %v2838 = vpop.f32.mrb[0].mxu0
        %v2839 = vadd.f32 %v1813, %v2838
        %v2840 = vpop.f32.mrb[0].mxu0
        %v2841 = vadd.f32 %v1815, %v2840
        %v2842 = vpop.f32.mrb[0].mxu0
        %v2843 = vadd.f32 %v1817, %v2842
        %v2844 = vpop.f32.mrb[0].mxu0
        %v2845 = vadd.f32 %v1819, %v2844
        %2846 = vmatprep.mubr.bf16.mxu0 %v2238
        %2847 = vmatmul.mubr.bf16.gmra.mrb[0].mxu0 %v2237
        %v2848 = vpop.f32.mrb[0].mxu0
        %v2849 = vadd.f32 %v1823, %v2848
        %v2850 = vpop.f32.mrb[0].mxu0
        %v2851 = vadd.f32 %v1825, %v2850
        %v2852 = vpop.f32.mrb[0].mxu0
        %v2853 = vadd.f32 %v1827, %v2852
        %v2854 = vpop.f32.mrb[0].mxu0
        %v2855 = vadd.f32 %v1829, %v2854
        %2856 = vmatprep.mubr.bf16.mxu0 %v2240
        %2857 = vmatmul.mubr.bf16.gmra.mrb[0].mxu0 %v2239
        %v2858 = vpop.f32.mrb[0].mxu0
        %v2859 = vadd.f32 %v1833, %v2858
        %v2860 = vpop.f32.mrb[0].mxu0
        %v2861 = vadd.f32 %v1835, %v2860
        %v2862 = vpop.f32.mrb[0].mxu0
        %v2863 = vadd.f32 %v1837, %v2862
        %v2864 = vpop.f32.mrb[0].mxu0
        %v2865 = vadd.f32 %v1839, %v2864
        %2866 = vmatprep.mubr.bf16.mxu0 %v2242
        %2867 = vmatmul.mubr.bf16.gmra.mrb[0].mxu0 %v2241
        %v2868 = vpop.f32.mrb[0].mxu0
        %v2869 = vadd.f32 %v1843, %v2868
        %v2870 = vpop.f32.mrb[0].mxu0
        %v2871 = vadd.f32 %v1845, %v2870
        %v2872 = vpop.f32.mrb[0].mxu0
        %v2873 = vadd.f32 %v1847, %v2872
        %v2874 = vpop.f32.mrb[0].mxu0
        %v2875 = vadd.f32 %v1849, %v2874
        %2876 = vmatprep.mubr.bf16.mxu0 %v2244
        %2877 = vmatmul.mubr.bf16.gmra.mrb[0].mxu0 %v2243
        %v2878 = vpop.f32.mrb[0].mxu0
        %v2879 = vadd.f32 %v1853, %v2878
        %v2880 = vpop.f32.mrb[0].mxu0
        %v2881 = vadd.f32 %v1855, %v2880
        %v2882 = vpop.f32.mrb[0].mxu0
        %v2883 = vadd.f32 %v1857, %v2882
        %v2884 = vpop.f32.mrb[0].mxu0
        %v2885 = vadd.f32 %v1859, %v2884
        %2886 = vmatprep.mubr.bf16.mxu0 %v2246
        %2887 = vmatmul.mubr.bf16.gmra.mrb[0].mxu0 %v2245
        %v2888 = vpop.f32.mrb[0].mxu0
        %v2889 = vadd.f32 %v1863, %v2888
        %v2890 = vpop.f32.mrb[0].mxu0
        %v2891 = vadd.f32 %v1865, %v2890
        %v2892 = vpop.f32.mrb[0].mxu0
        %v2893 = vadd.f32 %v1867, %v2892
        %v2894 = vpop.f32.mrb[0].mxu0
        %v2895 = vadd.f32 %v1869, %v2894
        %2896 = vmatprep.mubr.bf16.mxu0 %v2248
        %2897 = vmatmul.mubr.bf16.gmra.mrb[0].mxu0 %v2247
        %v2898 = vpop.f32.mrb[0].mxu0
        %v2899 = vadd.f32 %v1873, %v2898
        %v2900 = vpop.f32.mrb[0].mxu0
        %v2901 = vadd.f32 %v1875, %v2900
        %v2902 = vpop.f32.mrb[0].mxu0
        %v2903 = vadd.f32 %v1877, %v2902
        %v2904 = vpop.f32.mrb[0].mxu0
        %v2905 = vadd.f32 %v1879, %v2904
        %2906 = vmatprep.mubr.bf16.mxu0 %v2250
        %2907 = vmatmul.mubr.bf16.gmra.mrb[0].mxu0 %v2249
        %v2908 = vpop.f32.mrb[0].mxu0
        %v2909 = vadd.f32 %v1883, %v2908
        %v2910 = vpop.f32.mrb[0].mxu0
        %v2911 = vadd.f32 %v1885, %v2910
        %v2912 = vpop.f32.mrb[0].mxu0
        %v2913 = vadd.f32 %v1887, %v2912
        %v2914 = vpop.f32.mrb[0].mxu0
        %v2915 = vadd.f32 %v1889, %v2914
        %2916 = vmatprep.mubr.bf16.mxu0 %v2252
        %2917 = vmatmul.mubr.bf16.gmra.mrb[0].mxu0 %v2251
        %v2918 = vpop.f32.mrb[0].mxu0
        %v2919 = vadd.f32 %v1893, %v2918
        %v2920 = vpop.f32.mrb[0].mxu0
        %v2921 = vadd.f32 %v1895, %v2920
        %v2922 = vpop.f32.mrb[0].mxu0
        %v2923 = vadd.f32 %v1897, %v2922
        %v2924 = vpop.f32.mrb[0].mxu0
        %v2925 = vadd.f32 %v1899, %v2924
        %2926 = vmatprep.mubr.bf16.mxu0 %v2254
        %2927 = vmatmul.mubr.bf16.gmra.mrb[0].mxu0 %v2253
        %v2928 = vpop.f32.mrb[0].mxu0
        %v2929 = vadd.f32 %v1903, %v2928
        %v2930 = vpop.f32.mrb[0].mxu0
        %v2931 = vadd.f32 %v1905, %v2930
        %v2932 = vpop.f32.mrb[0].mxu0
        %v2933 = vadd.f32 %v1907, %v2932
        %v2934 = vpop.f32.mrb[0].mxu0
        %v2935 = vadd.f32 %v1909, %v2934
        %2936 = vmatprep.mubr.bf16.mxu0 %v2256
        %2937 = vmatmul.mubr.bf16.gmra.mrb[0].mxu0 %v2255
        %v2938 = vpop.f32.mrb[0].mxu0
        %v2939 = vadd.f32 %v1913, %v2938
        %v2940 = vpop.f32.mrb[0].mxu0
        %v2941 = vadd.f32 %v1915, %v2940
        %v2942 = vpop.f32.mrb[0].mxu0
        %v2943 = vadd.f32 %v1917, %v2942
        %v2944 = vpop.f32.mrb[0].mxu0
        %v2945 = vadd.f32 %v1919, %v2944
        %2946 = vmatprep.mubr.bf16.mxu0 %v2258
        %2947 = vmatmul.mubr.bf16.gmra.mrb[0].mxu0 %v2257
        %v2948 = vpop.f32.mrb[0].mxu0
        %v2949 = vadd.f32 %v1923, %v2948
        %v2950 = vpop.f32.mrb[0].mxu0
        %v2951 = vadd.f32 %v1925, %v2950
        %v2952 = vpop.f32.mrb[0].mxu0
        %v2953 = vadd.f32 %v1927, %v2952
        %v2954 = vpop.f32.mrb[0].mxu0
        %v2955 = vadd.f32 %v1929, %v2954
        %2956 = vmatprep.mubr.bf16.mxu0 %v2260
        %2957 = vmatmul.mubr.bf16.gmra.mrb[0].mxu0 %v2259
        %v2958 = vpop.f32.mrb[0].mxu0
        %v2959 = vadd.f32 %v1933, %v2958
        %v2960 = vpop.f32.mrb[0].mxu0
        %v2961 = vadd.f32 %v1935, %v2960
        %v2962 = vpop.f32.mrb[0].mxu0
        %v2963 = vadd.f32 %v1937, %v2962
        %v2964 = vpop.f32.mrb[0].mxu0
        %v2965 = vadd.f32 %v1939, %v2964
        %2966 = vmatprep.mubr.bf16.mxu0 %v2262
        %2967 = vmatmul.mubr.bf16.gmra.mrb[0].mxu0 %v2261
        %v2968 = vpop.f32.mrb[0].mxu0
        %v2969 = vadd.f32 %v1943, %v2968
        %v2970 = vpop.f32.mrb[0].mxu0
        %v2971 = vadd.f32 %v1945, %v2970
        %v2972 = vpop.f32.mrb[0].mxu0
        %v2973 = vadd.f32 %v1947, %v2972
        %v2974 = vpop.f32.mrb[0].mxu0
        %v2975 = vadd.f32 %v1949, %v2974
        %2976 = vmatprep.mubr.bf16.mxu0 %v2264
        %2977 = vmatmul.mubr.bf16.gmra.mrb[0].mxu0 %v2263
        %v2978 = vpop.f32.mrb[0].mxu0
        %v2979 = vadd.f32 %v1953, %v2978
        %v2980 = vpop.f32.mrb[0].mxu0
        %v2981 = vadd.f32 %v1955, %v2980
        %v2982 = vpop.f32.mrb[0].mxu0
        %v2983 = vadd.f32 %v1957, %v2982
        %v2984 = vpop.f32.mrb[0].mxu0
        %v2985 = vadd.f32 %v1959, %v2984
        %2986 = vmatprep.mubr.bf16.mxu0 %v2266
        %2987 = vmatmul.mubr.bf16.gmra.mrb[0].mxu0 %v2265
        %v2988 = vpop.f32.mrb[0].mxu0
        %v2989 = vadd.f32 %v1963, %v2988
        %v2990 = vpop.f32.mrb[0].mxu0
        %v2991 = vadd.f32 %v1965, %v2990
        %v2992 = vpop.f32.mrb[0].mxu0
        %v2993 = vadd.f32 %v1967, %v2992
        %v2994 = vpop.f32.mrb[0].mxu0
        %v2995 = vadd.f32 %v1969, %v2994
        %2996 = vmatprep.mubr.bf16.mxu0 %v2268
        %2997 = vmatmul.mubr.bf16.gmra.mrb[0].mxu0 %v2267
        %v2998 = vpop.f32.mrb[0].mxu0
        %v2999 = vadd.f32 %v1973, %v2998
        %v3000 = vpop.f32.mrb[0].mxu0
        %v3001 = vadd.f32 %v1975, %v3000
        %v3002 = vpop.f32.mrb[0].mxu0
        %v3003 = vadd.f32 %v1977, %v3002
        %v3004 = vpop.f32.mrb[0].mxu0
        %v3005 = vadd.f32 %v1979, %v3004
        %3006 = vmatprep.mubr.bf16.mxu0 %v2270
        %3007 = vmatmul.mubr.bf16.gmra.mrb[0].mxu0 %v2269
        %v3008 = vpop.f32.mrb[0].mxu0
        %v3009 = vadd.f32 %v1983, %v3008
        %v3010 = vpop.f32.mrb[0].mxu0
        %v3011 = vadd.f32 %v1985, %v3010
        %v3012 = vpop.f32.mrb[0].mxu0
        %v3013 = vadd.f32 %v1987, %v3012
        %v3014 = vpop.f32.mrb[0].mxu0
        %v3015 = vadd.f32 %v1989, %v3014
        %3016 = vmatprep.mubr.bf16.mxu0 %v2272
        %3017 = vmatmul.mubr.bf16.gmra.mrb[0].mxu0 %v2271
        %v3018 = vpop.f32.mrb[0].mxu0
        %v3019 = vadd.f32 %v1993, %v3018
        %v3020 = vpop.f32.mrb[0].mxu0
        %v3021 = vadd.f32 %v1995, %v3020
        %v3022 = vpop.f32.mrb[0].mxu0
        %v3023 = vadd.f32 %v1997, %v3022
        %v3024 = vpop.f32.mrb[0].mxu0
        %v3025 = vadd.f32 %v1999, %v3024
        %3026 = vmatprep.mubr.bf16.mxu0 %v2274
        %3027 = vmatmul.mubr.bf16.gmra.mrb[0].mxu0 %v2273
        %v3028 = vpop.f32.mrb[0].mxu0
        %v3029 = vadd.f32 %v2003, %v3028
        %v3030 = vpop.f32.mrb[0].mxu0
        %v3031 = vadd.f32 %v2005, %v3030
        %v3032 = vpop.f32.mrb[0].mxu0
        %v3033 = vadd.f32 %v2007, %v3032
        %v3034 = vpop.f32.mrb[0].mxu0
        %v3035 = vadd.f32 %v2009, %v3034
        %3036 = vmatprep.mubr.bf16.mxu0 %v2276
        %3037 = vmatmul.mubr.bf16.gmra.mrb[0].mxu0 %v2275
        %v3038 = vpop.f32.mrb[0].mxu0
        %v3039 = vadd.f32 %v2013, %v3038
        %v3040 = vpop.f32.mrb[0].mxu0
        %v3041 = vadd.f32 %v2015, %v3040
        %v3042 = vpop.f32.mrb[0].mxu0
        %v3043 = vadd.f32 %v2017, %v3042
        %v3044 = vpop.f32.mrb[0].mxu0
        %v3045 = vadd.f32 %v2019, %v3044
        %3046 = vdwg.mxu0
        %v3047 = vld [vmem:[#allocation2] sm:$0xff]
        %v3048 = vld [vmem:[#allocation2 + $0x8] sm:$0xff]
        %v3049 = vld [vmem:[#allocation2 + $0x10] sm:$0xff]
        %v3050 = vld [vmem:[#allocation2 + $0x18] sm:$0xff]
        %v3051 = vld [vmem:[#allocation2 + $0x20] sm:$0xff]
        %v3052 = vld [vmem:[#allocation2 + $0x28] sm:$0xff]
        %v3053 = vld [vmem:[#allocation2 + $0x30] sm:$0xff]
        %v3054 = vld [vmem:[#allocation2 + $0x38] sm:$0xff]
        %v3055 = vld [vmem:[#allocation2 + $0x40] sm:$0xff]
        %v3056 = vld [vmem:[#allocation2 + $0x48] sm:$0xff]
        %v3057 = vld [vmem:[#allocation2 + $0x50] sm:$0xff]
        %v3058 = vld [vmem:[#allocation2 + $0x58] sm:$0xff]
        %v3059 = vld [vmem:[#allocation2 + $0x60] sm:$0xff]
        %v3060 = vld [vmem:[#allocation2 + $0x68] sm:$0xff]
        %v3061 = vld [vmem:[#allocation2 + $0x70] sm:$0xff]
        %v3062 = vld [vmem:[#allocation2 + $0x78] sm:$0xff]
        %v3063 = vld [vmem:[#allocation2 + $0x80] sm:$0xff]
        %v3064 = vld [vmem:[#allocation2 + $0x88] sm:$0xff]
        %v3065 = vld [vmem:[#allocation2 + $0x90] sm:$0xff]
        %v3066 = vld [vmem:[#allocation2 + $0x98] sm:$0xff]
        %v3067 = vld [vmem:[#allocation2 + $0xa0] sm:$0xff]
        %v3068 = vld [vmem:[#allocation2 + $0xa8] sm:$0xff]
        %v3069 = vld [vmem:[#allocation2 + $0xb0] sm:$0xff]
        %v3070 = vld [vmem:[#allocation2 + $0xb8] sm:$0xff]
        %v3071 = vld [vmem:[#allocation2 + $0xc0] sm:$0xff]
        %v3072 = vld [vmem:[#allocation2 + $0xc8] sm:$0xff]
        %v3073 = vld [vmem:[#allocation2 + $0xd0] sm:$0xff]
        %v3074 = vld [vmem:[#allocation2 + $0xd8] sm:$0xff]
        %v3075 = vld [vmem:[#allocation2 + $0xe0] sm:$0xff]
        %v3076 = vld [vmem:[#allocation2 + $0xe8] sm:$0xff]
        %v3077 = vld [vmem:[#allocation2 + $0xf0] sm:$0xff]
        %v3078 = vld [vmem:[#allocation2 + $0xf8] sm:$0xff]
        %v3079 = vld [vmem:[#allocation2 + $0x100] sm:$0xff]
        %v3080 = vld [vmem:[#allocation2 + $0x108] sm:$0xff]
        %v3081 = vld [vmem:[#allocation2 + $0x110] sm:$0xff]
        %v3082 = vld [vmem:[#allocation2 + $0x118] sm:$0xff]
        %v3083 = vld [vmem:[#allocation2 + $0x120] sm:$0xff]
        %v3084 = vld [vmem:[#allocation2 + $0x128] sm:$0xff]
        %v3085 = vld [vmem:[#allocation2 + $0x130] sm:$0xff]
        %v3086 = vld [vmem:[#allocation2 + $0x138] sm:$0xff]
        %v3087 = vld [vmem:[#allocation2 + $0x140] sm:$0xff]
        %v3088 = vld [vmem:[#allocation2 + $0x148] sm:$0xff]
        %v3089 = vld [vmem:[#allocation2 + $0x150] sm:$0xff]
        %v3090 = vld [vmem:[#allocation2 + $0x158] sm:$0xff]
        %v3091 = vld [vmem:[#allocation2 + $0x160] sm:$0xff]
        %v3092 = vld [vmem:[#allocation2 + $0x168] sm:$0xff]
        %v3093 = vld [vmem:[#allocation2 + $0x170] sm:$0xff]
        %v3094 = vld [vmem:[#allocation2 + $0x178] sm:$0xff]
        %v3095 = vld [vmem:[#allocation2 + $0x180] sm:$0xff]
        %v3096 = vld [vmem:[#allocation2 + $0x188] sm:$0xff]
        %v3097 = vld [vmem:[#allocation2 + $0x190] sm:$0xff]
        %v3098 = vld [vmem:[#allocation2 + $0x198] sm:$0xff]
        %v3099 = vld [vmem:[#allocation2 + $0x1a0] sm:$0xff]
        %v3100 = vld [vmem:[#allocation2 + $0x1a8] sm:$0xff]
        %v3101 = vld [vmem:[#allocation2 + $0x1b0] sm:$0xff]
        %v3102 = vld [vmem:[#allocation2 + $0x1b8] sm:$0xff]
        %v3103 = vld [vmem:[#allocation2 + $0x1c0] sm:$0xff]
        %v3104 = vld [vmem:[#allocation2 + $0x1c8] sm:$0xff]
        %v3105 = vld [vmem:[#allocation2 + $0x1d0] sm:$0xff]
        %v3106 = vld [vmem:[#allocation2 + $0x1d8] sm:$0xff]
        %v3107 = vld [vmem:[#allocation2 + $0x1e0] sm:$0xff]
        %v3108 = vld [vmem:[#allocation2 + $0x1e8] sm:$0xff]
        %v3109 = vld [vmem:[#allocation2 + $0x1f0] sm:$0xff]
        %v3110 = vld [vmem:[#allocation2 + $0x1f8] sm:$0xff]
        %v3111 = vld [vmem:[#allocation2 + $0x200] sm:$0xff]
        %v3112 = vld [vmem:[#allocation2 + $0x208] sm:$0xff]
        %v3113 = vld [vmem:[#allocation2 + $0x210] sm:$0xff]
        %v3114 = vld [vmem:[#allocation2 + $0x218] sm:$0xff]
        %v3115 = vld [vmem:[#allocation2 + $0x220] sm:$0xff]
        %v3116 = vld [vmem:[#allocation2 + $0x228] sm:$0xff]
        %v3117 = vld [vmem:[#allocation2 + $0x230] sm:$0xff]
        %v3118 = vld [vmem:[#allocation2 + $0x238] sm:$0xff]
        %v3119 = vld [vmem:[#allocation2 + $0x240] sm:$0xff]
        %v3120 = vld [vmem:[#allocation2 + $0x248] sm:$0xff]
        %v3121 = vld [vmem:[#allocation2 + $0x250] sm:$0xff]
        %v3122 = vld [vmem:[#allocation2 + $0x258] sm:$0xff]
        %v3123 = vld [vmem:[#allocation2 + $0x260] sm:$0xff]
        %v3124 = vld [vmem:[#allocation2 + $0x268] sm:$0xff]
        %v3125 = vld [vmem:[#allocation2 + $0x270] sm:$0xff]
        %v3126 = vld [vmem:[#allocation2 + $0x278] sm:$0xff]
        %v3127 = vld [vmem:[#allocation2 + $0x280] sm:$0xff]
        %v3128 = vld [vmem:[#allocation2 + $0x288] sm:$0xff]
        %v3129 = vld [vmem:[#allocation2 + $0x290] sm:$0xff]
        %v3130 = vld [vmem:[#allocation2 + $0x298] sm:$0xff]
        %v3131 = vld [vmem:[#allocation2 + $0x2a0] sm:$0xff]
        %v3132 = vld [vmem:[#allocation2 + $0x2a8] sm:$0xff]
        %v3133 = vld [vmem:[#allocation2 + $0x2b0] sm:$0xff]
        %v3134 = vld [vmem:[#allocation2 + $0x2b8] sm:$0xff]
        %v3135 = vld [vmem:[#allocation2 + $0x2c0] sm:$0xff]
        %v3136 = vld [vmem:[#allocation2 + $0x2c8] sm:$0xff]
        %v3137 = vld [vmem:[#allocation2 + $0x2d0] sm:$0xff]
        %v3138 = vld [vmem:[#allocation2 + $0x2d8] sm:$0xff]
        %v3139 = vld [vmem:[#allocation2 + $0x2e0] sm:$0xff]
        %v3140 = vld [vmem:[#allocation2 + $0x2e8] sm:$0xff]
        %v3141 = vld [vmem:[#allocation2 + $0x2f0] sm:$0xff]
        %v3142 = vld [vmem:[#allocation2 + $0x2f8] sm:$0xff]
        %v3143 = vld [vmem:[#allocation2 + $0x300] sm:$0xff]
        %v3144 = vld [vmem:[#allocation2 + $0x308] sm:$0xff]
        %v3145 = vld [vmem:[#allocation2 + $0x310] sm:$0xff]
        %v3146 = vld [vmem:[#allocation2 + $0x318] sm:$0xff]
        %v3147 = vld [vmem:[#allocation2 + $0x320] sm:$0xff]
        %v3148 = vld [vmem:[#allocation2 + $0x328] sm:$0xff]
        %v3149 = vld [vmem:[#allocation2 + $0x330] sm:$0xff]
        %v3150 = vld [vmem:[#allocation2 + $0x338] sm:$0xff]
        %v3151 = vld [vmem:[#allocation2 + $0x340] sm:$0xff]
        %v3152 = vld [vmem:[#allocation2 + $0x348] sm:$0xff]
        %v3153 = vld [vmem:[#allocation2 + $0x350] sm:$0xff]
        %v3154 = vld [vmem:[#allocation2 + $0x358] sm:$0xff]
        %v3155 = vld [vmem:[#allocation2 + $0x360] sm:$0xff]
        %v3156 = vld [vmem:[#allocation2 + $0x368] sm:$0xff]
        %v3157 = vld [vmem:[#allocation2 + $0x370] sm:$0xff]
        %v3158 = vld [vmem:[#allocation2 + $0x378] sm:$0xff]
        %v3159 = vld [vmem:[#allocation2 + $0x380] sm:$0xff]
        %v3160 = vld [vmem:[#allocation2 + $0x388] sm:$0xff]
        %v3161 = vld [vmem:[#allocation2 + $0x390] sm:$0xff]
        %v3162 = vld [vmem:[#allocation2 + $0x398] sm:$0xff]
        %v3163 = vld [vmem:[#allocation2 + $0x3a0] sm:$0xff]
        %v3164 = vld [vmem:[#allocation2 + $0x3a8] sm:$0xff]
        %v3165 = vld [vmem:[#allocation2 + $0x3b0] sm:$0xff]
        %v3166 = vld [vmem:[#allocation2 + $0x3b8] sm:$0xff]
        %v3167 = vld [vmem:[#allocation2 + $0x3c0] sm:$0xff]
        %v3168 = vld [vmem:[#allocation2 + $0x3c8] sm:$0xff]
        %v3169 = vld [vmem:[#allocation2 + $0x3d0] sm:$0xff]
        %v3170 = vld [vmem:[#allocation2 + $0x3d8] sm:$0xff]
        %v3171 = vld [vmem:[#allocation2 + $0x3e0] sm:$0xff]
        %v3172 = vld [vmem:[#allocation2 + $0x3e8] sm:$0xff]
        %v3173 = vld [vmem:[#allocation2 + $0x3f0] sm:$0xff]
        %v3174 = vld [vmem:[#allocation2 + $0x3f8] sm:$0xff]
        %v3175 = vld [vmem:[#allocation2 + $0x400] sm:$0xff]
        %v3176 = vld [vmem:[#allocation2 + $0x408] sm:$0xff]
        %v3177 = vld [vmem:[#allocation2 + $0x410] sm:$0xff]
        %v3178 = vld [vmem:[#allocation2 + $0x418] sm:$0xff]
        %v3179 = vld [vmem:[#allocation2 + $0x420] sm:$0xff]
        %v3180 = vld [vmem:[#allocation2 + $0x428] sm:$0xff]
        %v3181 = vld [vmem:[#allocation2 + $0x430] sm:$0xff]
        %v3182 = vld [vmem:[#allocation2 + $0x438] sm:$0xff]
        %v3183 = vld [vmem:[#allocation2 + $0x440] sm:$0xff]
        %v3184 = vld [vmem:[#allocation2 + $0x448] sm:$0xff]
        %v3185 = vld [vmem:[#allocation2 + $0x450] sm:$0xff]
        %v3186 = vld [vmem:[#allocation2 + $0x458] sm:$0xff]
        %v3187 = vld [vmem:[#allocation2 + $0x460] sm:$0xff]
        %v3188 = vld [vmem:[#allocation2 + $0x468] sm:$0xff]
        %v3189 = vld [vmem:[#allocation2 + $0x470] sm:$0xff]
        %v3190 = vld [vmem:[#allocation2 + $0x478] sm:$0xff]
        %v3191 = vld [vmem:[#allocation2 + $0x480] sm:$0xff]
        %v3192 = vld [vmem:[#allocation2 + $0x488] sm:$0xff]
        %v3193 = vld [vmem:[#allocation2 + $0x490] sm:$0xff]
        %v3194 = vld [vmem:[#allocation2 + $0x498] sm:$0xff]
        %v3195 = vld [vmem:[#allocation2 + $0x4a0] sm:$0xff]
        %v3196 = vld [vmem:[#allocation2 + $0x4a8] sm:$0xff]
        %v3197 = vld [vmem:[#allocation2 + $0x4b0] sm:$0xff]
        %v3198 = vld [vmem:[#allocation2 + $0x4b8] sm:$0xff]
        %v3199 = vld [vmem:[#allocation2 + $0x4c0] sm:$0xff]
        %v3200 = vld [vmem:[#allocation2 + $0x4c8] sm:$0xff]
        %v3201 = vld [vmem:[#allocation2 + $0x4d0] sm:$0xff]
        %v3202 = vld [vmem:[#allocation2 + $0x4d8] sm:$0xff]
        %v3203 = vld [vmem:[#allocation2 + $0x4e0] sm:$0xff]
        %v3204 = vld [vmem:[#allocation2 + $0x4e8] sm:$0xff]
        %v3205 = vld [vmem:[#allocation2 + $0x4f0] sm:$0xff]
        %v3206 = vld [vmem:[#allocation2 + $0x4f8] sm:$0xff]
        %v3207 = vld [vmem:[#allocation2 + $0x500] sm:$0xff]
        %v3208 = vld [vmem:[#allocation2 + $0x508] sm:$0xff]
        %v3209 = vld [vmem:[#allocation2 + $0x510] sm:$0xff]
        %v3210 = vld [vmem:[#allocation2 + $0x518] sm:$0xff]
        %v3211 = vld [vmem:[#allocation2 + $0x520] sm:$0xff]
        %v3212 = vld [vmem:[#allocation2 + $0x528] sm:$0xff]
        %v3213 = vld [vmem:[#allocation2 + $0x530] sm:$0xff]
        %v3214 = vld [vmem:[#allocation2 + $0x538] sm:$0xff]
        %v3215 = vld [vmem:[#allocation2 + $0x540] sm:$0xff]
        %v3216 = vld [vmem:[#allocation2 + $0x548] sm:$0xff]
        %v3217 = vld [vmem:[#allocation2 + $0x550] sm:$0xff]
        %v3218 = vld [vmem:[#allocation2 + $0x558] sm:$0xff]
        %v3219 = vld [vmem:[#allocation2 + $0x560] sm:$0xff]
        %v3220 = vld [vmem:[#allocation2 + $0x568] sm:$0xff]
        %v3221 = vld [vmem:[#allocation2 + $0x570] sm:$0xff]
        %v3222 = vld [vmem:[#allocation2 + $0x578] sm:$0xff]
        %v3223 = vld [vmem:[#allocation2 + $0x580] sm:$0xff]
        %v3224 = vld [vmem:[#allocation2 + $0x588] sm:$0xff]
        %v3225 = vld [vmem:[#allocation2 + $0x590] sm:$0xff]
        %v3226 = vld [vmem:[#allocation2 + $0x598] sm:$0xff]
        %v3227 = vld [vmem:[#allocation2 + $0x5a0] sm:$0xff]
        %v3228 = vld [vmem:[#allocation2 + $0x5a8] sm:$0xff]
        %v3229 = vld [vmem:[#allocation2 + $0x5b0] sm:$0xff]
        %v3230 = vld [vmem:[#allocation2 + $0x5b8] sm:$0xff]
        %v3231 = vld [vmem:[#allocation2 + $0x5c0] sm:$0xff]
        %v3232 = vld [vmem:[#allocation2 + $0x5c8] sm:$0xff]
        %v3233 = vld [vmem:[#allocation2 + $0x5d0] sm:$0xff]
        %v3234 = vld [vmem:[#allocation2 + $0x5d8] sm:$0xff]
        %v3235 = vld [vmem:[#allocation2 + $0x5e0] sm:$0xff]
        %v3236 = vld [vmem:[#allocation2 + $0x5e8] sm:$0xff]
        %v3237 = vld [vmem:[#allocation2 + $0x5f0] sm:$0xff]
        %v3238 = vld [vmem:[#allocation2 + $0x5f8] sm:$0xff]
        %v3239 = vld [vmem:[#allocation2 + $0x600] sm:$0xff]
        %v3240 = vld [vmem:[#allocation2 + $0x608] sm:$0xff]
        %v3241 = vld [vmem:[#allocation2 + $0x610] sm:$0xff]
        %v3242 = vld [vmem:[#allocation2 + $0x618] sm:$0xff]
        %v3243 = vld [vmem:[#allocation2 + $0x620] sm:$0xff]
        %v3244 = vld [vmem:[#allocation2 + $0x628] sm:$0xff]
        %v3245 = vld [vmem:[#allocation2 + $0x630] sm:$0xff]
        %v3246 = vld [vmem:[#allocation2 + $0x638] sm:$0xff]
        %v3247 = vld [vmem:[#allocation2 + $0x640] sm:$0xff]
        %v3248 = vld [vmem:[#allocation2 + $0x648] sm:$0xff]
        %v3249 = vld [vmem:[#allocation2 + $0x650] sm:$0xff]
        %v3250 = vld [vmem:[#allocation2 + $0x658] sm:$0xff]
        %v3251 = vld [vmem:[#allocation2 + $0x660] sm:$0xff]
        %v3252 = vld [vmem:[#allocation2 + $0x668] sm:$0xff]
        %v3253 = vld [vmem:[#allocation2 + $0x670] sm:$0xff]
        %v3254 = vld [vmem:[#allocation2 + $0x678] sm:$0xff]
        %v3255 = vld [vmem:[#allocation2 + $0x680] sm:$0xff]
        %v3256 = vld [vmem:[#allocation2 + $0x688] sm:$0xff]
        %v3257 = vld [vmem:[#allocation2 + $0x690] sm:$0xff]
        %v3258 = vld [vmem:[#allocation2 + $0x698] sm:$0xff]
        %v3259 = vld [vmem:[#allocation2 + $0x6a0] sm:$0xff]
        %v3260 = vld [vmem:[#allocation2 + $0x6a8] sm:$0xff]
        %v3261 = vld [vmem:[#allocation2 + $0x6b0] sm:$0xff]
        %v3262 = vld [vmem:[#allocation2 + $0x6b8] sm:$0xff]
        %v3263 = vld [vmem:[#allocation2 + $0x6c0] sm:$0xff]
        %v3264 = vld [vmem:[#allocation2 + $0x6c8] sm:$0xff]
        %v3265 = vld [vmem:[#allocation2 + $0x6d0] sm:$0xff]
        %v3266 = vld [vmem:[#allocation2 + $0x6d8] sm:$0xff]
        %v3267 = vld [vmem:[#allocation2 + $0x6e0] sm:$0xff]
        %v3268 = vld [vmem:[#allocation2 + $0x6e8] sm:$0xff]
        %v3269 = vld [vmem:[#allocation2 + $0x6f0] sm:$0xff]
        %v3270 = vld [vmem:[#allocation2 + $0x6f8] sm:$0xff]
        %v3271 = vld [vmem:[#allocation2 + $0x700] sm:$0xff]
        %v3272 = vld [vmem:[#allocation2 + $0x708] sm:$0xff]
        %v3273 = vld [vmem:[#allocation2 + $0x710] sm:$0xff]
        %v3274 = vld [vmem:[#allocation2 + $0x718] sm:$0xff]
        %v3275 = vld [vmem:[#allocation2 + $0x720] sm:$0xff]
        %v3276 = vld [vmem:[#allocation2 + $0x728] sm:$0xff]
        %v3277 = vld [vmem:[#allocation2 + $0x730] sm:$0xff]
        %v3278 = vld [vmem:[#allocation2 + $0x738] sm:$0xff]
        %v3279 = vld [vmem:[#allocation2 + $0x740] sm:$0xff]
        %v3280 = vld [vmem:[#allocation2 + $0x748] sm:$0xff]
        %v3281 = vld [vmem:[#allocation2 + $0x750] sm:$0xff]
        %v3282 = vld [vmem:[#allocation2 + $0x758] sm:$0xff]
        %v3283 = vld [vmem:[#allocation2 + $0x760] sm:$0xff]
        %v3284 = vld [vmem:[#allocation2 + $0x768] sm:$0xff]
        %v3285 = vld [vmem:[#allocation2 + $0x770] sm:$0xff]
        %v3286 = vld [vmem:[#allocation2 + $0x778] sm:$0xff]
        %v3287 = vld [vmem:[#allocation2 + $0x780] sm:$0xff]
        %v3288 = vld [vmem:[#allocation2 + $0x788] sm:$0xff]
        %v3289 = vld [vmem:[#allocation2 + $0x790] sm:$0xff]
        %v3290 = vld [vmem:[#allocation2 + $0x798] sm:$0xff]
        %v3291 = vld [vmem:[#allocation2 + $0x7a0] sm:$0xff]
        %v3292 = vld [vmem:[#allocation2 + $0x7a8] sm:$0xff]
        %v3293 = vld [vmem:[#allocation2 + $0x7b0] sm:$0xff]
        %v3294 = vld [vmem:[#allocation2 + $0x7b8] sm:$0xff]
        %v3295 = vld [vmem:[#allocation2 + $0x7c0] sm:$0xff]
        %v3296 = vld [vmem:[#allocation2 + $0x7c8] sm:$0xff]
        %v3297 = vld [vmem:[#allocation2 + $0x7d0] sm:$0xff]
        %v3298 = vld [vmem:[#allocation2 + $0x7d8] sm:$0xff]
        %v3299 = vld [vmem:[#allocation2 + $0x7e0] sm:$0xff]
        %v3300 = vld [vmem:[#allocation2 + $0x7e8] sm:$0xff]
        %v3301 = vld [vmem:[#allocation2 + $0x7f0] sm:$0xff]
        %v3302 = vld [vmem:[#allocation2 + $0x7f8] sm:$0xff]
        %v3303 = vadd.f32 %v3047, %v2376
        %v3304 = vadd.f32 %v3048, %v2378
        %v3305 = vadd.f32 %v3049, %v2729
        %v3306 = vadd.f32 %v3050, %v2731
        %v3307 = vadd.f32 %v3051, %v2380
        %v3308 = vadd.f32 %v3052, %v2382
        %v3309 = vadd.f32 %v3053, %v2733
        %v3310 = vadd.f32 %v3054, %v2735
        %v3311 = vadd.f32 %v3055, %v2386
        %v3312 = vadd.f32 %v3056, %v2388
        %v3313 = vadd.f32 %v3057, %v2739
        %v3314 = vadd.f32 %v3058, %v2741
        %v3315 = vadd.f32 %v3059, %v2390
        %v3316 = vadd.f32 %v3060, %v2392
        %v3317 = vadd.f32 %v3061, %v2743
        %v3318 = vadd.f32 %v3062, %v2745
        %v3319 = vadd.f32 %v3063, %v2396
        %v3320 = vadd.f32 %v3064, %v2398
        %v3321 = vadd.f32 %v3065, %v2749
        %v3322 = vadd.f32 %v3066, %v2751
        %v3323 = vadd.f32 %v3067, %v2400
        %v3324 = vadd.f32 %v3068, %v2402
        %v3325 = vadd.f32 %v3069, %v2753
        %v3326 = vadd.f32 %v3070, %v2755
        %v3327 = vadd.f32 %v3071, %v2406
        %v3328 = vadd.f32 %v3072, %v2408
        %v3329 = vadd.f32 %v3073, %v2759
        %v3330 = vadd.f32 %v3074, %v2761
        %v3331 = vadd.f32 %v3075, %v2410
        %v3332 = vadd.f32 %v3076, %v2412
        %v3333 = vadd.f32 %v3077, %v2763
        %v3334 = vadd.f32 %v3078, %v2765
        %v3335 = vadd.f32 %v3079, %v2416
        %v3336 = vadd.f32 %v3080, %v2418
        %v3337 = vadd.f32 %v3081, %v2769
        %v3338 = vadd.f32 %v3082, %v2771
        %v3339 = vadd.f32 %v3083, %v2420
        %v3340 = vadd.f32 %v3084, %v2422
        %v3341 = vadd.f32 %v3085, %v2773
        %v3342 = vadd.f32 %v3086, %v2775
        %v3343 = vadd.f32 %v3087, %v2426
        %v3344 = vadd.f32 %v3088, %v2428
        %v3345 = vadd.f32 %v3089, %v2779
        %v3346 = vadd.f32 %v3090, %v2781
        %v3347 = vadd.f32 %v3091, %v2430
        %v3348 = vadd.f32 %v3092, %v2432
        %v3349 = vadd.f32 %v3093, %v2783
        %v3350 = vadd.f32 %v3094, %v2785
        %v3351 = vadd.f32 %v3095, %v2436
        %v3352 = vadd.f32 %v3096, %v2438
        %v3353 = vadd.f32 %v3097, %v2789
        %v3354 = vadd.f32 %v3098, %v2791
        %v3355 = vadd.f32 %v3099, %v2440
        %v3356 = vadd.f32 %v3100, %v2442
        %v3357 = vadd.f32 %v3101, %v2793
        %v3358 = vadd.f32 %v3102, %v2795
        %v3359 = vadd.f32 %v3103, %v2446
        %v3360 = vadd.f32 %v3104, %v2448
        %v3361 = vadd.f32 %v3105, %v2799
        %v3362 = vadd.f32 %v3106, %v2801
        %v3363 = vadd.f32 %v3107, %v2450
        %v3364 = vadd.f32 %v3108, %v2452
        %v3365 = vadd.f32 %v3109, %v2803
        %v3366 = vadd.f32 %v3110, %v2805
        %v3367 = vadd.f32 %v3111, %v2456
        %v3368 = vadd.f32 %v3112, %v2458
        %v3369 = vadd.f32 %v3113, %v2809
        %v3370 = vadd.f32 %v3114, %v2811
        %v3371 = vadd.f32 %v3115, %v2460
        %v3372 = vadd.f32 %v3116, %v2462
        %v3373 = vadd.f32 %v3117, %v2813
        %v3374 = vadd.f32 %v3118, %v2815
        %v3375 = vadd.f32 %v3119, %v2466
        %v3376 = vadd.f32 %v3120, %v2468
        %v3377 = vadd.f32 %v3121, %v2819
        %v3378 = vadd.f32 %v3122, %v2821
        %v3379 = vadd.f32 %v3123, %v2470
        %v3380 = vadd.f32 %v3124, %v2472
        %v3381 = vadd.f32 %v3125, %v2823
        %v3382 = vadd.f32 %v3126, %v2825
        %v3383 = vadd.f32 %v3127, %v2476
        %v3384 = vadd.f32 %v3128, %v2478
        %v3385 = vadd.f32 %v3129, %v2829
        %v3386 = vadd.f32 %v3130, %v2831
        %v3387 = vadd.f32 %v3131, %v2480
        %v3388 = vadd.f32 %v3132, %v2482
        %v3389 = vadd.f32 %v3133, %v2833
        %v3390 = vadd.f32 %v3134, %v2835
        %v3391 = vadd.f32 %v3135, %v2486
        %v3392 = vadd.f32 %v3136, %v2488
        %v3393 = vadd.f32 %v3137, %v2839
        %v3394 = vadd.f32 %v3138, %v2841
        %v3395 = vadd.f32 %v3139, %v2490
        %v3396 = vadd.f32 %v3140, %v2492
        %v3397 = vadd.f32 %v3141, %v2843
        %v3398 = vadd.f32 %v3142, %v2845
        %v3399 = vadd.f32 %v3143, %v2496
        %v3400 = vadd.f32 %v3144, %v2498
        %v3401 = vadd.f32 %v3145, %v2849
        %v3402 = vadd.f32 %v3146, %v2851
        %v3403 = vadd.f32 %v3147, %v2500
        %v3404 = vadd.f32 %v3148, %v2502
        %v3405 = vadd.f32 %v3149, %v2853
        %v3406 = vadd.f32 %v3150, %v2855
        %v3407 = vadd.f32 %v3151, %v2506
        %v3408 = vadd.f32 %v3152, %v2508
        %v3409 = vadd.f32 %v3153, %v2859
        %v3410 = vadd.f32 %v3154, %v2861
        %v3411 = vadd.f32 %v3155, %v2510
        %v3412 = vadd.f32 %v3156, %v2512
        %v3413 = vadd.f32 %v3157, %v2863
        %v3414 = vadd.f32 %v3158, %v2865
        %v3415 = vadd.f32 %v3159, %v2516
        %v3416 = vadd.f32 %v3160, %v2518
        %v3417 = vadd.f32 %v3161, %v2869
        %v3418 = vadd.f32 %v3162, %v2871
        %v3419 = vadd.f32 %v3163, %v2520
        %v3420 = vadd.f32 %v3164, %v2522
        %v3421 = vadd.f32 %v3165, %v2873
        %v3422 = vadd.f32 %v3166, %v2875
        %v3423 = vadd.f32 %v3167, %v2526
        %v3424 = vadd.f32 %v3168, %v2528
        %v3425 = vadd.f32 %v3169, %v2879
        %v3426 = vadd.f32 %v3170, %v2881
        %v3427 = vadd.f32 %v3171, %v2530
        %v3428 = vadd.f32 %v3172, %v2532
        %v3429 = vadd.f32 %v3173, %v2883
        %v3430 = vadd.f32 %v3174, %v2885
        %v3431 = vadd.f32 %v3175, %v2536
        %v3432 = vadd.f32 %v3176, %v2538
        %v3433 = vadd.f32 %v3177, %v2889
        %v3434 = vadd.f32 %v3178, %v2891
        %v3435 = vadd.f32 %v3179, %v2540
        %v3436 = vadd.f32 %v3180, %v2542
        %v3437 = vadd.f32 %v3181, %v2893
        %v3438 = vadd.f32 %v3182, %v2895
        %v3439 = vadd.f32 %v3183, %v2546
        %v3440 = vadd.f32 %v3184, %v2548
        %v3441 = vadd.f32 %v3185, %v2899
        %v3442 = vadd.f32 %v3186, %v2901
        %v3443 = vadd.f32 %v3187, %v2550
        %v3444 = vadd.f32 %v3188, %v2552
        %v3445 = vadd.f32 %v3189, %v2903
        %v3446 = vadd.f32 %v3190, %v2905
        %v3447 = vadd.f32 %v3191, %v2556
        %v3448 = vadd.f32 %v3192, %v2558
        %v3449 = vadd.f32 %v3193, %v2909
        %v3450 = vadd.f32 %v3194, %v2911
        %v3451 = vadd.f32 %v3195, %v2560
        %v3452 = vadd.f32 %v3196, %v2562
        %v3453 = vadd.f32 %v3197, %v2913
        %v3454 = vadd.f32 %v3198, %v2915
        %v3455 = vadd.f32 %v3199, %v2566
        %v3456 = vadd.f32 %v3200, %v2568
        %v3457 = vadd.f32 %v3201, %v2919
        %v3458 = vadd.f32 %v3202, %v2921
        %v3459 = vadd.f32 %v3203, %v2570
        %v3460 = vadd.f32 %v3204, %v2572
        %v3461 = vadd.f32 %v3205, %v2923
        %v3462 = vadd.f32 %v3206, %v2925
        %v3463 = vadd.f32 %v3207, %v2576
        %v3464 = vadd.f32 %v3208, %v2578
        %v3465 = vadd.f32 %v3209, %v2929
        %v3466 = vadd.f32 %v3210, %v2931
        %v3467 = vadd.f32 %v3211, %v2580
        %v3468 = vadd.f32 %v3212, %v2582
        %v3469 = vadd.f32 %v3213, %v2933
        %v3470 = vadd.f32 %v3214, %v2935
        %v3471 = vadd.f32 %v3215, %v2586
        %v3472 = vadd.f32 %v3216, %v2588
        %v3473 = vadd.f32 %v3217, %v2939
        %v3474 = vadd.f32 %v3218, %v2941
        %v3475 = vadd.f32 %v3219, %v2590
        %v3476 = vadd.f32 %v3220, %v2592
        %v3477 = vadd.f32 %v3221, %v2943
        %v3478 = vadd.f32 %v3222, %v2945
        %v3479 = vadd.f32 %v3223, %v2596
        %v3480 = vadd.f32 %v3224, %v2598
        %v3481 = vadd.f32 %v3225, %v2949
        %v3482 = vadd.f32 %v3226, %v2951
        %v3483 = vadd.f32 %v3227, %v2600
        %v3484 = vadd.f32 %v3228, %v2602
        %v3485 = vadd.f32 %v3229, %v2953
        %v3486 = vadd.f32 %v3230, %v2955
        %v3487 = vadd.f32 %v3231, %v2606
        %v3488 = vadd.f32 %v3232, %v2608
        %v3489 = vadd.f32 %v3233, %v2959
        %v3490 = vadd.f32 %v3234, %v2961
        %v3491 = vadd.f32 %v3235, %v2610
        %v3492 = vadd.f32 %v3236, %v2612
        %v3493 = vadd.f32 %v3237, %v2963
        %v3494 = vadd.f32 %v3238, %v2965
        %v3495 = vadd.f32 %v3239, %v2616
        %v3496 = vadd.f32 %v3240, %v2618
        %v3497 = vadd.f32 %v3241, %v2969
        %v3498 = vadd.f32 %v3242, %v2971
        %v3499 = vadd.f32 %v3243, %v2620
        %v3500 = vadd.f32 %v3244, %v2622
        %v3501 = vadd.f32 %v3245, %v2973
        %v3502 = vadd.f32 %v3246, %v2975
        %v3503 = vadd.f32 %v3247, %v2626
        %v3504 = vadd.f32 %v3248, %v2628
        %v3505 = vadd.f32 %v3249, %v2979
        %v3506 = vadd.f32 %v3250, %v2981
        %v3507 = vadd.f32 %v3251, %v2630
        %v3508 = vadd.f32 %v3252, %v2632
        %v3509 = vadd.f32 %v3253, %v2983
        %v3510 = vadd.f32 %v3254, %v2985
        %v3511 = vadd.f32 %v3255, %v2636
        %v3512 = vadd.f32 %v3256, %v2638
        %v3513 = vadd.f32 %v3257, %v2989
        %v3514 = vadd.f32 %v3258, %v2991
        %v3515 = vadd.f32 %v3259, %v2640
        %v3516 = vadd.f32 %v3260, %v2642
        %v3517 = vadd.f32 %v3261, %v2993
        %v3518 = vadd.f32 %v3262, %v2995
        %v3519 = vadd.f32 %v3263, %v2646
        %v3520 = vadd.f32 %v3264, %v2648
        %v3521 = vadd.f32 %v3265, %v2999
        %v3522 = vadd.f32 %v3266, %v3001
        %v3523 = vadd.f32 %v3267, %v2650
        %v3524 = vadd.f32 %v3268, %v2652
        %v3525 = vadd.f32 %v3269, %v3003
        %v3526 = vadd.f32 %v3270, %v3005
        %v3527 = vadd.f32 %v3271, %v2656
        %v3528 = vadd.f32 %v3272, %v2658
        %v3529 = vadd.f32 %v3273, %v3009
        %v3530 = vadd.f32 %v3274, %v3011
        %v3531 = vadd.f32 %v3275, %v2660
        %v3532 = vadd.f32 %v3276, %v2662
        %v3533 = vadd.f32 %v3277, %v3013
        %v3534 = vadd.f32 %v3278, %v3015
        %v3535 = vadd.f32 %v3279, %v2666
        %v3536 = vadd.f32 %v3280, %v2668
        %v3537 = vadd.f32 %v3281, %v3019
        %v3538 = vadd.f32 %v3282, %v3021
        %v3539 = vadd.f32 %v3283, %v2670
        %v3540 = vadd.f32 %v3284, %v2672
        %v3541 = vadd.f32 %v3285, %v3023
        %v3542 = vadd.f32 %v3286, %v3025
        %v3543 = vadd.f32 %v3287, %v2676
        %v3544 = vadd.f32 %v3288, %v2678
        %v3545 = vadd.f32 %v3289, %v3029
        %v3546 = vadd.f32 %v3290, %v3031
        %v3547 = vadd.f32 %v3291, %v2680
        %v3548 = vadd.f32 %v3292, %v2682
        %v3549 = vadd.f32 %v3293, %v3033
        %v3550 = vadd.f32 %v3294, %v3035
        %v3551 = vadd.f32 %v3295, %v2686
        %v3552 = vadd.f32 %v3296, %v2688
        %v3553 = vadd.f32 %v3297, %v3039
        %v3554 = vadd.f32 %v3298, %v3041
        %v3555 = vadd.f32 %v3299, %v2690
        %v3556 = vadd.f32 %v3300, %v2692
        %v3557 = vadd.f32 %v3301, %v3043
        %v3558 = vadd.f32 %v3302, %v3045
        %3559 = vst [vmem:[#allocation2] sm:$0xff] %v3303
        %3560 = vst [vmem:[#allocation2 + $0x8] sm:$0xff] %v3304
        %3561 = vst [vmem:[#allocation2 + $0x10] sm:$0xff] %v3305
        %3562 = vst [vmem:[#allocation2 + $0x18] sm:$0xff] %v3306
        %3563 = vst [vmem:[#allocation2 + $0x20] sm:$0xff] %v3307
        %3564 = vst [vmem:[#allocation2 + $0x28] sm:$0xff] %v3308
        %3565 = vst [vmem:[#allocation2 + $0x30] sm:$0xff] %v3309
        %3566 = vst [vmem:[#allocation2 + $0x38] sm:$0xff] %v3310
        %3567 = vst [vmem:[#allocation2 + $0x40] sm:$0xff] %v3311
        %3568 = vst [vmem:[#allocation2 + $0x48] sm:$0xff] %v3312
        %3569 = vst [vmem:[#allocation2 + $0x50] sm:$0xff] %v3313
        %3570 = vst [vmem:[#allocation2 + $0x58] sm:$0xff] %v3314
        %3571 = vst [vmem:[#allocation2 + $0x60] sm:$0xff] %v3315
        %3572 = vst [vmem:[#allocation2 + $0x68] sm:$0xff] %v3316
        %3573 = vst [vmem:[#allocation2 + $0x70] sm:$0xff] %v3317
        %3574 = vst [vmem:[#allocation2 + $0x78] sm:$0xff] %v3318
        %3575 = vst [vmem:[#allocation2 + $0x80] sm:$0xff] %v3319
        %3576 = vst [vmem:[#allocation2 + $0x88] sm:$0xff] %v3320
        %3577 = vst [vmem:[#allocation2 + $0x90] sm:$0xff] %v3321
        %3578 = vst [vmem:[#allocation2 + $0x98] sm:$0xff] %v3322
        %3579 = vst [vmem:[#allocation2 + $0xa0] sm:$0xff] %v3323
        %3580 = vst [vmem:[#allocation2 + $0xa8] sm:$0xff] %v3324
        %3581 = vst [vmem:[#allocation2 + $0xb0] sm:$0xff] %v3325
        %3582 = vst [vmem:[#allocation2 + $0xb8] sm:$0xff] %v3326
        %3583 = vst [vmem:[#allocation2 + $0xc0] sm:$0xff] %v3327
        %3584 = vst [vmem:[#allocation2 + $0xc8] sm:$0xff] %v3328
        %3585 = vst [vmem:[#allocation2 + $0xd0] sm:$0xff] %v3329
        %3586 = vst [vmem:[#allocation2 + $0xd8] sm:$0xff] %v3330
        %3587 = vst [vmem:[#allocation2 + $0xe0] sm:$0xff] %v3331
        %3588 = vst [vmem:[#allocation2 + $0xe8] sm:$0xff] %v3332
        %3589 = vst [vmem:[#allocation2 + $0xf0] sm:$0xff] %v3333
        %3590 = vst [vmem:[#allocation2 + $0xf8] sm:$0xff] %v3334
        %3591 = vst [vmem:[#allocation2 + $0x100] sm:$0xff] %v3335
        %3592 = vst [vmem:[#allocation2 + $0x108] sm:$0xff] %v3336
        %3593 = vst [vmem:[#allocation2 + $0x110] sm:$0xff] %v3337
        %3594 = vst [vmem:[#allocation2 + $0x118] sm:$0xff] %v3338
        %3595 = vst [vmem:[#allocation2 + $0x120] sm:$0xff] %v3339
        %3596 = vst [vmem:[#allocation2 + $0x128] sm:$0xff] %v3340
        %3597 = vst [vmem:[#allocation2 + $0x130] sm:$0xff] %v3341
        %3598 = vst [vmem:[#allocation2 + $0x138] sm:$0xff] %v3342
        %3599 = vst [vmem:[#allocation2 + $0x140] sm:$0xff] %v3343
        %3600 = vst [vmem:[#allocation2 + $0x148] sm:$0xff] %v3344
        %3601 = vst [vmem:[#allocation2 + $0x150] sm:$0xff] %v3345
        %3602 = vst [vmem:[#allocation2 + $0x158] sm:$0xff] %v3346
        %3603 = vst [vmem:[#allocation2 + $0x160] sm:$0xff] %v3347
        %3604 = vst [vmem:[#allocation2 + $0x168] sm:$0xff] %v3348
        %3605 = vst [vmem:[#allocation2 + $0x170] sm:$0xff] %v3349
        %3606 = vst [vmem:[#allocation2 + $0x178] sm:$0xff] %v3350
        %3607 = vst [vmem:[#allocation2 + $0x180] sm:$0xff] %v3351
        %3608 = vst [vmem:[#allocation2 + $0x188] sm:$0xff] %v3352
        %3609 = vst [vmem:[#allocation2 + $0x190] sm:$0xff] %v3353
        %3610 = vst [vmem:[#allocation2 + $0x198] sm:$0xff] %v3354
        %3611 = vst [vmem:[#allocation2 + $0x1a0] sm:$0xff] %v3355
        %3612 = vst [vmem:[#allocation2 + $0x1a8] sm:$0xff] %v3356
        %3613 = vst [vmem:[#allocation2 + $0x1b0] sm:$0xff] %v3357
        %3614 = vst [vmem:[#allocation2 + $0x1b8] sm:$0xff] %v3358
        %3615 = vst [vmem:[#allocation2 + $0x1c0] sm:$0xff] %v3359
        %3616 = vst [vmem:[#allocation2 + $0x1c8] sm:$0xff] %v3360
        %3617 = vst [vmem:[#allocation2 + $0x1d0] sm:$0xff] %v3361
        %3618 = vst [vmem:[#allocation2 + $0x1d8] sm:$0xff] %v3362
        %3619 = vst [vmem:[#allocation2 + $0x1e0] sm:$0xff] %v3363
        %3620 = vst [vmem:[#allocation2 + $0x1e8] sm:$0xff] %v3364
        %3621 = vst [vmem:[#allocation2 + $0x1f0] sm:$0xff] %v3365
        %3622 = vst [vmem:[#allocation2 + $0x1f8] sm:$0xff] %v3366
        %3623 = vst [vmem:[#allocation2 + $0x200] sm:$0xff] %v3367
        %3624 = vst [vmem:[#allocation2 + $0x208] sm:$0xff] %v3368
        %3625 = vst [vmem:[#allocation2 + $0x210] sm:$0xff] %v3369
        %3626 = vst [vmem:[#allocation2 + $0x218] sm:$0xff] %v3370
        %3627 = vst [vmem:[#allocation2 + $0x220] sm:$0xff] %v3371
        %3628 = vst [vmem:[#allocation2 + $0x228] sm:$0xff] %v3372
        %3629 = vst [vmem:[#allocation2 + $0x230] sm:$0xff] %v3373
        %3630 = vst [vmem:[#allocation2 + $0x238] sm:$0xff] %v3374
        %3631 = vst [vmem:[#allocation2 + $0x240] sm:$0xff] %v3375
        %3632 = vst [vmem:[#allocation2 + $0x248] sm:$0xff] %v3376
        %3633 = vst [vmem:[#allocation2 + $0x250] sm:$0xff] %v3377
        %3634 = vst [vmem:[#allocation2 + $0x258] sm:$0xff] %v3378
        %3635 = vst [vmem:[#allocation2 + $0x260] sm:$0xff] %v3379
        %3636 = vst [vmem:[#allocation2 + $0x268] sm:$0xff] %v3380
        %3637 = vst [vmem:[#allocation2 + $0x270] sm:$0xff] %v3381
        %3638 = vst [vmem:[#allocation2 + $0x278] sm:$0xff] %v3382
        %3639 = vst [vmem:[#allocation2 + $0x280] sm:$0xff] %v3383
        %3640 = vst [vmem:[#allocation2 + $0x288] sm:$0xff] %v3384
        %3641 = vst [vmem:[#allocation2 + $0x290] sm:$0xff] %v3385
        %3642 = vst [vmem:[#allocation2 + $0x298] sm:$0xff] %v3386
        %3643 = vst [vmem:[#allocation2 + $0x2a0] sm:$0xff] %v3387
        %3644 = vst [vmem:[#allocation2 + $0x2a8] sm:$0xff] %v3388
        %3645 = vst [vmem:[#allocation2 + $0x2b0] sm:$0xff] %v3389
        %3646 = vst [vmem:[#allocation2 + $0x2b8] sm:$0xff] %v3390
        %3647 = vst [vmem:[#allocation2 + $0x2c0] sm:$0xff] %v3391
        %3648 = vst [vmem:[#allocation2 + $0x2c8] sm:$0xff] %v3392
        %3649 = vst [vmem:[#allocation2 + $0x2d0] sm:$0xff] %v3393
        %3650 = vst [vmem:[#allocation2 + $0x2d8] sm:$0xff] %v3394
        %3651 = vst [vmem:[#allocation2 + $0x2e0] sm:$0xff] %v3395
        %3652 = vst [vmem:[#allocation2 + $0x2e8] sm:$0xff] %v3396
        %3653 = vst [vmem:[#allocation2 + $0x2f0] sm:$0xff] %v3397
        %3654 = vst [vmem:[#allocation2 + $0x2f8] sm:$0xff] %v3398
        %3655 = vst [vmem:[#allocation2 + $0x300] sm:$0xff] %v3399
        %3656 = vst [vmem:[#allocation2 + $0x308] sm:$0xff] %v3400
        %3657 = vst [vmem:[#allocation2 + $0x310] sm:$0xff] %v3401
        %3658 = vst [vmem:[#allocation2 + $0x318] sm:$0xff] %v3402
        %3659 = vst [vmem:[#allocation2 + $0x320] sm:$0xff] %v3403
        %3660 = vst [vmem:[#allocation2 + $0x328] sm:$0xff] %v3404
        %3661 = vst [vmem:[#allocation2 + $0x330] sm:$0xff] %v3405
        %3662 = vst [vmem:[#allocation2 + $0x338] sm:$0xff] %v3406
        %3663 = vst [vmem:[#allocation2 + $0x340] sm:$0xff] %v3407
        %3664 = vst [vmem:[#allocation2 + $0x348] sm:$0xff] %v3408
        %3665 = vst [vmem:[#allocation2 + $0x350] sm:$0xff] %v3409
        %3666 = vst [vmem:[#allocation2 + $0x358] sm:$0xff] %v3410
        %3667 = vst [vmem:[#allocation2 + $0x360] sm:$0xff] %v3411
        %3668 = vst [vmem:[#allocation2 + $0x368] sm:$0xff] %v3412
        %3669 = vst [vmem:[#allocation2 + $0x370] sm:$0xff] %v3413
        %3670 = vst [vmem:[#allocation2 + $0x378] sm:$0xff] %v3414
        %3671 = vst [vmem:[#allocation2 + $0x380] sm:$0xff] %v3415
        %3672 = vst [vmem:[#allocation2 + $0x388] sm:$0xff] %v3416
        %3673 = vst [vmem:[#allocation2 + $0x390] sm:$0xff] %v3417
        %3674 = vst [vmem:[#allocation2 + $0x398] sm:$0xff] %v3418
        %3675 = vst [vmem:[#allocation2 + $0x3a0] sm:$0xff] %v3419
        %3676 = vst [vmem:[#allocation2 + $0x3a8] sm:$0xff] %v3420
        %3677 = vst [vmem:[#allocation2 + $0x3b0] sm:$0xff] %v3421
        %3678 = vst [vmem:[#allocation2 + $0x3b8] sm:$0xff] %v3422
        %3679 = vst [vmem:[#allocation2 + $0x3c0] sm:$0xff] %v3423
        %3680 = vst [vmem:[#allocation2 + $0x3c8] sm:$0xff] %v3424
        %3681 = vst [vmem:[#allocation2 + $0x3d0] sm:$0xff] %v3425
        %3682 = vst [vmem:[#allocation2 + $0x3d8] sm:$0xff] %v3426
        %3683 = vst [vmem:[#allocation2 + $0x3e0] sm:$0xff] %v3427
        %3684 = vst [vmem:[#allocation2 + $0x3e8] sm:$0xff] %v3428
        %3685 = vst [vmem:[#allocation2 + $0x3f0] sm:$0xff] %v3429
        %3686 = vst [vmem:[#allocation2 + $0x3f8] sm:$0xff] %v3430
        %3687 = vst [vmem:[#allocation2 + $0x400] sm:$0xff] %v3431
        %3688 = vst [vmem:[#allocation2 + $0x408] sm:$0xff] %v3432
        %3689 = vst [vmem:[#allocation2 + $0x410] sm:$0xff] %v3433
        %3690 = vst [vmem:[#allocation2 + $0x418] sm:$0xff] %v3434
        %3691 = vst [vmem:[#allocation2 + $0x420] sm:$0xff] %v3435
        %3692 = vst [vmem:[#allocation2 + $0x428] sm:$0xff] %v3436
        %3693 = vst [vmem:[#allocation2 + $0x430] sm:$0xff] %v3437
        %3694 = vst [vmem:[#allocation2 + $0x438] sm:$0xff] %v3438
        %3695 = vst [vmem:[#allocation2 + $0x440] sm:$0xff] %v3439
        %3696 = vst [vmem:[#allocation2 + $0x448] sm:$0xff] %v3440
        %3697 = vst [vmem:[#allocation2 + $0x450] sm:$0xff] %v3441
        %3698 = vst [vmem:[#allocation2 + $0x458] sm:$0xff] %v3442
        %3699 = vst [vmem:[#allocation2 + $0x460] sm:$0xff] %v3443
        %3700 = vst [vmem:[#allocation2 + $0x468] sm:$0xff] %v3444
        %3701 = vst [vmem:[#allocation2 + $0x470] sm:$0xff] %v3445
        %3702 = vst [vmem:[#allocation2 + $0x478] sm:$0xff] %v3446
        %3703 = vst [vmem:[#allocation2 + $0x480] sm:$0xff] %v3447
        %3704 = vst [vmem:[#allocation2 + $0x488] sm:$0xff] %v3448
        %3705 = vst [vmem:[#allocation2 + $0x490] sm:$0xff] %v3449
        %3706 = vst [vmem:[#allocation2 + $0x498] sm:$0xff] %v3450
        %3707 = vst [vmem:[#allocation2 + $0x4a0] sm:$0xff] %v3451
        %3708 = vst [vmem:[#allocation2 + $0x4a8] sm:$0xff] %v3452
        %3709 = vst [vmem:[#allocation2 + $0x4b0] sm:$0xff] %v3453
        %3710 = vst [vmem:[#allocation2 + $0x4b8] sm:$0xff] %v3454
        %3711 = vst [vmem:[#allocation2 + $0x4c0] sm:$0xff] %v3455
        %3712 = vst [vmem:[#allocation2 + $0x4c8] sm:$0xff] %v3456
        %3713 = vst [vmem:[#allocation2 + $0x4d0] sm:$0xff] %v3457
        %3714 = vst [vmem:[#allocation2 + $0x4d8] sm:$0xff] %v3458
        %3715 = vst [vmem:[#allocation2 + $0x4e0] sm:$0xff] %v3459
        %3716 = vst [vmem:[#allocation2 + $0x4e8] sm:$0xff] %v3460
        %3717 = vst [vmem:[#allocation2 + $0x4f0] sm:$0xff] %v3461
        %3718 = vst [vmem:[#allocation2 + $0x4f8] sm:$0xff] %v3462
        %3719 = vst [vmem:[#allocation2 + $0x500] sm:$0xff] %v3463
        %3720 = vst [vmem:[#allocation2 + $0x508] sm:$0xff] %v3464
        %3721 = vst [vmem:[#allocation2 + $0x510] sm:$0xff] %v3465
        %3722 = vst [vmem:[#allocation2 + $0x518] sm:$0xff] %v3466
        %3723 = vst [vmem:[#allocation2 + $0x520] sm:$0xff] %v3467
        %3724 = vst [vmem:[#allocation2 + $0x528] sm:$0xff] %v3468
        %3725 = vst [vmem:[#allocation2 + $0x530] sm:$0xff] %v3469
        %3726 = vst [vmem:[#allocation2 + $0x538] sm:$0xff] %v3470
        %3727 = vst [vmem:[#allocation2 + $0x540] sm:$0xff] %v3471
        %3728 = vst [vmem:[#allocation2 + $0x548] sm:$0xff] %v3472
        %3729 = vst [vmem:[#allocation2 + $0x550] sm:$0xff] %v3473
        %3730 = vst [vmem:[#allocation2 + $0x558] sm:$0xff] %v3474
        %3731 = vst [vmem:[#allocation2 + $0x560] sm:$0xff] %v3475
        %3732 = vst [vmem:[#allocation2 + $0x568] sm:$0xff] %v3476
        %3733 = vst [vmem:[#allocation2 + $0x570] sm:$0xff] %v3477
        %3734 = vst [vmem:[#allocation2 + $0x578] sm:$0xff] %v3478
        %3735 = vst [vmem:[#allocation2 + $0x580] sm:$0xff] %v3479
        %3736 = vst [vmem:[#allocation2 + $0x588] sm:$0xff] %v3480
        %3737 = vst [vmem:[#allocation2 + $0x590] sm:$0xff] %v3481
        %3738 = vst [vmem:[#allocation2 + $0x598] sm:$0xff] %v3482
        %3739 = vst [vmem:[#allocation2 + $0x5a0] sm:$0xff] %v3483
        %3740 = vst [vmem:[#allocation2 + $0x5a8] sm:$0xff] %v3484
        %3741 = vst [vmem:[#allocation2 + $0x5b0] sm:$0xff] %v3485
        %3742 = vst [vmem:[#allocation2 + $0x5b8] sm:$0xff] %v3486
        %3743 = vst [vmem:[#allocation2 + $0x5c0] sm:$0xff] %v3487
        %3744 = vst [vmem:[#allocation2 + $0x5c8] sm:$0xff] %v3488
        %3745 = vst [vmem:[#allocation2 + $0x5d0] sm:$0xff] %v3489
        %3746 = vst [vmem:[#allocation2 + $0x5d8] sm:$0xff] %v3490
        %3747 = vst [vmem:[#allocation2 + $0x5e0] sm:$0xff] %v3491
        %3748 = vst [vmem:[#allocation2 + $0x5e8] sm:$0xff] %v3492
        %3749 = vst [vmem:[#allocation2 + $0x5f0] sm:$0xff] %v3493
        %3750 = vst [vmem:[#allocation2 + $0x5f8] sm:$0xff] %v3494
        %3751 = vst [vmem:[#allocation2 + $0x600] sm:$0xff] %v3495
        %3752 = vst [vmem:[#allocation2 + $0x608] sm:$0xff] %v3496
        %3753 = vst [vmem:[#allocation2 + $0x610] sm:$0xff] %v3497
        %3754 = vst [vmem:[#allocation2 + $0x618] sm:$0xff] %v3498
        %3755 = vst [vmem:[#allocation2 + $0x620] sm:$0xff] %v3499
        %3756 = vst [vmem:[#allocation2 + $0x628] sm:$0xff] %v3500
        %3757 = vst [vmem:[#allocation2 + $0x630] sm:$0xff] %v3501
        %3758 = vst [vmem:[#allocation2 + $0x638] sm:$0xff] %v3502
        %3759 = vst [vmem:[#allocation2 + $0x640] sm:$0xff] %v3503
        %3760 = vst [vmem:[#allocation2 + $0x648] sm:$0xff] %v3504
        %3761 = vst [vmem:[#allocation2 + $0x650] sm:$0xff] %v3505
        %3762 = vst [vmem:[#allocation2 + $0x658] sm:$0xff] %v3506
        %3763 = vst [vmem:[#allocation2 + $0x660] sm:$0xff] %v3507
        %3764 = vst [vmem:[#allocation2 + $0x668] sm:$0xff] %v3508
        %3765 = vst [vmem:[#allocation2 + $0x670] sm:$0xff] %v3509
        %3766 = vst [vmem:[#allocation2 + $0x678] sm:$0xff] %v3510
        %3767 = vst [vmem:[#allocation2 + $0x680] sm:$0xff] %v3511
        %3768 = vst [vmem:[#allocation2 + $0x688] sm:$0xff] %v3512
        %3769 = vst [vmem:[#allocation2 + $0x690] sm:$0xff] %v3513
        %3770 = vst [vmem:[#allocation2 + $0x698] sm:$0xff] %v3514
        %3771 = vst [vmem:[#allocation2 + $0x6a0] sm:$0xff] %v3515
        %3772 = vst [vmem:[#allocation2 + $0x6a8] sm:$0xff] %v3516
        %3773 = vst [vmem:[#allocation2 + $0x6b0] sm:$0xff] %v3517
        %3774 = vst [vmem:[#allocation2 + $0x6b8] sm:$0xff] %v3518
        %3775 = vst [vmem:[#allocation2 + $0x6c0] sm:$0xff] %v3519
        %3776 = vst [vmem:[#allocation2 + $0x6c8] sm:$0xff] %v3520
        %3777 = vst [vmem:[#allocation2 + $0x6d0] sm:$0xff] %v3521
        %3778 = vst [vmem:[#allocation2 + $0x6d8] sm:$0xff] %v3522
        %3779 = vst [vmem:[#allocation2 + $0x6e0] sm:$0xff] %v3523
        %3780 = vst [vmem:[#allocation2 + $0x6e8] sm:$0xff] %v3524
        %3781 = vst [vmem:[#allocation2 + $0x6f0] sm:$0xff] %v3525
        %3782 = vst [vmem:[#allocation2 + $0x6f8] sm:$0xff] %v3526
        %3783 = vst [vmem:[#allocation2 + $0x700] sm:$0xff] %v3527
        %3784 = vst [vmem:[#allocation2 + $0x708] sm:$0xff] %v3528
        %3785 = vst [vmem:[#allocation2 + $0x710] sm:$0xff] %v3529
        %3786 = vst [vmem:[#allocation2 + $0x718] sm:$0xff] %v3530
        %3787 = vst [vmem:[#allocation2 + $0x720] sm:$0xff] %v3531
        %3788 = vst [vmem:[#allocation2 + $0x728] sm:$0xff] %v3532
        %3789 = vst [vmem:[#allocation2 + $0x730] sm:$0xff] %v3533
        %3790 = vst [vmem:[#allocation2 + $0x738] sm:$0xff] %v3534
        %3791 = vst [vmem:[#allocation2 + $0x740] sm:$0xff] %v3535
        %3792 = vst [vmem:[#allocation2 + $0x748] sm:$0xff] %v3536
        %3793 = vst [vmem:[#allocation2 + $0x750] sm:$0xff] %v3537
        %3794 = vst [vmem:[#allocation2 + $0x758] sm:$0xff] %v3538
        %3795 = vst [vmem:[#allocation2 + $0x760] sm:$0xff] %v3539
        %3796 = vst [vmem:[#allocation2 + $0x768] sm:$0xff] %v3540
        %3797 = vst [vmem:[#allocation2 + $0x770] sm:$0xff] %v3541
        %3798 = vst [vmem:[#allocation2 + $0x778] sm:$0xff] %v3542
        %3799 = vst [vmem:[#allocation2 + $0x780] sm:$0xff] %v3543
        %3800 = vst [vmem:[#allocation2 + $0x788] sm:$0xff] %v3544
        %3801 = vst [vmem:[#allocation2 + $0x790] sm:$0xff] %v3545
        %3802 = vst [vmem:[#allocation2 + $0x798] sm:$0xff] %v3546
        %3803 = vst [vmem:[#allocation2 + $0x7a0] sm:$0xff] %v3547
        %3804 = vst [vmem:[#allocation2 + $0x7a8] sm:$0xff] %v3548
        %3805 = vst [vmem:[#allocation2 + $0x7b0] sm:$0xff] %v3549
        %3806 = vst [vmem:[#allocation2 + $0x7b8] sm:$0xff] %v3550
        %3807 = vst [vmem:[#allocation2 + $0x7c0] sm:$0xff] %v3551
        %3808 = vst [vmem:[#allocation2 + $0x7c8] sm:$0xff] %v3552
        %3809 = vst [vmem:[#allocation2 + $0x7d0] sm:$0xff] %v3553
        %3810 = vst [vmem:[#allocation2 + $0x7d8] sm:$0xff] %v3554
        %3811 = vst [vmem:[#allocation2 + $0x7e0] sm:$0xff] %v3555
        %3812 = vst [vmem:[#allocation2 + $0x7e8] sm:$0xff] %v3556
        %3813 = vst [vmem:[#allocation2 + $0x7f0] sm:$0xff] %v3557
        %3814 = vst [vmem:[#allocation2 + $0x7f8] sm:$0xff] %v3558
        // Predicated region
        $region41: #{tpu_custom_call.1} parent=27 // pred_check
          %p3815 = pneg %p222
        $region42: #{tpu_custom_call.1} parent=27 // pred_check_branch
          %3817 = sbr.rel (%p3815) target = $region44
        $region43: #{tpu_custom_call.1} parent=27 // pred_region
          %v3818 = vld [vmem:[#allocation2] sm:$0xff]
          %v3819 = vld [vmem:[#allocation2 + $0x8] sm:$0xff]
          %v3820 = vld [vmem:[#allocation2 + $0x10] sm:$0xff]
          %v3821 = vld [vmem:[#allocation2 + $0x18] sm:$0xff]
          %v3822 = vld [vmem:[#allocation2 + $0x20] sm:$0xff]
          %v3823 = vld [vmem:[#allocation2 + $0x28] sm:$0xff]
          %v3824 = vld [vmem:[#allocation2 + $0x30] sm:$0xff]
          %v3825 = vld [vmem:[#allocation2 + $0x38] sm:$0xff]
          %v3826 = vld [vmem:[#allocation2 + $0x40] sm:$0xff]
          %v3827 = vld [vmem:[#allocation2 + $0x48] sm:$0xff]
          %v3828 = vld [vmem:[#allocation2 + $0x50] sm:$0xff]
          %v3829 = vld [vmem:[#allocation2 + $0x58] sm:$0xff]
          %v3830 = vld [vmem:[#allocation2 + $0x60] sm:$0xff]
          %v3831 = vld [vmem:[#allocation2 + $0x68] sm:$0xff]
          %v3832 = vld [vmem:[#allocation2 + $0x70] sm:$0xff]
          %v3833 = vld [vmem:[#allocation2 + $0x78] sm:$0xff]
          %v3834 = vld [vmem:[#allocation2 + $0x80] sm:$0xff]
          %v3835 = vld [vmem:[#allocation2 + $0x88] sm:$0xff]
          %v3836 = vld [vmem:[#allocation2 + $0x90] sm:$0xff]
          %v3837 = vld [vmem:[#allocation2 + $0x98] sm:$0xff]
          %v3838 = vld [vmem:[#allocation2 + $0xa0] sm:$0xff]
          %v3839 = vld [vmem:[#allocation2 + $0xa8] sm:$0xff]
          %v3840 = vld [vmem:[#allocation2 + $0xb0] sm:$0xff]
          %v3841 = vld [vmem:[#allocation2 + $0xb8] sm:$0xff]
          %v3842 = vld [vmem:[#allocation2 + $0xc0] sm:$0xff]
          %v3843 = vld [vmem:[#allocation2 + $0xc8] sm:$0xff]
          %v3844 = vld [vmem:[#allocation2 + $0xd0] sm:$0xff]
          %v3845 = vld [vmem:[#allocation2 + $0xd8] sm:$0xff]
          %v3846 = vld [vmem:[#allocation2 + $0xe0] sm:$0xff]
          %v3847 = vld [vmem:[#allocation2 + $0xe8] sm:$0xff]
          %v3848 = vld [vmem:[#allocation2 + $0xf0] sm:$0xff]
          %v3849 = vld [vmem:[#allocation2 + $0xf8] sm:$0xff]
          %v3850 = vld [vmem:[#allocation2 + $0x100] sm:$0xff]
          %v3851 = vld [vmem:[#allocation2 + $0x108] sm:$0xff]
          %v3852 = vld [vmem:[#allocation2 + $0x110] sm:$0xff]
          %v3853 = vld [vmem:[#allocation2 + $0x118] sm:$0xff]
          %v3854 = vld [vmem:[#allocation2 + $0x120] sm:$0xff]
          %v3855 = vld [vmem:[#allocation2 + $0x128] sm:$0xff]
          %v3856 = vld [vmem:[#allocation2 + $0x130] sm:$0xff]
          %v3857 = vld [vmem:[#allocation2 + $0x138] sm:$0xff]
          %v3858 = vld [vmem:[#allocation2 + $0x140] sm:$0xff]
          %v3859 = vld [vmem:[#allocation2 + $0x148] sm:$0xff]
          %v3860 = vld [vmem:[#allocation2 + $0x150] sm:$0xff]
          %v3861 = vld [vmem:[#allocation2 + $0x158] sm:$0xff]
          %v3862 = vld [vmem:[#allocation2 + $0x160] sm:$0xff]
          %v3863 = vld [vmem:[#allocation2 + $0x168] sm:$0xff]
          %v3864 = vld [vmem:[#allocation2 + $0x170] sm:$0xff]
          %v3865 = vld [vmem:[#allocation2 + $0x178] sm:$0xff]
          %v3866 = vld [vmem:[#allocation2 + $0x180] sm:$0xff]
          %v3867 = vld [vmem:[#allocation2 + $0x188] sm:$0xff]
          %v3868 = vld [vmem:[#allocation2 + $0x190] sm:$0xff]
          %v3869 = vld [vmem:[#allocation2 + $0x198] sm:$0xff]
          %v3870 = vld [vmem:[#allocation2 + $0x1a0] sm:$0xff]
          %v3871 = vld [vmem:[#allocation2 + $0x1a8] sm:$0xff]
          %v3872 = vld [vmem:[#allocation2 + $0x1b0] sm:$0xff]
          %v3873 = vld [vmem:[#allocation2 + $0x1b8] sm:$0xff]
          %v3874 = vld [vmem:[#allocation2 + $0x1c0] sm:$0xff]
          %v3875 = vld [vmem:[#allocation2 + $0x1c8] sm:$0xff]
          %v3876 = vld [vmem:[#allocation2 + $0x1d0] sm:$0xff]
          %v3877 = vld [vmem:[#allocation2 + $0x1d8] sm:$0xff]
          %v3878 = vld [vmem:[#allocation2 + $0x1e0] sm:$0xff]
          %v3879 = vld [vmem:[#allocation2 + $0x1e8] sm:$0xff]
          %v3880 = vld [vmem:[#allocation2 + $0x1f0] sm:$0xff]
          %v3881 = vld [vmem:[#allocation2 + $0x1f8] sm:$0xff]
          %v3882 = vld [vmem:[#allocation2 + $0x200] sm:$0xff]
          %v3883 = vld [vmem:[#allocation2 + $0x208] sm:$0xff]
          %v3884 = vld [vmem:[#allocation2 + $0x210] sm:$0xff]
          %v3885 = vld [vmem:[#allocation2 + $0x218] sm:$0xff]
          %v3886 = vld [vmem:[#allocation2 + $0x220] sm:$0xff]
          %v3887 = vld [vmem:[#allocation2 + $0x228] sm:$0xff]
          %v3888 = vld [vmem:[#allocation2 + $0x230] sm:$0xff]
          %v3889 = vld [vmem:[#allocation2 + $0x238] sm:$0xff]
          %v3890 = vld [vmem:[#allocation2 + $0x240] sm:$0xff]
          %v3891 = vld [vmem:[#allocation2 + $0x248] sm:$0xff]
          %v3892 = vld [vmem:[#allocation2 + $0x250] sm:$0xff]
          %v3893 = vld [vmem:[#allocation2 + $0x258] sm:$0xff]
          %v3894 = vld [vmem:[#allocation2 + $0x260] sm:$0xff]
          %v3895 = vld [vmem:[#allocation2 + $0x268] sm:$0xff]
          %v3896 = vld [vmem:[#allocation2 + $0x270] sm:$0xff]
          %v3897 = vld [vmem:[#allocation2 + $0x278] sm:$0xff]
          %v3898 = vld [vmem:[#allocation2 + $0x280] sm:$0xff]
          %v3899 = vld [vmem:[#allocation2 + $0x288] sm:$0xff]
          %v3900 = vld [vmem:[#allocation2 + $0x290] sm:$0xff]
          %v3901 = vld [vmem:[#allocation2 + $0x298] sm:$0xff]
          %v3902 = vld [vmem:[#allocation2 + $0x2a0] sm:$0xff]
          %v3903 = vld [vmem:[#allocation2 + $0x2a8] sm:$0xff]
          %v3904 = vld [vmem:[#allocation2 + $0x2b0] sm:$0xff]
          %v3905 = vld [vmem:[#allocation2 + $0x2b8] sm:$0xff]
          %v3906 = vld [vmem:[#allocation2 + $0x2c0] sm:$0xff]
          %v3907 = vld [vmem:[#allocation2 + $0x2c8] sm:$0xff]
          %v3908 = vld [vmem:[#allocation2 + $0x2d0] sm:$0xff]
          %v3909 = vld [vmem:[#allocation2 + $0x2d8] sm:$0xff]
          %v3910 = vld [vmem:[#allocation2 + $0x2e0] sm:$0xff]
          %v3911 = vld [vmem:[#allocation2 + $0x2e8] sm:$0xff]
          %v3912 = vld [vmem:[#allocation2 + $0x2f0] sm:$0xff]
          %v3913 = vld [vmem:[#allocation2 + $0x2f8] sm:$0xff]
          %v3914 = vld [vmem:[#allocation2 + $0x300] sm:$0xff]
          %v3915 = vld [vmem:[#allocation2 + $0x308] sm:$0xff]
          %v3916 = vld [vmem:[#allocation2 + $0x310] sm:$0xff]
          %v3917 = vld [vmem:[#allocation2 + $0x318] sm:$0xff]
          %v3918 = vld [vmem:[#allocation2 + $0x320] sm:$0xff]
          %v3919 = vld [vmem:[#allocation2 + $0x328] sm:$0xff]
          %v3920 = vld [vmem:[#allocation2 + $0x330] sm:$0xff]
          %v3921 = vld [vmem:[#allocation2 + $0x338] sm:$0xff]
          %v3922 = vld [vmem:[#allocation2 + $0x340] sm:$0xff]
          %v3923 = vld [vmem:[#allocation2 + $0x348] sm:$0xff]
          %v3924 = vld [vmem:[#allocation2 + $0x350] sm:$0xff]
          %v3925 = vld [vmem:[#allocation2 + $0x358] sm:$0xff]
          %v3926 = vld [vmem:[#allocation2 + $0x360] sm:$0xff]
          %v3927 = vld [vmem:[#allocation2 + $0x368] sm:$0xff]
          %v3928 = vld [vmem:[#allocation2 + $0x370] sm:$0xff]
          %v3929 = vld [vmem:[#allocation2 + $0x378] sm:$0xff]
          %v3930 = vld [vmem:[#allocation2 + $0x380] sm:$0xff]
          %v3931 = vld [vmem:[#allocation2 + $0x388] sm:$0xff]
          %v3932 = vld [vmem:[#allocation2 + $0x390] sm:$0xff]
          %v3933 = vld [vmem:[#allocation2 + $0x398] sm:$0xff]
          %v3934 = vld [vmem:[#allocation2 + $0x3a0] sm:$0xff]
          %v3935 = vld [vmem:[#allocation2 + $0x3a8] sm:$0xff]
          %v3936 = vld [vmem:[#allocation2 + $0x3b0] sm:$0xff]
          %v3937 = vld [vmem:[#allocation2 + $0x3b8] sm:$0xff]
          %v3938 = vld [vmem:[#allocation2 + $0x3c0] sm:$0xff]
          %v3939 = vld [vmem:[#allocation2 + $0x3c8] sm:$0xff]
          %v3940 = vld [vmem:[#allocation2 + $0x3d0] sm:$0xff]
          %v3941 = vld [vmem:[#allocation2 + $0x3d8] sm:$0xff]
          %v3942 = vld [vmem:[#allocation2 + $0x3e0] sm:$0xff]
          %v3943 = vld [vmem:[#allocation2 + $0x3e8] sm:$0xff]
          %v3944 = vld [vmem:[#allocation2 + $0x3f0] sm:$0xff]
          %v3945 = vld [vmem:[#allocation2 + $0x3f8] sm:$0xff]
          %v3946 = vld [vmem:[#allocation2 + $0x400] sm:$0xff]
          %v3947 = vld [vmem:[#allocation2 + $0x408] sm:$0xff]
          %v3948 = vld [vmem:[#allocation2 + $0x410] sm:$0xff]
          %v3949 = vld [vmem:[#allocation2 + $0x418] sm:$0xff]
          %v3950 = vld [vmem:[#allocation2 + $0x420] sm:$0xff]
          %v3951 = vld [vmem:[#allocation2 + $0x428] sm:$0xff]
          %v3952 = vld [vmem:[#allocation2 + $0x430] sm:$0xff]
          %v3953 = vld [vmem:[#allocation2 + $0x438] sm:$0xff]
          %v3954 = vld [vmem:[#allocation2 + $0x440] sm:$0xff]
          %v3955 = vld [vmem:[#allocation2 + $0x448] sm:$0xff]
          %v3956 = vld [vmem:[#allocation2 + $0x450] sm:$0xff]
          %v3957 = vld [vmem:[#allocation2 + $0x458] sm:$0xff]
          %v3958 = vld [vmem:[#allocation2 + $0x460] sm:$0xff]
          %v3959 = vld [vmem:[#allocation2 + $0x468] sm:$0xff]
          %v3960 = vld [vmem:[#allocation2 + $0x470] sm:$0xff]
          %v3961 = vld [vmem:[#allocation2 + $0x478] sm:$0xff]
          %v3962 = vld [vmem:[#allocation2 + $0x480] sm:$0xff]
          %v3963 = vld [vmem:[#allocation2 + $0x488] sm:$0xff]
          %v3964 = vld [vmem:[#allocation2 + $0x490] sm:$0xff]
          %v3965 = vld [vmem:[#allocation2 + $0x498] sm:$0xff]
          %v3966 = vld [vmem:[#allocation2 + $0x4a0] sm:$0xff]
          %v3967 = vld [vmem:[#allocation2 + $0x4a8] sm:$0xff]
          %v3968 = vld [vmem:[#allocation2 + $0x4b0] sm:$0xff]
          %v3969 = vld [vmem:[#allocation2 + $0x4b8] sm:$0xff]
          %v3970 = vld [vmem:[#allocation2 + $0x4c0] sm:$0xff]
          %v3971 = vld [vmem:[#allocation2 + $0x4c8] sm:$0xff]
          %v3972 = vld [vmem:[#allocation2 + $0x4d0] sm:$0xff]
          %v3973 = vld [vmem:[#allocation2 + $0x4d8] sm:$0xff]
          %v3974 = vld [vmem:[#allocation2 + $0x4e0] sm:$0xff]
          %v3975 = vld [vmem:[#allocation2 + $0x4e8] sm:$0xff]
          %v3976 = vld [vmem:[#allocation2 + $0x4f0] sm:$0xff]
          %v3977 = vld [vmem:[#allocation2 + $0x4f8] sm:$0xff]
          %v3978 = vld [vmem:[#allocation2 + $0x500] sm:$0xff]
          %v3979 = vld [vmem:[#allocation2 + $0x508] sm:$0xff]
          %v3980 = vld [vmem:[#allocation2 + $0x510] sm:$0xff]
          %v3981 = vld [vmem:[#allocation2 + $0x518] sm:$0xff]
          %v3982 = vld [vmem:[#allocation2 + $0x520] sm:$0xff]
          %v3983 = vld [vmem:[#allocation2 + $0x528] sm:$0xff]
          %v3984 = vld [vmem:[#allocation2 + $0x530] sm:$0xff]
          %v3985 = vld [vmem:[#allocation2 + $0x538] sm:$0xff]
          %v3986 = vld [vmem:[#allocation2 + $0x540] sm:$0xff]
          %v3987 = vld [vmem:[#allocation2 + $0x548] sm:$0xff]
          %v3988 = vld [vmem:[#allocation2 + $0x550] sm:$0xff]
          %v3989 = vld [vmem:[#allocation2 + $0x558] sm:$0xff]
          %v3990 = vld [vmem:[#allocation2 + $0x560] sm:$0xff]
          %v3991 = vld [vmem:[#allocation2 + $0x568] sm:$0xff]
          %v3992 = vld [vmem:[#allocation2 + $0x570] sm:$0xff]
          %v3993 = vld [vmem:[#allocation2 + $0x578] sm:$0xff]
          %v3994 = vld [vmem:[#allocation2 + $0x580] sm:$0xff]
          %v3995 = vld [vmem:[#allocation2 + $0x588] sm:$0xff]
          %v3996 = vld [vmem:[#allocation2 + $0x590] sm:$0xff]
          %v3997 = vld [vmem:[#allocation2 + $0x598] sm:$0xff]
          %v3998 = vld [vmem:[#allocation2 + $0x5a0] sm:$0xff]
          %v3999 = vld [vmem:[#allocation2 + $0x5a8] sm:$0xff]
          %v4000 = vld [vmem:[#allocation2 + $0x5b0] sm:$0xff]
          %v4001 = vld [vmem:[#allocation2 + $0x5b8] sm:$0xff]
          %v4002 = vld [vmem:[#allocation2 + $0x5c0] sm:$0xff]
          %v4003 = vld [vmem:[#allocation2 + $0x5c8] sm:$0xff]
          %v4004 = vld [vmem:[#allocation2 + $0x5d0] sm:$0xff]
          %v4005 = vld [vmem:[#allocation2 + $0x5d8] sm:$0xff]
          %v4006 = vld [vmem:[#allocation2 + $0x5e0] sm:$0xff]
          %v4007 = vld [vmem:[#allocation2 + $0x5e8] sm:$0xff]
          %v4008 = vld [vmem:[#allocation2 + $0x5f0] sm:$0xff]
          %v4009 = vld [vmem:[#allocation2 + $0x5f8] sm:$0xff]
          %v4010 = vld [vmem:[#allocation2 + $0x600] sm:$0xff]
          %v4011 = vld [vmem:[#allocation2 + $0x608] sm:$0xff]
          %v4012 = vld [vmem:[#allocation2 + $0x610] sm:$0xff]
          %v4013 = vld [vmem:[#allocation2 + $0x618] sm:$0xff]
          %v4014 = vld [vmem:[#allocation2 + $0x620] sm:$0xff]
          %v4015 = vld [vmem:[#allocation2 + $0x628] sm:$0xff]
          %v4016 = vld [vmem:[#allocation2 + $0x630] sm:$0xff]
          %v4017 = vld [vmem:[#allocation2 + $0x638] sm:$0xff]
          %v4018 = vld [vmem:[#allocation2 + $0x640] sm:$0xff]
          %v4019 = vld [vmem:[#allocation2 + $0x648] sm:$0xff]
          %v4020 = vld [vmem:[#allocation2 + $0x650] sm:$0xff]
          %v4021 = vld [vmem:[#allocation2 + $0x658] sm:$0xff]
          %v4022 = vld [vmem:[#allocation2 + $0x660] sm:$0xff]
          %v4023 = vld [vmem:[#allocation2 + $0x668] sm:$0xff]
          %v4024 = vld [vmem:[#allocation2 + $0x670] sm:$0xff]
          %v4025 = vld [vmem:[#allocation2 + $0x678] sm:$0xff]
          %v4026 = vld [vmem:[#allocation2 + $0x680] sm:$0xff]
          %v4027 = vld [vmem:[#allocation2 + $0x688] sm:$0xff]
          %v4028 = vld [vmem:[#allocation2 + $0x690] sm:$0xff]
          %v4029 = vld [vmem:[#allocation2 + $0x698] sm:$0xff]
          %v4030 = vld [vmem:[#allocation2 + $0x6a0] sm:$0xff]
          %v4031 = vld [vmem:[#allocation2 + $0x6a8] sm:$0xff]
          %v4032 = vld [vmem:[#allocation2 + $0x6b0] sm:$0xff]
          %v4033 = vld [vmem:[#allocation2 + $0x6b8] sm:$0xff]
          %v4034 = vld [vmem:[#allocation2 + $0x6c0] sm:$0xff]
          %v4035 = vld [vmem:[#allocation2 + $0x6c8] sm:$0xff]
          %v4036 = vld [vmem:[#allocation2 + $0x6d0] sm:$0xff]
          %v4037 = vld [vmem:[#allocation2 + $0x6d8] sm:$0xff]
          %v4038 = vld [vmem:[#allocation2 + $0x6e0] sm:$0xff]
          %v4039 = vld [vmem:[#allocation2 + $0x6e8] sm:$0xff]
          %v4040 = vld [vmem:[#allocation2 + $0x6f0] sm:$0xff]
          %v4041 = vld [vmem:[#allocation2 + $0x6f8] sm:$0xff]
          %v4042 = vld [vmem:[#allocation2 + $0x700] sm:$0xff]
          %v4043 = vld [vmem:[#allocation2 + $0x708] sm:$0xff]
          %v4044 = vld [vmem:[#allocation2 + $0x710] sm:$0xff]
          %v4045 = vld [vmem:[#allocation2 + $0x718] sm:$0xff]
          %v4046 = vld [vmem:[#allocation2 + $0x720] sm:$0xff]
          %v4047 = vld [vmem:[#allocation2 + $0x728] sm:$0xff]
          %v4048 = vld [vmem:[#allocation2 + $0x730] sm:$0xff]
          %v4049 = vld [vmem:[#allocation2 + $0x738] sm:$0xff]
          %v4050 = vld [vmem:[#allocation2 + $0x740] sm:$0xff]
          %v4051 = vld [vmem:[#allocation2 + $0x748] sm:$0xff]
          %v4052 = vld [vmem:[#allocation2 + $0x750] sm:$0xff]
          %v4053 = vld [vmem:[#allocation2 + $0x758] sm:$0xff]
          %v4054 = vld [vmem:[#allocation2 + $0x760] sm:$0xff]
          %v4055 = vld [vmem:[#allocation2 + $0x768] sm:$0xff]
          %v4056 = vld [vmem:[#allocation2 + $0x770] sm:$0xff]
          %v4057 = vld [vmem:[#allocation2 + $0x778] sm:$0xff]
          %v4058 = vld [vmem:[#allocation2 + $0x780] sm:$0xff]
          %v4059 = vld [vmem:[#allocation2 + $0x788] sm:$0xff]
          %v4060 = vld [vmem:[#allocation2 + $0x790] sm:$0xff]
          %v4061 = vld [vmem:[#allocation2 + $0x798] sm:$0xff]
          %v4062 = vld [vmem:[#allocation2 + $0x7a0] sm:$0xff]
          %v4063 = vld [vmem:[#allocation2 + $0x7a8] sm:$0xff]
          %v4064 = vld [vmem:[#allocation2 + $0x7b0] sm:$0xff]
          %v4065 = vld [vmem:[#allocation2 + $0x7b8] sm:$0xff]
          %v4066 = vld [vmem:[#allocation2 + $0x7c0] sm:$0xff]
          %v4067 = vld [vmem:[#allocation2 + $0x7c8] sm:$0xff]
          %v4068 = vld [vmem:[#allocation2 + $0x7d0] sm:$0xff]
          %v4069 = vld [vmem:[#allocation2 + $0x7d8] sm:$0xff]
          %v4070 = vld [vmem:[#allocation2 + $0x7e0] sm:$0xff]
          %v4071 = vld [vmem:[#allocation2 + $0x7e8] sm:$0xff]
          %v4072 = vld [vmem:[#allocation2 + $0x7f0] sm:$0xff]
          %v4073 = vld [vmem:[#allocation2 + $0x7f8] sm:$0xff]
          %v4074 = vmul.f32 %v3818, 1.442695
          %v4075 = vpow.pop %v4074
          %v4076 = vmul.f32 %v3819, 1.442695
          %v4077 = vpow.pop %v4076
          %v4078 = vmul.f32 %v3820, 1.442695
          %v4079 = vpow.pop %v4078
          %v4080 = vmul.f32 %v3821, 1.442695
          %v4081 = vpow.pop %v4080
          %v4082 = vmul.f32 %v3822, 1.442695
          %v4083 = vpow.pop %v4082
          %v4084 = vmul.f32 %v3823, 1.442695
          %v4085 = vpow.pop %v4084
          %v4086 = vmul.f32 %v3824, 1.442695
          %v4087 = vpow.pop %v4086
          %v4088 = vmul.f32 %v3825, 1.442695
          %v4089 = vpow.pop %v4088
          %v4090 = vmul.f32 %v3826, 1.442695
          %v4091 = vpow.pop %v4090
          %v4092 = vmul.f32 %v3827, 1.442695
          %v4093 = vpow.pop %v4092
          %v4094 = vmul.f32 %v3828, 1.442695
          %v4095 = vpow.pop %v4094
          %v4096 = vmul.f32 %v3829, 1.442695
          %v4097 = vpow.pop %v4096
          %v4098 = vmul.f32 %v3830, 1.442695
          %v4099 = vpow.pop %v4098
          %v4100 = vmul.f32 %v3831, 1.442695
          %v4101 = vpow.pop %v4100
          %v4102 = vmul.f32 %v3832, 1.442695
          %v4103 = vpow.pop %v4102
          %v4104 = vmul.f32 %v3833, 1.442695
          %v4105 = vpow.pop %v4104
          %v4106 = vmul.f32 %v3834, 1.442695
          %v4107 = vpow.pop %v4106
          %v4108 = vmul.f32 %v3835, 1.442695
          %v4109 = vpow.pop %v4108
          %v4110 = vmul.f32 %v3836, 1.442695
          %v4111 = vpow.pop %v4110
          %v4112 = vmul.f32 %v3837, 1.442695
          %v4113 = vpow.pop %v4112
          %v4114 = vmul.f32 %v3838, 1.442695
          %v4115 = vpow.pop %v4114
          %v4116 = vmul.f32 %v3839, 1.442695
          %v4117 = vpow.pop %v4116
          %v4118 = vmul.f32 %v3840, 1.442695
          %v4119 = vpow.pop %v4118
          %v4120 = vmul.f32 %v3841, 1.442695
          %v4121 = vpow.pop %v4120
          %v4122 = vmul.f32 %v3842, 1.442695
          %v4123 = vpow.pop %v4122
          %v4124 = vmul.f32 %v3843, 1.442695
          %v4125 = vpow.pop %v4124
          %v4126 = vmul.f32 %v3844, 1.442695
          %v4127 = vpow.pop %v4126
          %v4128 = vmul.f32 %v3845, 1.442695
          %v4129 = vpow.pop %v4128
          %v4130 = vmul.f32 %v3846, 1.442695
          %v4131 = vpow.pop %v4130
          %v4132 = vmul.f32 %v3847, 1.442695
          %v4133 = vpow.pop %v4132
          %v4134 = vmul.f32 %v3848, 1.442695
          %v4135 = vpow.pop %v4134
          %v4136 = vmul.f32 %v3849, 1.442695
          %v4137 = vpow.pop %v4136
          %v4138 = vmul.f32 %v3850, 1.442695
          %v4139 = vpow.pop %v4138
          %v4140 = vmul.f32 %v3851, 1.442695
          %v4141 = vpow.pop %v4140
          %v4142 = vmul.f32 %v3852, 1.442695
          %v4143 = vpow.pop %v4142
          %v4144 = vmul.f32 %v3853, 1.442695
          %v4145 = vpow.pop %v4144
          %v4146 = vmul.f32 %v3854, 1.442695
          %v4147 = vpow.pop %v4146
          %v4148 = vmul.f32 %v3855, 1.442695
          %v4149 = vpow.pop %v4148
          %v4150 = vmul.f32 %v3856, 1.442695
          %v4151 = vpow.pop %v4150
          %v4152 = vmul.f32 %v3857, 1.442695
          %v4153 = vpow.pop %v4152
          %v4154 = vmul.f32 %v3858, 1.442695
          %v4155 = vpow.pop %v4154
          %v4156 = vmul.f32 %v3859, 1.442695
          %v4157 = vpow.pop %v4156
          %v4158 = vmul.f32 %v3860, 1.442695
          %v4159 = vpow.pop %v4158
          %v4160 = vmul.f32 %v3861, 1.442695
          %v4161 = vpow.pop %v4160
          %v4162 = vmul.f32 %v3862, 1.442695
          %v4163 = vpow.pop %v4162
          %v4164 = vmul.f32 %v3863, 1.442695
          %v4165 = vpow.pop %v4164
          %v4166 = vmul.f32 %v3864, 1.442695
          %v4167 = vpow.pop %v4166
          %v4168 = vmul.f32 %v3865, 1.442695
          %v4169 = vpow.pop %v4168
          %v4170 = vmul.f32 %v3866, 1.442695
          %v4171 = vpow.pop %v4170
          %v4172 = vmul.f32 %v3867, 1.442695
          %v4173 = vpow.pop %v4172
          %v4174 = vmul.f32 %v3868, 1.442695
          %v4175 = vpow.pop %v4174
          %v4176 = vmul.f32 %v3869, 1.442695
          %v4177 = vpow.pop %v4176
          %v4178 = vmul.f32 %v3870, 1.442695
          %v4179 = vpow.pop %v4178
          %v4180 = vmul.f32 %v3871, 1.442695
          %v4181 = vpow.pop %v4180
          %v4182 = vmul.f32 %v3872, 1.442695
          %v4183 = vpow.pop %v4182
          %v4184 = vmul.f32 %v3873, 1.442695
          %v4185 = vpow.pop %v4184
          %v4186 = vmul.f32 %v3874, 1.442695
          %v4187 = vpow.pop %v4186
          %v4188 = vmul.f32 %v3875, 1.442695
          %v4189 = vpow.pop %v4188
          %v4190 = vmul.f32 %v3876, 1.442695
          %v4191 = vpow.pop %v4190
          %v4192 = vmul.f32 %v3877, 1.442695
          %v4193 = vpow.pop %v4192
          %v4194 = vmul.f32 %v3878, 1.442695
          %v4195 = vpow.pop %v4194
          %v4196 = vmul.f32 %v3879, 1.442695
          %v4197 = vpow.pop %v4196
          %v4198 = vmul.f32 %v3880, 1.442695
          %v4199 = vpow.pop %v4198
          %v4200 = vmul.f32 %v3881, 1.442695
          %v4201 = vpow.pop %v4200
          %v4202 = vmul.f32 %v3882, 1.442695
          %v4203 = vpow.pop %v4202
          %v4204 = vmul.f32 %v3883, 1.442695
          %v4205 = vpow.pop %v4204
          %v4206 = vmul.f32 %v3884, 1.442695
          %v4207 = vpow.pop %v4206
          %v4208 = vmul.f32 %v3885, 1.442695
          %v4209 = vpow.pop %v4208
          %v4210 = vmul.f32 %v3886, 1.442695
          %v4211 = vpow.pop %v4210
          %v4212 = vmul.f32 %v3887, 1.442695
          %v4213 = vpow.pop %v4212
          %v4214 = vmul.f32 %v3888, 1.442695
          %v4215 = vpow.pop %v4214
          %v4216 = vmul.f32 %v3889, 1.442695
          %v4217 = vpow.pop %v4216
          %v4218 = vmul.f32 %v3890, 1.442695
          %v4219 = vpow.pop %v4218
          %v4220 = vmul.f32 %v3891, 1.442695
          %v4221 = vpow.pop %v4220
          %v4222 = vmul.f32 %v3892, 1.442695
          %v4223 = vpow.pop %v4222
          %v4224 = vmul.f32 %v3893, 1.442695
          %v4225 = vpow.pop %v4224
          %v4226 = vmul.f32 %v3894, 1.442695
          %v4227 = vpow.pop %v4226
          %v4228 = vmul.f32 %v3895, 1.442695
          %v4229 = vpow.pop %v4228
          %v4230 = vmul.f32 %v3896, 1.442695
          %v4231 = vpow.pop %v4230
          %v4232 = vmul.f32 %v3897, 1.442695
          %v4233 = vpow.pop %v4232
          %v4234 = vmul.f32 %v3898, 1.442695
          %v4235 = vpow.pop %v4234
          %v4236 = vmul.f32 %v3899, 1.442695
          %v4237 = vpow.pop %v4236
          %v4238 = vmul.f32 %v3900, 1.442695
          %v4239 = vpow.pop %v4238
          %v4240 = vmul.f32 %v3901, 1.442695
          %v4241 = vpow.pop %v4240
          %v4242 = vmul.f32 %v3902, 1.442695
          %v4243 = vpow.pop %v4242
          %v4244 = vmul.f32 %v3903, 1.442695
          %v4245 = vpow.pop %v4244
          %v4246 = vmul.f32 %v3904, 1.442695
          %v4247 = vpow.pop %v4246
          %v4248 = vmul.f32 %v3905, 1.442695
          %v4249 = vpow.pop %v4248
          %v4250 = vmul.f32 %v3906, 1.442695
          %v4251 = vpow.pop %v4250
          %v4252 = vmul.f32 %v3907, 1.442695
          %v4253 = vpow.pop %v4252
          %v4254 = vmul.f32 %v3908, 1.442695
          %v4255 = vpow.pop %v4254
          %v4256 = vmul.f32 %v3909, 1.442695
          %v4257 = vpow.pop %v4256
          %v4258 = vmul.f32 %v3910, 1.442695
          %v4259 = vpow.pop %v4258
          %v4260 = vmul.f32 %v3911, 1.442695
          %v4261 = vpow.pop %v4260
          %v4262 = vmul.f32 %v3912, 1.442695
          %v4263 = vpow.pop %v4262
          %v4264 = vmul.f32 %v3913, 1.442695
          %v4265 = vpow.pop %v4264
          %v4266 = vmul.f32 %v3914, 1.442695
          %v4267 = vpow.pop %v4266
          %v4268 = vmul.f32 %v3915, 1.442695
          %v4269 = vpow.pop %v4268
          %v4270 = vmul.f32 %v3916, 1.442695
          %v4271 = vpow.pop %v4270
          %v4272 = vmul.f32 %v3917, 1.442695
          %v4273 = vpow.pop %v4272
          %v4274 = vmul.f32 %v3918, 1.442695
          %v4275 = vpow.pop %v4274
          %v4276 = vmul.f32 %v3919, 1.442695
          %v4277 = vpow.pop %v4276
          %v4278 = vmul.f32 %v3920, 1.442695
          %v4279 = vpow.pop %v4278
          %v4280 = vmul.f32 %v3921, 1.442695
          %v4281 = vpow.pop %v4280
          %v4282 = vmul.f32 %v3922, 1.442695
          %v4283 = vpow.pop %v4282
          %v4284 = vmul.f32 %v3923, 1.442695
          %v4285 = vpow.pop %v4284
          %v4286 = vmul.f32 %v3924, 1.442695
          %v4287 = vpow.pop %v4286
          %v4288 = vmul.f32 %v3925, 1.442695
          %v4289 = vpow.pop %v4288
          %v4290 = vmul.f32 %v3926, 1.442695
          %v4291 = vpow.pop %v4290
          %v4292 = vmul.f32 %v3927, 1.442695
          %v4293 = vpow.pop %v4292
          %v4294 = vmul.f32 %v3928, 1.442695
          %v4295 = vpow.pop %v4294
          %v4296 = vmul.f32 %v3929, 1.442695
          %v4297 = vpow.pop %v4296
          %v4298 = vmul.f32 %v3930, 1.442695
          %v4299 = vpow.pop %v4298
          %v4300 = vmul.f32 %v3931, 1.442695
          %v4301 = vpow.pop %v4300
          %v4302 = vmul.f32 %v3932, 1.442695
          %v4303 = vpow.pop %v4302
          %v4304 = vmul.f32 %v3933, 1.442695
          %v4305 = vpow.pop %v4304
          %v4306 = vmul.f32 %v3934, 1.442695
          %v4307 = vpow.pop %v4306
          %v4308 = vmul.f32 %v3935, 1.442695
          %v4309 = vpow.pop %v4308
          %v4310 = vmul.f32 %v3936, 1.442695
          %v4311 = vpow.pop %v4310
          %v4312 = vmul.f32 %v3937, 1.442695
          %v4313 = vpow.pop %v4312
          %v4314 = vmul.f32 %v3938, 1.442695
          %v4315 = vpow.pop %v4314
          %v4316 = vmul.f32 %v3939, 1.442695
          %v4317 = vpow.pop %v4316
          %v4318 = vmul.f32 %v3940, 1.442695
          %v4319 = vpow.pop %v4318
          %v4320 = vmul.f32 %v3941, 1.442695
          %v4321 = vpow.pop %v4320
          %v4322 = vmul.f32 %v3942, 1.442695
          %v4323 = vpow.pop %v4322
          %v4324 = vmul.f32 %v3943, 1.442695
          %v4325 = vpow.pop %v4324
          %v4326 = vmul.f32 %v3944, 1.442695
          %v4327 = vpow.pop %v4326
          %v4328 = vmul.f32 %v3945, 1.442695
          %v4329 = vpow.pop %v4328
          %v4330 = vmul.f32 %v3946, 1.442695
          %v4331 = vpow.pop %v4330
          %v4332 = vmul.f32 %v3947, 1.442695
          %v4333 = vpow.pop %v4332
          %v4334 = vmul.f32 %v3948, 1.442695
          %v4335 = vpow.pop %v4334
          %v4336 = vmul.f32 %v3949, 1.442695
          %v4337 = vpow.pop %v4336
          %v4338 = vmul.f32 %v3950, 1.442695
          %v4339 = vpow.pop %v4338
          %v4340 = vmul.f32 %v3951, 1.442695
          %v4341 = vpow.pop %v4340
          %v4342 = vmul.f32 %v3952, 1.442695
          %v4343 = vpow.pop %v4342
          %v4344 = vmul.f32 %v3953, 1.442695
          %v4345 = vpow.pop %v4344
          %v4346 = vmul.f32 %v3954, 1.442695
          %v4347 = vpow.pop %v4346
          %v4348 = vmul.f32 %v3955, 1.442695
          %v4349 = vpow.pop %v4348
          %v4350 = vmul.f32 %v3956, 1.442695
          %v4351 = vpow.pop %v4350
          %v4352 = vmul.f32 %v3957, 1.442695
          %v4353 = vpow.pop %v4352
          %v4354 = vmul.f32 %v3958, 1.442695
          %v4355 = vpow.pop %v4354
          %v4356 = vmul.f32 %v3959, 1.442695
          %v4357 = vpow.pop %v4356
          %v4358 = vmul.f32 %v3960, 1.442695
          %v4359 = vpow.pop %v4358
          %v4360 = vmul.f32 %v3961, 1.442695
          %v4361 = vpow.pop %v4360
          %v4362 = vmul.f32 %v3962, 1.442695
          %v4363 = vpow.pop %v4362
          %v4364 = vmul.f32 %v3963, 1.442695
          %v4365 = vpow.pop %v4364
          %v4366 = vmul.f32 %v3964, 1.442695
          %v4367 = vpow.pop %v4366
          %v4368 = vmul.f32 %v3965, 1.442695
          %v4369 = vpow.pop %v4368
          %v4370 = vmul.f32 %v3966, 1.442695
          %v4371 = vpow.pop %v4370
          %v4372 = vmul.f32 %v3967, 1.442695
          %v4373 = vpow.pop %v4372
          %v4374 = vmul.f32 %v3968, 1.442695
          %v4375 = vpow.pop %v4374
          %v4376 = vmul.f32 %v3969, 1.442695
          %v4377 = vpow.pop %v4376
          %v4378 = vmul.f32 %v3970, 1.442695
          %v4379 = vpow.pop %v4378
          %v4380 = vmul.f32 %v3971, 1.442695
          %v4381 = vpow.pop %v4380
          %v4382 = vmul.f32 %v3972, 1.442695
          %v4383 = vpow.pop %v4382
          %v4384 = vmul.f32 %v3973, 1.442695
          %v4385 = vpow.pop %v4384
          %v4386 = vmul.f32 %v3974, 1.442695
          %v4387 = vpow.pop %v4386
          %v4388 = vmul.f32 %v3975, 1.442695
          %v4389 = vpow.pop %v4388
          %v4390 = vmul.f32 %v3976, 1.442695
          %v4391 = vpow.pop %v4390
          %v4392 = vmul.f32 %v3977, 1.442695
          %v4393 = vpow.pop %v4392
          %v4394 = vmul.f32 %v3978, 1.442695
          %v4395 = vpow.pop %v4394
          %v4396 = vmul.f32 %v3979, 1.442695
          %v4397 = vpow.pop %v4396
          %v4398 = vmul.f32 %v3980, 1.442695
          %v4399 = vpow.pop %v4398
          %v4400 = vmul.f32 %v3981, 1.442695
          %v4401 = vpow.pop %v4400
          %v4402 = vmul.f32 %v3982, 1.442695
          %v4403 = vpow.pop %v4402
          %v4404 = vmul.f32 %v3983, 1.442695
          %v4405 = vpow.pop %v4404
          %v4406 = vmul.f32 %v3984, 1.442695
          %v4407 = vpow.pop %v4406
          %v4408 = vmul.f32 %v3985, 1.442695
          %v4409 = vpow.pop %v4408
          %v4410 = vmul.f32 %v3986, 1.442695
          %v4411 = vpow.pop %v4410
          %v4412 = vmul.f32 %v3987, 1.442695
          %v4413 = vpow.pop %v4412
          %v4414 = vmul.f32 %v3988, 1.442695
          %v4415 = vpow.pop %v4414
          %v4416 = vmul.f32 %v3989, 1.442695
          %v4417 = vpow.pop %v4416
          %v4418 = vmul.f32 %v3990, 1.442695
          %v4419 = vpow.pop %v4418
          %v4420 = vmul.f32 %v3991, 1.442695
          %v4421 = vpow.pop %v4420
          %v4422 = vmul.f32 %v3992, 1.442695
          %v4423 = vpow.pop %v4422
          %v4424 = vmul.f32 %v3993, 1.442695
          %v4425 = vpow.pop %v4424
          %v4426 = vmul.f32 %v3994, 1.442695
          %v4427 = vpow.pop %v4426
          %v4428 = vmul.f32 %v3995, 1.442695
          %v4429 = vpow.pop %v4428
          %v4430 = vmul.f32 %v3996, 1.442695
          %v4431 = vpow.pop %v4430
          %v4432 = vmul.f32 %v3997, 1.442695
          %v4433 = vpow.pop %v4432
          %v4434 = vmul.f32 %v3998, 1.442695
          %v4435 = vpow.pop %v4434
          %v4436 = vmul.f32 %v3999, 1.442695
          %v4437 = vpow.pop %v4436
          %v4438 = vmul.f32 %v4000, 1.442695
          %v4439 = vpow.pop %v4438
          %v4440 = vmul.f32 %v4001, 1.442695
          %v4441 = vpow.pop %v4440
          %v4442 = vmul.f32 %v4002, 1.442695
          %v4443 = vpow.pop %v4442
          %v4444 = vmul.f32 %v4003, 1.442695
          %v4445 = vpow.pop %v4444
          %v4446 = vmul.f32 %v4004, 1.442695
          %v4447 = vpow.pop %v4446
          %v4448 = vmul.f32 %v4005, 1.442695
          %v4449 = vpow.pop %v4448
          %v4450 = vmul.f32 %v4006, 1.442695
          %v4451 = vpow.pop %v4450
          %v4452 = vmul.f32 %v4007, 1.442695
          %v4453 = vpow.pop %v4452
          %v4454 = vmul.f32 %v4008, 1.442695
          %v4455 = vpow.pop %v4454
          %v4456 = vmul.f32 %v4009, 1.442695
          %v4457 = vpow.pop %v4456
          %v4458 = vmul.f32 %v4010, 1.442695
          %v4459 = vpow.pop %v4458
          %v4460 = vmul.f32 %v4011, 1.442695
          %v4461 = vpow.pop %v4460
          %v4462 = vmul.f32 %v4012, 1.442695
          %v4463 = vpow.pop %v4462
          %v4464 = vmul.f32 %v4013, 1.442695
          %v4465 = vpow.pop %v4464
          %v4466 = vmul.f32 %v4014, 1.442695
          %v4467 = vpow.pop %v4466
          %v4468 = vmul.f32 %v4015, 1.442695
          %v4469 = vpow.pop %v4468
          %v4470 = vmul.f32 %v4016, 1.442695
          %v4471 = vpow.pop %v4470
          %v4472 = vmul.f32 %v4017, 1.442695
          %v4473 = vpow.pop %v4472
          %v4474 = vmul.f32 %v4018, 1.442695
          %v4475 = vpow.pop %v4474
          %v4476 = vmul.f32 %v4019, 1.442695
          %v4477 = vpow.pop %v4476
          %v4478 = vmul.f32 %v4020, 1.442695
          %v4479 = vpow.pop %v4478
          %v4480 = vmul.f32 %v4021, 1.442695
          %v4481 = vpow.pop %v4480
          %v4482 = vmul.f32 %v4022, 1.442695
          %v4483 = vpow.pop %v4482
          %v4484 = vmul.f32 %v4023, 1.442695
          %v4485 = vpow.pop %v4484
          %v4486 = vmul.f32 %v4024, 1.442695
          %v4487 = vpow.pop %v4486
          %v4488 = vmul.f32 %v4025, 1.442695
          %v4489 = vpow.pop %v4488
          %v4490 = vmul.f32 %v4026, 1.442695
          %v4491 = vpow.pop %v4490
          %v4492 = vmul.f32 %v4027, 1.442695
          %v4493 = vpow.pop %v4492
          %v4494 = vmul.f32 %v4028, 1.442695
          %v4495 = vpow.pop %v4494
          %v4496 = vmul.f32 %v4029, 1.442695
          %v4497 = vpow.pop %v4496
          %v4498 = vmul.f32 %v4030, 1.442695
          %v4499 = vpow.pop %v4498
          %v4500 = vmul.f32 %v4031, 1.442695
          %v4501 = vpow.pop %v4500
          %v4502 = vmul.f32 %v4032, 1.442695
          %v4503 = vpow.pop %v4502
          %v4504 = vmul.f32 %v4033, 1.442695
          %v4505 = vpow.pop %v4504
          %v4506 = vmul.f32 %v4034, 1.442695
          %v4507 = vpow.pop %v4506
          %v4508 = vmul.f32 %v4035, 1.442695
          %v4509 = vpow.pop %v4508
          %v4510 = vmul.f32 %v4036, 1.442695
          %v4511 = vpow.pop %v4510
          %v4512 = vmul.f32 %v4037, 1.442695
          %v4513 = vpow.pop %v4512
          %v4514 = vmul.f32 %v4038, 1.442695
          %v4515 = vpow.pop %v4514
          %v4516 = vmul.f32 %v4039, 1.442695
          %v4517 = vpow.pop %v4516
          %v4518 = vmul.f32 %v4040, 1.442695
          %v4519 = vpow.pop %v4518
          %v4520 = vmul.f32 %v4041, 1.442695
          %v4521 = vpow.pop %v4520
          %v4522 = vmul.f32 %v4042, 1.442695
          %v4523 = vpow.pop %v4522
          %v4524 = vmul.f32 %v4043, 1.442695
          %v4525 = vpow.pop %v4524
          %v4526 = vmul.f32 %v4044, 1.442695
          %v4527 = vpow.pop %v4526
          %v4528 = vmul.f32 %v4045, 1.442695
          %v4529 = vpow.pop %v4528
          %v4530 = vmul.f32 %v4046, 1.442695
          %v4531 = vpow.pop %v4530
          %v4532 = vmul.f32 %v4047, 1.442695
          %v4533 = vpow.pop %v4532
          %v4534 = vmul.f32 %v4048, 1.442695
          %v4535 = vpow.pop %v4534
          %v4536 = vmul.f32 %v4049, 1.442695
          %v4537 = vpow.pop %v4536
          %v4538 = vmul.f32 %v4050, 1.442695
          %v4539 = vpow.pop %v4538
          %v4540 = vmul.f32 %v4051, 1.442695
          %v4541 = vpow.pop %v4540
          %v4542 = vmul.f32 %v4052, 1.442695
          %v4543 = vpow.pop %v4542
          %v4544 = vmul.f32 %v4053, 1.442695
          %v4545 = vpow.pop %v4544
          %v4546 = vmul.f32 %v4054, 1.442695
          %v4547 = vpow.pop %v4546
          %v4548 = vmul.f32 %v4055, 1.442695
          %v4549 = vpow.pop %v4548
          %v4550 = vmul.f32 %v4056, 1.442695
          %v4551 = vpow.pop %v4550
          %v4552 = vmul.f32 %v4057, 1.442695
          %v4553 = vpow.pop %v4552
          %v4554 = vmul.f32 %v4058, 1.442695
          %v4555 = vpow.pop %v4554
          %v4556 = vmul.f32 %v4059, 1.442695
          %v4557 = vpow.pop %v4556
          %v4558 = vmul.f32 %v4060, 1.442695
          %v4559 = vpow.pop %v4558
          %v4560 = vmul.f32 %v4061, 1.442695
          %v4561 = vpow.pop %v4560
          %v4562 = vmul.f32 %v4062, 1.442695
          %v4563 = vpow.pop %v4562
          %v4564 = vmul.f32 %v4063, 1.442695
          %v4565 = vpow.pop %v4564
          %v4566 = vmul.f32 %v4064, 1.442695
          %v4567 = vpow.pop %v4566
          %v4568 = vmul.f32 %v4065, 1.442695
          %v4569 = vpow.pop %v4568
          %v4570 = vmul.f32 %v4066, 1.442695
          %v4571 = vpow.pop %v4570
          %v4572 = vmul.f32 %v4067, 1.442695
          %v4573 = vpow.pop %v4572
          %v4574 = vmul.f32 %v4068, 1.442695
          %v4575 = vpow.pop %v4574
          %v4576 = vmul.f32 %v4069, 1.442695
          %v4577 = vpow.pop %v4576
          %v4578 = vmul.f32 %v4070, 1.442695
          %v4579 = vpow.pop %v4578
          %v4580 = vmul.f32 %v4071, 1.442695
          %v4581 = vpow.pop %v4580
          %v4582 = vmul.f32 %v4072, 1.442695
          %v4583 = vpow.pop %v4582
          %v4584 = vmul.f32 %v4073, 1.442695
          %v4585 = vpow.pop %v4584
          %4586 = vst [vmem:[%s215] sm:$0xff] %v4075
          %4587 = vst [vmem:[%s215 + $0x8] sm:$0xff] %v4077
          %4588 = vst [vmem:[%s215 + $0x10] sm:$0xff] %v4079
          %4589 = vst [vmem:[%s215 + $0x18] sm:$0xff] %v4081
          %4590 = vst [vmem:[%s215 + $0x20] sm:$0xff] %v4083
          %4591 = vst [vmem:[%s215 + $0x28] sm:$0xff] %v4085
          %4592 = vst [vmem:[%s215 + $0x30] sm:$0xff] %v4087
          %4593 = vst [vmem:[%s215 + $0x38] sm:$0xff] %v4089
          %4594 = vst [vmem:[%s215 + $0x40] sm:$0xff] %v4091
          %4595 = vst [vmem:[%s215 + $0x48] sm:$0xff] %v4093
          %4596 = vst [vmem:[%s215 + $0x50] sm:$0xff] %v4095
          %4597 = vst [vmem:[%s215 + $0x58] sm:$0xff] %v4097
          %4598 = vst [vmem:[%s215 + $0x60] sm:$0xff] %v4099
          %4599 = vst [vmem:[%s215 + $0x68] sm:$0xff] %v4101
          %4600 = vst [vmem:[%s215 + $0x70] sm:$0xff] %v4103
          %4601 = vst [vmem:[%s215 + $0x78] sm:$0xff] %v4105
          %4602 = vst [vmem:[%s215 + $0x80] sm:$0xff] %v4107
          %4603 = vst [vmem:[%s215 + $0x88] sm:$0xff] %v4109
          %4604 = vst [vmem:[%s215 + $0x90] sm:$0xff] %v4111
          %4605 = vst [vmem:[%s215 + $0x98] sm:$0xff] %v4113
          %4606 = vst [vmem:[%s215 + $0xa0] sm:$0xff] %v4115
          %4607 = vst [vmem:[%s215 + $0xa8] sm:$0xff] %v4117
          %4608 = vst [vmem:[%s215 + $0xb0] sm:$0xff] %v4119
          %4609 = vst [vmem:[%s215 + $0xb8] sm:$0xff] %v4121
          %4610 = vst [vmem:[%s215 + $0xc0] sm:$0xff] %v4123
          %4611 = vst [vmem:[%s215 + $0xc8] sm:$0xff] %v4125
          %4612 = vst [vmem:[%s215 + $0xd0] sm:$0xff] %v4127
          %4613 = vst [vmem:[%s215 + $0xd8] sm:$0xff] %v4129
          %4614 = vst [vmem:[%s215 + $0xe0] sm:$0xff] %v4131
          %4615 = vst [vmem:[%s215 + $0xe8] sm:$0xff] %v4133
          %4616 = vst [vmem:[%s215 + $0xf0] sm:$0xff] %v4135
          %4617 = vst [vmem:[%s215 + $0xf8] sm:$0xff] %v4137
          %4618 = vst [vmem:[%s215 + $0x100] sm:$0xff] %v4139
          %4619 = vst [vmem:[%s215 + $0x108] sm:$0xff] %v4141
          %4620 = vst [vmem:[%s215 + $0x110] sm:$0xff] %v4143
          %4621 = vst [vmem:[%s215 + $0x118] sm:$0xff] %v4145
          %4622 = vst [vmem:[%s215 + $0x120] sm:$0xff] %v4147
          %4623 = vst [vmem:[%s215 + $0x128] sm:$0xff] %v4149
          %4624 = vst [vmem:[%s215 + $0x130] sm:$0xff] %v4151
          %4625 = vst [vmem:[%s215 + $0x138] sm:$0xff] %v4153
          %4626 = vst [vmem:[%s215 + $0x140] sm:$0xff] %v4155
          %4627 = vst [vmem:[%s215 + $0x148] sm:$0xff] %v4157
          %4628 = vst [vmem:[%s215 + $0x150] sm:$0xff] %v4159
          %4629 = vst [vmem:[%s215 + $0x158] sm:$0xff] %v4161
          %4630 = vst [vmem:[%s215 + $0x160] sm:$0xff] %v4163
          %4631 = vst [vmem:[%s215 + $0x168] sm:$0xff] %v4165
          %4632 = vst [vmem:[%s215 + $0x170] sm:$0xff] %v4167
          %4633 = vst [vmem:[%s215 + $0x178] sm:$0xff] %v4169
          %4634 = vst [vmem:[%s215 + $0x180] sm:$0xff] %v4171
          %4635 = vst [vmem:[%s215 + $0x188] sm:$0xff] %v4173
          %4636 = vst [vmem:[%s215 + $0x190] sm:$0xff] %v4175
          %4637 = vst [vmem:[%s215 + $0x198] sm:$0xff] %v4177
          %4638 = vst [vmem:[%s215 + $0x1a0] sm:$0xff] %v4179
          %4639 = vst [vmem:[%s215 + $0x1a8] sm:$0xff] %v4181
          %4640 = vst [vmem:[%s215 + $0x1b0] sm:$0xff] %v4183
          %4641 = vst [vmem:[%s215 + $0x1b8] sm:$0xff] %v4185
          %4642 = vst [vmem:[%s215 + $0x1c0] sm:$0xff] %v4187
          %4643 = vst [vmem:[%s215 + $0x1c8] sm:$0xff] %v4189
          %4644 = vst [vmem:[%s215 + $0x1d0] sm:$0xff] %v4191
          %4645 = vst [vmem:[%s215 + $0x1d8] sm:$0xff] %v4193
          %4646 = vst [vmem:[%s215 + $0x1e0] sm:$0xff] %v4195
          %4647 = vst [vmem:[%s215 + $0x1e8] sm:$0xff] %v4197
          %4648 = vst [vmem:[%s215 + $0x1f0] sm:$0xff] %v4199
          %4649 = vst [vmem:[%s215 + $0x1f8] sm:$0xff] %v4201
          %4650 = vst [vmem:[%s215 + $0x200] sm:$0xff] %v4203
          %4651 = vst [vmem:[%s215 + $0x208] sm:$0xff] %v4205
          %4652 = vst [vmem:[%s215 + $0x210] sm:$0xff] %v4207
          %4653 = vst [vmem:[%s215 + $0x218] sm:$0xff] %v4209
          %4654 = vst [vmem:[%s215 + $0x220] sm:$0xff] %v4211
          %4655 = vst [vmem:[%s215 + $0x228] sm:$0xff] %v4213
          %4656 = vst [vmem:[%s215 + $0x230] sm:$0xff] %v4215
          %4657 = vst [vmem:[%s215 + $0x238] sm:$0xff] %v4217
          %4658 = vst [vmem:[%s215 + $0x240] sm:$0xff] %v4219
          %4659 = vst [vmem:[%s215 + $0x248] sm:$0xff] %v4221
          %4660 = vst [vmem:[%s215 + $0x250] sm:$0xff] %v4223
          %4661 = vst [vmem:[%s215 + $0x258] sm:$0xff] %v4225
          %4662 = vst [vmem:[%s215 + $0x260] sm:$0xff] %v4227
          %4663 = vst [vmem:[%s215 + $0x268] sm:$0xff] %v4229
          %4664 = vst [vmem:[%s215 + $0x270] sm:$0xff] %v4231
          %4665 = vst [vmem:[%s215 + $0x278] sm:$0xff] %v4233
          %4666 = vst [vmem:[%s215 + $0x280] sm:$0xff] %v4235
          %4667 = vst [vmem:[%s215 + $0x288] sm:$0xff] %v4237
          %4668 = vst [vmem:[%s215 + $0x290] sm:$0xff] %v4239
          %4669 = vst [vmem:[%s215 + $0x298] sm:$0xff] %v4241
          %4670 = vst [vmem:[%s215 + $0x2a0] sm:$0xff] %v4243
          %4671 = vst [vmem:[%s215 + $0x2a8] sm:$0xff] %v4245
          %4672 = vst [vmem:[%s215 + $0x2b0] sm:$0xff] %v4247
          %4673 = vst [vmem:[%s215 + $0x2b8] sm:$0xff] %v4249
          %4674 = vst [vmem:[%s215 + $0x2c0] sm:$0xff] %v4251
          %4675 = vst [vmem:[%s215 + $0x2c8] sm:$0xff] %v4253
          %4676 = vst [vmem:[%s215 + $0x2d0] sm:$0xff] %v4255
          %4677 = vst [vmem:[%s215 + $0x2d8] sm:$0xff] %v4257
          %4678 = vst [vmem:[%s215 + $0x2e0] sm:$0xff] %v4259
          %4679 = vst [vmem:[%s215 + $0x2e8] sm:$0xff] %v4261
          %4680 = vst [vmem:[%s215 + $0x2f0] sm:$0xff] %v4263
          %4681 = vst [vmem:[%s215 + $0x2f8] sm:$0xff] %v4265
          %4682 = vst [vmem:[%s215 + $0x300] sm:$0xff] %v4267
          %4683 = vst [vmem:[%s215 + $0x308] sm:$0xff] %v4269
          %4684 = vst [vmem:[%s215 + $0x310] sm:$0xff] %v4271
          %4685 = vst [vmem:[%s215 + $0x318] sm:$0xff] %v4273
          %4686 = vst [vmem:[%s215 + $0x320] sm:$0xff] %v4275
          %4687 = vst [vmem:[%s215 + $0x328] sm:$0xff] %v4277
          %4688 = vst [vmem:[%s215 + $0x330] sm:$0xff] %v4279
          %4689 = vst [vmem:[%s215 + $0x338] sm:$0xff] %v4281
          %4690 = vst [vmem:[%s215 + $0x340] sm:$0xff] %v4283
          %4691 = vst [vmem:[%s215 + $0x348] sm:$0xff] %v4285
          %4692 = vst [vmem:[%s215 + $0x350] sm:$0xff] %v4287
          %4693 = vst [vmem:[%s215 + $0x358] sm:$0xff] %v4289
          %4694 = vst [vmem:[%s215 + $0x360] sm:$0xff] %v4291
          %4695 = vst [vmem:[%s215 + $0x368] sm:$0xff] %v4293
          %4696 = vst [vmem:[%s215 + $0x370] sm:$0xff] %v4295
          %4697 = vst [vmem:[%s215 + $0x378] sm:$0xff] %v4297
          %4698 = vst [vmem:[%s215 + $0x380] sm:$0xff] %v4299
          %4699 = vst [vmem:[%s215 + $0x388] sm:$0xff] %v4301
          %4700 = vst [vmem:[%s215 + $0x390] sm:$0xff] %v4303
          %4701 = vst [vmem:[%s215 + $0x398] sm:$0xff] %v4305
          %4702 = vst [vmem:[%s215 + $0x3a0] sm:$0xff] %v4307
          %4703 = vst [vmem:[%s215 + $0x3a8] sm:$0xff] %v4309
          %4704 = vst [vmem:[%s215 + $0x3b0] sm:$0xff] %v4311
          %4705 = vst [vmem:[%s215 + $0x3b8] sm:$0xff] %v4313
          %4706 = vst [vmem:[%s215 + $0x3c0] sm:$0xff] %v4315
          %4707 = vst [vmem:[%s215 + $0x3c8] sm:$0xff] %v4317
          %4708 = vst [vmem:[%s215 + $0x3d0] sm:$0xff] %v4319
          %4709 = vst [vmem:[%s215 + $0x3d8] sm:$0xff] %v4321
          %4710 = vst [vmem:[%s215 + $0x3e0] sm:$0xff] %v4323
          %4711 = vst [vmem:[%s215 + $0x3e8] sm:$0xff] %v4325
          %4712 = vst [vmem:[%s215 + $0x3f0] sm:$0xff] %v4327
          %4713 = vst [vmem:[%s215 + $0x3f8] sm:$0xff] %v4329
          %4714 = vst [vmem:[%s215 + $0x400] sm:$0xff] %v4331
          %4715 = vst [vmem:[%s215 + $0x408] sm:$0xff] %v4333
          %4716 = vst [vmem:[%s215 + $0x410] sm:$0xff] %v4335
          %4717 = vst [vmem:[%s215 + $0x418] sm:$0xff] %v4337
          %4718 = vst [vmem:[%s215 + $0x420] sm:$0xff] %v4339
          %4719 = vst [vmem:[%s215 + $0x428] sm:$0xff] %v4341
          %4720 = vst [vmem:[%s215 + $0x430] sm:$0xff] %v4343
          %4721 = vst [vmem:[%s215 + $0x438] sm:$0xff] %v4345
          %4722 = vst [vmem:[%s215 + $0x440] sm:$0xff] %v4347
          %4723 = vst [vmem:[%s215 + $0x448] sm:$0xff] %v4349
          %4724 = vst [vmem:[%s215 + $0x450] sm:$0xff] %v4351
          %4725 = vst [vmem:[%s215 + $0x458] sm:$0xff] %v4353
          %4726 = vst [vmem:[%s215 + $0x460] sm:$0xff] %v4355
          %4727 = vst [vmem:[%s215 + $0x468] sm:$0xff] %v4357
          %4728 = vst [vmem:[%s215 + $0x470] sm:$0xff] %v4359
          %4729 = vst [vmem:[%s215 + $0x478] sm:$0xff] %v4361
          %4730 = vst [vmem:[%s215 + $0x480] sm:$0xff] %v4363
          %4731 = vst [vmem:[%s215 + $0x488] sm:$0xff] %v4365
          %4732 = vst [vmem:[%s215 + $0x490] sm:$0xff] %v4367
          %4733 = vst [vmem:[%s215 + $0x498] sm:$0xff] %v4369
          %4734 = vst [vmem:[%s215 + $0x4a0] sm:$0xff] %v4371
          %4735 = vst [vmem:[%s215 + $0x4a8] sm:$0xff] %v4373
          %4736 = vst [vmem:[%s215 + $0x4b0] sm:$0xff] %v4375
          %4737 = vst [vmem:[%s215 + $0x4b8] sm:$0xff] %v4377
          %4738 = vst [vmem:[%s215 + $0x4c0] sm:$0xff] %v4379
          %4739 = vst [vmem:[%s215 + $0x4c8] sm:$0xff] %v4381
          %4740 = vst [vmem:[%s215 + $0x4d0] sm:$0xff] %v4383
          %4741 = vst [vmem:[%s215 + $0x4d8] sm:$0xff] %v4385
          %4742 = vst [vmem:[%s215 + $0x4e0] sm:$0xff] %v4387
          %4743 = vst [vmem:[%s215 + $0x4e8] sm:$0xff] %v4389
          %4744 = vst [vmem:[%s215 + $0x4f0] sm:$0xff] %v4391
          %4745 = vst [vmem:[%s215 + $0x4f8] sm:$0xff] %v4393
          %4746 = vst [vmem:[%s215 + $0x500] sm:$0xff] %v4395
          %4747 = vst [vmem:[%s215 + $0x508] sm:$0xff] %v4397
          %4748 = vst [vmem:[%s215 + $0x510] sm:$0xff] %v4399
          %4749 = vst [vmem:[%s215 + $0x518] sm:$0xff] %v4401
          %4750 = vst [vmem:[%s215 + $0x520] sm:$0xff] %v4403
          %4751 = vst [vmem:[%s215 + $0x528] sm:$0xff] %v4405
          %4752 = vst [vmem:[%s215 + $0x530] sm:$0xff] %v4407
          %4753 = vst [vmem:[%s215 + $0x538] sm:$0xff] %v4409
          %4754 = vst [vmem:[%s215 + $0x540] sm:$0xff] %v4411
          %4755 = vst [vmem:[%s215 + $0x548] sm:$0xff] %v4413
          %4756 = vst [vmem:[%s215 + $0x550] sm:$0xff] %v4415
          %4757 = vst [vmem:[%s215 + $0x558] sm:$0xff] %v4417
          %4758 = vst [vmem:[%s215 + $0x560] sm:$0xff] %v4419
          %4759 = vst [vmem:[%s215 + $0x568] sm:$0xff] %v4421
          %4760 = vst [vmem:[%s215 + $0x570] sm:$0xff] %v4423
          %4761 = vst [vmem:[%s215 + $0x578] sm:$0xff] %v4425
          %4762 = vst [vmem:[%s215 + $0x580] sm:$0xff] %v4427
          %4763 = vst [vmem:[%s215 + $0x588] sm:$0xff] %v4429
          %4764 = vst [vmem:[%s215 + $0x590] sm:$0xff] %v4431
          %4765 = vst [vmem:[%s215 + $0x598] sm:$0xff] %v4433
          %4766 = vst [vmem:[%s215 + $0x5a0] sm:$0xff] %v4435
          %4767 = vst [vmem:[%s215 + $0x5a8] sm:$0xff] %v4437
          %4768 = vst [vmem:[%s215 + $0x5b0] sm:$0xff] %v4439
          %4769 = vst [vmem:[%s215 + $0x5b8] sm:$0xff] %v4441
          %4770 = vst [vmem:[%s215 + $0x5c0] sm:$0xff] %v4443
          %4771 = vst [vmem:[%s215 + $0x5c8] sm:$0xff] %v4445
          %4772 = vst [vmem:[%s215 + $0x5d0] sm:$0xff] %v4447
          %4773 = vst [vmem:[%s215 + $0x5d8] sm:$0xff] %v4449
          %4774 = vst [vmem:[%s215 + $0x5e0] sm:$0xff] %v4451
          %4775 = vst [vmem:[%s215 + $0x5e8] sm:$0xff] %v4453
          %4776 = vst [vmem:[%s215 + $0x5f0] sm:$0xff] %v4455
          %4777 = vst [vmem:[%s215 + $0x5f8] sm:$0xff] %v4457
          %4778 = vst [vmem:[%s215 + $0x600] sm:$0xff] %v4459
          %4779 = vst [vmem:[%s215 + $0x608] sm:$0xff] %v4461
          %4780 = vst [vmem:[%s215 + $0x610] sm:$0xff] %v4463
          %4781 = vst [vmem:[%s215 + $0x618] sm:$0xff] %v4465
          %4782 = vst [vmem:[%s215 + $0x620] sm:$0xff] %v4467
          %4783 = vst [vmem:[%s215 + $0x628] sm:$0xff] %v4469
          %4784 = vst [vmem:[%s215 + $0x630] sm:$0xff] %v4471
          %4785 = vst [vmem:[%s215 + $0x638] sm:$0xff] %v4473
          %4786 = vst [vmem:[%s215 + $0x640] sm:$0xff] %v4475
          %4787 = vst [vmem:[%s215 + $0x648] sm:$0xff] %v4477
          %4788 = vst [vmem:[%s215 + $0x650] sm:$0xff] %v4479
          %4789 = vst [vmem:[%s215 + $0x658] sm:$0xff] %v4481
          %4790 = vst [vmem:[%s215 + $0x660] sm:$0xff] %v4483
          %4791 = vst [vmem:[%s215 + $0x668] sm:$0xff] %v4485
          %4792 = vst [vmem:[%s215 + $0x670] sm:$0xff] %v4487
          %4793 = vst [vmem:[%s215 + $0x678] sm:$0xff] %v4489
          %4794 = vst [vmem:[%s215 + $0x680] sm:$0xff] %v4491
          %4795 = vst [vmem:[%s215 + $0x688] sm:$0xff] %v4493
          %4796 = vst [vmem:[%s215 + $0x690] sm:$0xff] %v4495
          %4797 = vst [vmem:[%s215 + $0x698] sm:$0xff] %v4497
          %4798 = vst [vmem:[%s215 + $0x6a0] sm:$0xff] %v4499
          %4799 = vst [vmem:[%s215 + $0x6a8] sm:$0xff] %v4501
          %4800 = vst [vmem:[%s215 + $0x6b0] sm:$0xff] %v4503
          %4801 = vst [vmem:[%s215 + $0x6b8] sm:$0xff] %v4505
          %4802 = vst [vmem:[%s215 + $0x6c0] sm:$0xff] %v4507
          %4803 = vst [vmem:[%s215 + $0x6c8] sm:$0xff] %v4509
          %4804 = vst [vmem:[%s215 + $0x6d0] sm:$0xff] %v4511
          %4805 = vst [vmem:[%s215 + $0x6d8] sm:$0xff] %v4513
          %4806 = vst [vmem:[%s215 + $0x6e0] sm:$0xff] %v4515
          %4807 = vst [vmem:[%s215 + $0x6e8] sm:$0xff] %v4517
          %4808 = vst [vmem:[%s215 + $0x6f0] sm:$0xff] %v4519
          %4809 = vst [vmem:[%s215 + $0x6f8] sm:$0xff] %v4521
          %4810 = vst [vmem:[%s215 + $0x700] sm:$0xff] %v4523
          %4811 = vst [vmem:[%s215 + $0x708] sm:$0xff] %v4525
          %4812 = vst [vmem:[%s215 + $0x710] sm:$0xff] %v4527
          %4813 = vst [vmem:[%s215 + $0x718] sm:$0xff] %v4529
          %4814 = vst [vmem:[%s215 + $0x720] sm:$0xff] %v4531
          %4815 = vst [vmem:[%s215 + $0x728] sm:$0xff] %v4533
          %4816 = vst [vmem:[%s215 + $0x730] sm:$0xff] %v4535
          %4817 = vst [vmem:[%s215 + $0x738] sm:$0xff] %v4537
          %4818 = vst [vmem:[%s215 + $0x740] sm:$0xff] %v4539
          %4819 = vst [vmem:[%s215 + $0x748] sm:$0xff] %v4541
          %4820 = vst [vmem:[%s215 + $0x750] sm:$0xff] %v4543
          %4821 = vst [vmem:[%s215 + $0x758] sm:$0xff] %v4545
          %4822 = vst [vmem:[%s215 + $0x760] sm:$0xff] %v4547
          %4823 = vst [vmem:[%s215 + $0x768] sm:$0xff] %v4549
          %4824 = vst [vmem:[%s215 + $0x770] sm:$0xff] %v4551
          %4825 = vst [vmem:[%s215 + $0x778] sm:$0xff] %v4553
          %4826 = vst [vmem:[%s215 + $0x780] sm:$0xff] %v4555
          %4827 = vst [vmem:[%s215 + $0x788] sm:$0xff] %v4557
          %4828 = vst [vmem:[%s215 + $0x790] sm:$0xff] %v4559
          %4829 = vst [vmem:[%s215 + $0x798] sm:$0xff] %v4561
          %4830 = vst [vmem:[%s215 + $0x7a0] sm:$0xff] %v4563
          %4831 = vst [vmem:[%s215 + $0x7a8] sm:$0xff] %v4565
          %4832 = vst [vmem:[%s215 + $0x7b0] sm:$0xff] %v4567
          %4833 = vst [vmem:[%s215 + $0x7b8] sm:$0xff] %v4569
          %4834 = vst [vmem:[%s215 + $0x7c0] sm:$0xff] %v4571
          %4835 = vst [vmem:[%s215 + $0x7c8] sm:$0xff] %v4573
          %4836 = vst [vmem:[%s215 + $0x7d0] sm:$0xff] %v4575
          %4837 = vst [vmem:[%s215 + $0x7d8] sm:$0xff] %v4577
          %4838 = vst [vmem:[%s215 + $0x7e0] sm:$0xff] %v4579
          %4839 = vst [vmem:[%s215 + $0x7e8] sm:$0xff] %v4581
          %4840 = vst [vmem:[%s215 + $0x7f0] sm:$0xff] %v4583
          %4841 = vst [vmem:[%s215 + $0x7f8] sm:$0xff] %v4585
        $region44: #{tpu_custom_call.1} parent=27 // pred_fallthru
          _
        %s4842 = sand.u32 %s105, 1
        %s4843 = scalar_lea.sflag [#allocation5], %s4842
        %s4844 = sand.u32 %s105, 1
        %s4845 = smul.addr %s4844, 2048
        %s4846 = scalar_lea.vmem [#allocation8], %s4845
        // Predicated region
        $region45: #{tpu_custom_call.1} parent=27 // pred_check
          %p4847 = pneg %p115
        $region46: #{tpu_custom_call.1} parent=27 // pred_check_branch
          %4849 = sbr.rel (%p4847) target = $region48
        $region47: #{tpu_custom_call.1} parent=27 // pred_region
          %s4850 = smul.u32 64, %s25
          %s4851 = smul.u32 4, %s26
          %s4853 = ssub.s32 32768, 32768
          %4854 = vsyncadd %s4843, %s4853
          %s4855 = smul.addr %s4850, 8
          %s4856 = sadd.s32 %s4851, %s4855
          %s4857 = smul.addr %s4856, 128
          %s4858 = scalar_lea.hbm %s2, %s4857
          %s4859 = sshll.u32 %s4846, 4
          %s4860 = int_to_ptr.vmem [resolvable:$true] %s4859
          %4865 = dma.vmem_to_hbm [thread:$0]  %s4860, 32768, %s4858, %s4843, 512, 1024, 32
        $region48: #{tpu_custom_call.1} parent=27 // pred_fallthru
          _
      $region28: #{tpu_custom_call.1} parent=5 // pred_fallthru
        _
      %p4866 = scmp.le.s32.totalorder 2, %s15
      // Predicated region
      $region49: #{tpu_custom_call.1} parent=5 // pred_check
        %p4867 = pneg %p4866
      $region50: #{tpu_custom_call.1} parent=5 // pred_check_branch
        %4869 = sbr.rel (%p4867) target = $region52
      $region51: #{tpu_custom_call.1} parent=5 // pred_region
        %s4870 = ssub.s32 %s15, 2
        // Predicated region
        $region53: #{tpu_custom_call.1} parent=51 // pred_check
          %p4871 = pneg %p121
        $region54: #{tpu_custom_call.1} parent=51 // pred_check_branch
          %4873 = sbr.rel (%p4871) target = $region56
        $region55: #{tpu_custom_call.1} parent=51 // pred_region
          %s4874 = sand.u32 %s106, 1
          %s4875 = scalar_lea.sflag [#allocation5], %s4874
          %s4876 = sand.u32 %s106, 1
          %s4877 = smul.addr %s4876, 2048
          %s4878 = scalar_lea.vmem [#allocation8], %s4877
          %4879 = dma.done %s4875, 32768
        $region56: #{tpu_custom_call.1} parent=51 // pred_fallthru
          _
      $region52: #{tpu_custom_call.1} parent=5 // pred_fallthru
        _
    $region6: #{tpu_custom_call.1} parent=1 // loop_footer
      %s19 = sadd.s32 1, %s15
    $region7: #{tpu_custom_call.1} parent=1 // loop_footer_branch
      %14 = sbr.rel target = $region3
    $region8: #{tpu_custom_call.1} parent=1 // loop_exit
      _
    %4880 = vsyncpa [#allocation4], 1
    %s4881 = scalar_lea.sflag [#allocation4], 1
    %4882 = vsyncpa %s4881, 1
    %4883 = vsyncpa [#allocation7], 1
    %s4884 = scalar_lea.sflag [#allocation7], 1
    %4885 = vsyncpa %s4884, 1
    %4886 = vsyncpa [#allocation5], 1
    %s4887 = scalar_lea.sflag [#allocation5], 1
    %4888 = vsyncpa %s4887, 1

</llo_original>
